<compile_context>
chip_gen: v7x
topology: tpu7x:2x2x1
jax: 0.10.0
libtpu: 0.0.40
codegen_flags: <defaults>
</compile_context>

<pallas_src>
import jax
import jax.numpy as jnp
from jax.experimental import pallas as pl
from jax.experimental.pallas import tpu as pltpu

# ---------------- small CLIP-ViT-like config (synthetic) ----------------
BATCH = 2
IN_CH = 3
IMG = 32
PATCH = 16
N_PATCH = (IMG // PATCH) ** 2            # 4 patches
SEQ = N_PATCH + 1                        # +1 class token -> 5
PATCH_DIM = IN_CH * PATCH * PATCH        # 768
HIDDEN = 64
HEADS = 2
HEAD_DIM = HIDDEN // HEADS
INTER = 128
LAYERS = 2
PROJ = 768                               # CLIP ViT-L/14 image-feature dim (matches real MLP)
MLP_DIMS = [(768, 1024), (1024, 128), (128, 64), (64, 16), (16, 1)]
LN_EPS = 1e-5
SCORE_LANES = 128                        # lane-dense score output; real value in lane 0


# ------------------------------ fused Pallas kernel ------------------------------

def _fused_kernel(tokens_ref, patch_w_ref, cls_pos_ref, ln_pre_ref,
                  wqkv_ref, bqkv_ref, wo_ref, bo_ref, ln_gb_ref,
                  wfc1_ref, bfc1_ref, wfc2_ref, bfc2_ref,
                  ln_post_ref, gram_ref, head_v_ref, head_b_ref,
                  o_ref):
  """Whole batch in one step: encoder + Gram-folded projection/L2/head, VMEM-resident."""
  f32 = jnp.float32
  bf16 = jnp.bfloat16
  B = tokens_ref.shape[0] // SEQ

  def mm(a, b):
    # bf16 MXU inputs, f32 accumulation.
    return jnp.dot(a.astype(bf16), b.astype(bf16), preferred_element_type=f32)

  def ln(x, gb):
    # gb: (2, D) rows = [gamma, beta]
    mu = jnp.mean(x, axis=-1, keepdims=True)
    var = jnp.mean(jnp.square(x - mu), axis=-1, keepdims=True)
    return (x - mu) * jax.lax.rsqrt(var + LN_EPS) * gb[0:1, :] + gb[1:2, :]

  scale = HEAD_DIM ** -0.5

  # patch embedding for all B*SEQ tokens at once; class token + positions were
  # pre-tiled into cls_pos on the host (token row 0 of each image is zeros).
  h = mm(tokens_ref[...], patch_w_ref[...]) + cls_pos_ref[...]   # (B*SEQ, HIDDEN)
  h = ln(h, ln_pre_ref[...])                                     # pre-LN

  for l in range(LAYERS):                                        # unrolled; weights VMEM-resident
    # ---- pre-LN multi-head self-attention (single fused-QKV matmul) ----
    x = ln(h, ln_gb_ref[2 * l])
    qkv = mm(x, wqkv_ref[l]) + bqkv_ref[l]                       # (B*SEQ, 3*HIDDEN)
    rows = []
    for b in range(B):                                           # tiny static loops (B=2, HEADS=2)
      r0 = b * SEQ
      heads = []
      for hh in range(HEADS):
        c = hh * HEAD_DIM
        q = qkv[r0:r0 + SEQ, c:c + HEAD_DIM]
        k = qkv[r0:r0 + SEQ, HIDDEN + c:HIDDEN + c + HEAD_DIM]
        v = qkv[r0:r0 + SEQ, 2 * HIDDEN + c:2 * HIDDEN + c + HEAD_DIM]
        s = jax.lax.dot_general(
            q.astype(bf16), k.astype(bf16),
            dimension_numbers=(((1,), (1,)), ((), ())),
            preferred_element_type=f32) * scale                  # (SEQ, SEQ)
        s = s - jnp.max(s, axis=-1, keepdims=True)
        p = jnp.exp(s)
        p = p * pl.reciprocal(jnp.sum(p, axis=-1, keepdims=True), approx=True)
        heads.append(mm(p, v))                                   # (SEQ, HEAD_DIM)
      rows.append(jnp.concatenate(heads, axis=-1))               # concat heads -> (SEQ, HIDDEN)
    attn = jnp.concatenate(rows, axis=0)                         # (B*SEQ, HIDDEN)
    h = h + mm(attn, wo_ref[l]) + bo_ref[l]                      # single output projection

    # ---- pre-LN MLP with QuickGELU ----
    x = ln(h, ln_gb_ref[2 * l + 1])
    x = mm(x, wfc1_ref[l]) + bfc1_ref[l]
    x = x * jax.nn.sigmoid(1.702 * x)                            # QuickGELU
    h = h + mm(x, wfc2_ref[l]) + bfc2_ref[l]

  # class-token pooling for every batch element, post-LN at M=B
  pooled = jnp.concatenate([h[b * SEQ:b * SEQ + 1, :] for b in range(B)], axis=0)  # (B, HIDDEN)
  pooled = ln(pooled, ln_post_ref[...])

  # Gram-folded visual projection + L2-normalize + folded aesthetic head:
  #   score = (pooled . head_v) * rsqrt(pooled @ G @ pooled^T) + head_b
  num = jnp.sum(pooled * head_v_ref[...], axis=-1, keepdims=True)   # (B, 1)   VPU
  gp = mm(pooled, gram_ref[...])                                    # (B, HIDDEN)
  nrm2 = jnp.sum(gp * pooled, axis=-1, keepdims=True)               # (B, 1)
  score = num * jax.lax.rsqrt(nrm2) + head_b_ref[...]               # (B, 1)

  # lane-dense store; host reads lane 0
  o_ref[...] = jnp.broadcast_to(score, o_ref.shape).astype(o_ref.dtype)


# ------------------------------ parameters ------------------------------

def init_params(key):
  def nrm(k, shape, scale=0.02):
    return scale * jax.random.normal(k, shape, dtype=jnp.float32)

  keys = iter(jax.random.split(key, 256))
  p = {}
  # patch-embedding Conv2d(C, HIDDEN, kernel=stride=PATCH, bias=False) as matmul:
  # weight W (HIDDEN, C, P, P) -> W.reshape(HIDDEN, -1).T with (c, ph, pw) unfold order.
  p["patch_w"] = nrm(next(keys), (PATCH_DIM, HIDDEN))
  p["cls"] = nrm(next(keys), (HIDDEN,))
  p["pos"] = nrm(next(keys), (SEQ, HIDDEN))
  p["pre_ln_g"] = jnp.ones((HIDDEN,), jnp.float32)
  p["pre_ln_b"] = jnp.zeros((HIDDEN,), jnp.float32)
  p["layers"] = []
  for _ in range(LAYERS):
    lp = {
        "ln1_g": jnp.ones((HIDDEN,), jnp.float32), "ln1_b": jnp.zeros((HIDDEN,), jnp.float32),
        "wq": nrm(next(keys), (HIDDEN, HIDDEN)), "bq": jnp.zeros((HIDDEN,), jnp.float32),
        "wk": nrm(next(keys), (HIDDEN, HIDDEN)), "bk": jnp.zeros((HIDDEN,), jnp.float32),
        "wv": nrm(next(keys), (HIDDEN, HIDDEN)), "bv": jnp.zeros((HIDDEN,), jnp.float32),
        "wo": nrm(next(keys), (HIDDEN, HIDDEN)), "bo": jnp.zeros((HIDDEN,), jnp.float32),
        "ln2_g": jnp.ones((HIDDEN,), jnp.float32), "ln2_b": jnp.zeros((HIDDEN,), jnp.float32),
        "w_fc1": nrm(next(keys), (HIDDEN, INTER)), "b_fc1": jnp.zeros((INTER,), jnp.float32),
        "w_fc2": nrm(next(keys), (INTER, HIDDEN)), "b_fc2": jnp.zeros((HIDDEN,), jnp.float32),
    }
    p["layers"].append(lp)
  p["post_ln_g"] = jnp.ones((HIDDEN,), jnp.float32)
  p["post_ln_b"] = jnp.zeros((HIDDEN,), jnp.float32)
  p["proj_w"] = nrm(next(keys), (HIDDEN, PROJ))            # visual_projection (no bias)
  p["mlp_w"], p["mlp_b"] = [], []
  for din, dout in MLP_DIMS:
    p["mlp_w"].append(nrm(next(keys), (din, dout)))
    p["mlp_b"].append(jnp.zeros((dout,), jnp.float32))
  return p


def pack_params(p):
  """Pack logical params into the fused kernel's operand layout.

  * Matmul weights -> bf16 (MXU-native, halves weight DMA; f32 accumulation).
  * LN params / biases -> f32, stacked per-layer into single VMEM operands.
  * Q/K/V weights fused into one (HIDDEN, 3*HIDDEN) matmul per layer; biases packed
    as one dense (1, 3*HIDDEN) row (no padded 32-lane tiles).
  * The activation-free 5-layer aesthetic head is folded on the host in f32 into a
    single (768, 1) vector + scalar bias (exact in eval: Dropout == identity), and
    the visual projection is folded through the L2-norm via the Gram trick — the
    (HIDDEN, PROJ) projection and all 5 head matmuls disappear from the kernel.
  """
  bf16 = jnp.bfloat16
  f32 = jnp.float32

  wqkv, bqkv, wo, bo, ln_gb, wfc1, bfc1, wfc2, bfc2 = ([] for _ in range(9))
  for lp in p["layers"]:
    wqkv.append(jnp.concatenate([lp["wq"], lp["wk"], lp["wv"]], axis=1))  # (H, 3H)
    bqkv.append(jnp.concatenate([lp["bq"], lp["bk"], lp["bv"]]).reshape(1, 3 * HIDDEN))
    wo.append(lp["wo"])                                                   # (H, H), concat-heads layout
    bo.append(lp["bo"].reshape(1, HIDDEN))
    ln_gb.append(jnp.stack([lp["ln1_g"], lp["ln1_b"]]))
    ln_gb.append(jnp.stack([lp["ln2_g"], lp["ln2_b"]]))
    wfc1.append(lp["w_fc1"]); bfc1.append(lp["b_fc1"].reshape(1, INTER))
    wfc2.append(lp["w_fc2"]); bfc2.append(lp["b_fc2"].reshape(1, HIDDEN))

  # ---- fold the aesthetic MLP head (Linear/Dropout only) into one affine map, f32 ----
  w_fold = p["mlp_w"][0].astype(f32)                       # (768, 1024)
  b_fold = p["mlp_b"][0].astype(f32)
  for w, b in zip(p["mlp_w"][1:], p["mlp_b"][1:]):
    w_fold = w_fold @ w
    b_fold = b_fold @ w + b                                # -> (768, 1), (1,)

  # ---- fold the visual projection through the L2-norm (Gram trick), f32 ----
  head_v = (p["proj_w"] @ w_fold).reshape(1, HIDDEN)       # proj @ w_head, as a lane-dense row
  gram = p["proj_w"] @ p["proj_w"].T                       # (HIDDEN, HIDDEN)

  packed = {
      "patch_w": p["patch_w"].astype(bf16),
      # class-token embedding folded into positional row 0 (token row 0 is zeros)
      "cls_pos": p["pos"].at[0].add(p["cls"]),             # (SEQ, H) f32
      "ln_pre": jnp.stack([p["pre_ln_g"], p["pre_ln_b"]]),                # (2, H)
      "wqkv": jnp.stack(wqkv).astype(bf16),                               # (L, H, 3H)
      "bqkv": jnp.stack(bqkv),                                            # (L, 1, 3H)
      "wo": jnp.stack(wo).astype(bf16),                                   # (L, H, H)
      "bo": jnp.stack(bo),                                                # (L, 1, H)
      "ln_gb": jnp.stack(ln_gb),                                          # (2L, 2, H)
      "wfc1": jnp.stack(wfc1).astype(bf16),                               # (L, H, INTER)
      "bfc1": jnp.stack(bfc1),                                            # (L, 1, INTER)
      "wfc2": jnp.stack(wfc2).astype(bf16),                               # (L, INTER, H)
      "bfc2": jnp.stack(bfc2),                                            # (L, 1, H)
      "ln_post": jnp.stack([p["post_ln_g"], p["post_ln_b"]]),             # (2, H)
      "gram": gram.astype(bf16),                                          # (H, H)
      "head_v": head_v.astype(f32),                                       # (1, H)
      "head_b": b_fold.reshape(1, 1).astype(f32),                         # (1, 1)
  }
  return packed


# ------------------------------ forward pass ------------------------------

def patchify(pixel_values):
  """NCHW (B, C, H, W) -> (B, N_PATCH, C*P*P), matching Conv2d(kernel=stride=P) unfold order."""
  B, C, H, W = pixel_values.shape
  nh, nw = H // PATCH, W // PATCH
  x = pixel_values.reshape(B, C, nh, PATCH, nw, PATCH)
  x = x.transpose(0, 2, 4, 1, 3, 5)                     # (B, nh, nw, C, P, P)
  return x.reshape(B, nh * nw, C * PATCH * PATCH)


def improved_aesthetic_predictor(packed, pixel_values):
  """Full model (encoder + L2-norm + folded aesthetic head) in a single fused pallas_call."""
  B = pixel_values.shape[0]
  tokens = patchify(pixel_values)                                       # (B, N_PATCH, 768)
  # prepend a zero row for the class-token slot (its embedding lives in cls_pos row 0)
  tokens = jnp.concatenate(
      [jnp.zeros((B, 1, PATCH_DIM), tokens.dtype), tokens], axis=1)     # (B, SEQ, 768)
  # token-major, feature axis last (lane dim), bf16 input DMA, whole batch in one block
  tokens = tokens.reshape(B * SEQ, PATCH_DIM).astype(jnp.bfloat16)      # (B*SEQ, 768)
  # positional (+class) embedding pre-tiled per batch element on the host
  cls_pos = jnp.tile(packed["cls_pos"], (B, 1))                         # (B*SEQ, HIDDEN)

  args = [tokens,
          packed["patch_w"], cls_pos, packed["ln_pre"],
          packed["wqkv"], packed["bqkv"], packed["wo"], packed["bo"],
          packed["ln_gb"], packed["wfc1"], packed["bfc1"],
          packed["wfc2"], packed["bfc2"], packed["ln_post"],
          packed["gram"], packed["head_v"], packed["head_b"]]

  def _const_spec(a):
    n = a.ndim
    return pl.BlockSpec(a.shape, lambda i, n=n: (0,) * n)   # full-array block, fetched once

  in_specs = [_const_spec(a) for a in args]
  out_specs = pl.BlockSpec((B, SCORE_LANES), lambda i: (0, 0))

  # advisory cost estimate (helps XLA schedule the weight DMA around this call)
  flops = 2 * B * (SEQ * PATCH_DIM * HIDDEN
                   + LAYERS * (SEQ * HIDDEN * 3 * HIDDEN
                               + 2 * SEQ * SEQ * HIDDEN
                               + SEQ * HIDDEN * HIDDEN
                               + 2 * SEQ * HIDDEN * INTER)
                   + HIDDEN * HIDDEN + HIDDEN)
  transcendentals = B * (LAYERS * (HEADS * SEQ * SEQ + SEQ * INTER) + 3 * SEQ + 1)
  bytes_accessed = sum(int(a.size) * a.dtype.itemsize for a in args) + B * SCORE_LANES * 4

  out = pl.pallas_call(
      _fused_kernel,
      grid=(1,),                                            # whole batch in one grid step
      in_specs=in_specs,
      out_specs=out_specs,
      out_shape=jax.ShapeDtypeStruct((B, SCORE_LANES), jnp.float32),
      compiler_params=pltpu.CompilerParams(
          dimension_semantics=("arbitrary",)),
      cost_estimate=pl.CostEstimate(flops=flops,
                                    transcendentals=transcendentals,
                                    bytes_accessed=bytes_accessed),
  )(*args)
  return out[:, 0]                                          # .squeeze(1)


if __name__ == "__main__":
  key = jax.random.PRNGKey(0)
  pkey, xkey = jax.random.split(key)
  params = init_params(pkey)
  packed = pack_params(params)
  pixel_values = jax.random.normal(xkey, (BATCH, IN_CH, IMG, IMG), dtype=jnp.float32)

  out = jax.jit(improved_aesthetic_predictor)(packed, pixel_values)
  out = jax.block_until_ready(out)
  assert out.shape == (BATCH,), out.shape
  assert out.dtype == jnp.float32
  print("KERNEL_OK")
</pallas_src>

<mosaic_0001>
module attributes {stable_mosaic.version = 11 : i64} {
  func.func @_fused_kernel(%arg0: i32, %arg1: memref<10x768xbf16, #tpu.memory_space<vmem>>, %arg2: memref<768x64xbf16, #tpu.memory_space<vmem>>, %arg3: memref<10x64xf32, #tpu.memory_space<vmem>>, %arg4: memref<2x64xf32, #tpu.memory_space<vmem>>, %arg5: memref<2x64x192xbf16, #tpu.memory_space<vmem>>, %arg6: memref<2x1x192xf32, #tpu.memory_space<vmem>>, %arg7: memref<2x64x64xbf16, #tpu.memory_space<vmem>>, %arg8: memref<2x1x64xf32, #tpu.memory_space<vmem>>, %arg9: memref<4x2x64xf32, #tpu.memory_space<vmem>>, %arg10: memref<2x64x128xbf16, #tpu.memory_space<vmem>>, %arg11: memref<2x1x128xf32, #tpu.memory_space<vmem>>, %arg12: memref<2x128x64xbf16, #tpu.memory_space<vmem>>, %arg13: memref<2x1x64xf32, #tpu.memory_space<vmem>>, %arg14: memref<2x64xf32, #tpu.memory_space<vmem>>, %arg15: memref<64x64xbf16, #tpu.memory_space<vmem>>, %arg16: memref<1x64xf32, #tpu.memory_space<vmem>>, %arg17: memref<1x1xf32, #tpu.memory_space<vmem>>, %arg18: memref<2x128xf32, #tpu.memory_space<vmem>>) attributes {dimension_semantics = [#tpu.dimension_semantics<arbitrary>], iteration_bounds = array<i64: 1>, scalar_prefetch = 0 : i64, scratch_operands = 0 : i64, tpu.core_type = #tpu.core_type<tc>, window_params = [{pipeline_mode = #tpu.pipeline_mode<synchronous>, transform_indices = @transform_0, window_bounds = array<i64: 10, 768>}, {pipeline_mode = #tpu.pipeline_mode<synchronous>, transform_indices = @transform_1, window_bounds = array<i64: 768, 64>}, {pipeline_mode = #tpu.pipeline_mode<synchronous>, transform_indices = @transform_2, window_bounds = array<i64: 10, 64>}, {pipeline_mode = #tpu.pipeline_mode<synchronous>, transform_indices = @transform_3, window_bounds = array<i64: 2, 64>}, {pipeline_mode = #tpu.pipeline_mode<synchronous>, transform_indices = @transform_4, window_bounds = array<i64: 2, 64, 192>}, {pipeline_mode = #tpu.pipeline_mode<synchronous>, transform_indices = @transform_5, window_bounds = array<i64: 2, 1, 192>}, {pipeline_mode = #tpu.pipeline_mode<synchronous>, transform_indices = @transform_6, window_bounds = array<i64: 2, 64, 64>}, {pipeline_mode = #tpu.pipeline_mode<synchronous>, transform_indices = @transform_7, window_bounds = array<i64: 2, 1, 64>}, {pipeline_mode = #tpu.pipeline_mode<synchronous>, transform_indices = @transform_8, window_bounds = array<i64: 4, 2, 64>}, {pipeline_mode = #tpu.pipeline_mode<synchronous>, transform_indices = @transform_9, window_bounds = array<i64: 2, 64, 128>}, {pipeline_mode = #tpu.pipeline_mode<synchronous>, transform_indices = @transform_10, window_bounds = array<i64: 2, 1, 128>}, {pipeline_mode = #tpu.pipeline_mode<synchronous>, transform_indices = @transform_11, window_bounds = array<i64: 2, 128, 64>}, {pipeline_mode = #tpu.pipeline_mode<synchronous>, transform_indices = @transform_12, window_bounds = array<i64: 2, 1, 64>}, {pipeline_mode = #tpu.pipeline_mode<synchronous>, transform_indices = @transform_13, window_bounds = array<i64: 2, 64>}, {pipeline_mode = #tpu.pipeline_mode<synchronous>, transform_indices = @transform_14, window_bounds = array<i64: 64, 64>}, {pipeline_mode = #tpu.pipeline_mode<synchronous>, transform_indices = @transform_15, window_bounds = array<i64: 1, 64>}, {pipeline_mode = #tpu.pipeline_mode<synchronous>, transform_indices = @transform_16, window_bounds = array<i64: 1, 1>}, {pipeline_mode = #tpu.pipeline_mode<synchronous>, transform_indices = @transform_17, window_bounds = array<i64: 2, 128>}]} {
    %c0 = arith.constant 0 : index
    %c0_0 = arith.constant 0 : index
    %0 = vector.load %arg1[%c0, %c0_0] : memref<10x768xbf16, #tpu.memory_space<vmem>>, vector<10x768xbf16>
    %c0_1 = arith.constant 0 : index
    %c0_2 = arith.constant 0 : index
    %1 = vector.load %arg2[%c0_1, %c0_2] : memref<768x64xbf16, #tpu.memory_space<vmem>>, vector<768x64xbf16>
    %cst = arith.constant dense<0.000000e+00> : vector<10x64xf32>
    %2 = tpu.matmul %0, %1, %cst {dimension_numbers = #tpu.dot_dimension_numbers<[1], [0], [0], [1], [0, 0, 1, 1], [], []>} : vector<10x768xbf16>, vector<768x64xbf16>, vector<10x64xf32> -> vector<10x64xf32>
    %c0_3 = arith.constant 0 : index
    %c0_4 = arith.constant 0 : index
    %3 = vector.load %arg3[%c0_3, %c0_4] : memref<10x64xf32, #tpu.memory_space<vmem>>, vector<10x64xf32>
    %4 = arith.addf %2, %3 : vector<10x64xf32>
    %c0_5 = arith.constant 0 : index
    %c0_6 = arith.constant 0 : index
    %5 = vector.load %arg4[%c0_5, %c0_6] : memref<2x64xf32, #tpu.memory_space<vmem>>, vector<2x64xf32>
    %cst_7 = arith.constant dense<0.000000e+00> : vector<10xf32>
    %6 = vector.multi_reduction <add>, %4, %cst_7 [1] : vector<10x64xf32> to vector<10xf32>
    %7 = vector.shape_cast %6 : vector<10xf32> to vector<10x1xf32>
    %cst_8 = arith.constant 6.400000e+01 : f32
    %8 = vector.broadcast %cst_8 : f32 to vector<10x1xf32>
    %9 = arith.divf %7, %8 : vector<10x1xf32>
    %10 = vector.broadcast %9 : vector<10x1xf32> to vector<10x64xf32>
    %11 = arith.subf %4, %10 : vector<10x64xf32>
    %12 = arith.mulf %11, %11 : vector<10x64xf32>
    %cst_9 = arith.constant dense<0.000000e+00> : vector<10xf32>
    %13 = vector.multi_reduction <add>, %12, %cst_9 [1] : vector<10x64xf32> to vector<10xf32>
    %14 = vector.shape_cast %13 : vector<10xf32> to vector<10x1xf32>
    %cst_10 = arith.constant 6.400000e+01 : f32
    %15 = vector.broadcast %cst_10 : f32 to vector<10x1xf32>
    %16 = arith.divf %14, %15 : vector<10x1xf32>
    %17 = vector.broadcast %9 : vector<10x1xf32> to vector<10x64xf32>
    %18 = arith.subf %4, %17 : vector<10x64xf32>
    %cst_11 = arith.constant 9.99999974E-6 : f32
    %19 = vector.broadcast %cst_11 : f32 to vector<10x1xf32>
    %20 = arith.addf %16, %19 : vector<10x1xf32>
    %21 = math.rsqrt %20 : vector<10x1xf32>
    %22 = vector.broadcast %21 : vector<10x1xf32> to vector<10x64xf32>
    %23 = arith.mulf %18, %22 : vector<10x64xf32>
    %24 = vector.extract_strided_slice %5 {offsets = [0, 0], sizes = [1, 64], strides = [1, 1]} : vector<2x64xf32> to vector<1x64xf32>
    %25 = vector.broadcast %24 : vector<1x64xf32> to vector<10x64xf32>
    %26 = arith.mulf %23, %25 : vector<10x64xf32>
    %27 = vector.extract_strided_slice %5 {offsets = [1, 0], sizes = [1, 64], strides = [1, 1]} : vector<2x64xf32> to vector<1x64xf32>
    %28 = vector.broadcast %27 : vector<1x64xf32> to vector<10x64xf32>
    %29 = arith.addf %26, %28 : vector<10x64xf32>
    %c0_12 = arith.constant 0 : index
    %c0_13 = arith.constant 0 : index
    %c0_14 = arith.constant 0 : index
    %30 = vector.load %arg9[%c0_12, %c0_13, %c0_14] : memref<4x2x64xf32, #tpu.memory_space<vmem>>, vector<1x2x64xf32>
    %31 = vector.shape_cast %30 : vector<1x2x64xf32> to vector<2x64xf32>
    %cst_15 = arith.constant dense<0.000000e+00> : vector<10xf32>
    %32 = vector.multi_reduction <add>, %29, %cst_15 [1] : vector<10x64xf32> to vector<10xf32>
    %33 = vector.shape_cast %32 : vector<10xf32> to vector<10x1xf32>
    %cst_16 = arith.constant 6.400000e+01 : f32
    %34 = vector.broadcast %cst_16 : f32 to vector<10x1xf32>
    %35 = arith.divf %33, %34 : vector<10x1xf32>
    %36 = vector.broadcast %35 : vector<10x1xf32> to vector<10x64xf32>
    %37 = arith.subf %29, %36 : vector<10x64xf32>
    %38 = arith.mulf %37, %37 : vector<10x64xf32>
    %cst_17 = arith.constant dense<0.000000e+00> : vector<10xf32>
    %39 = vector.multi_reduction <add>, %38, %cst_17 [1] : vector<10x64xf32> to vector<10xf32>
    %40 = vector.shape_cast %39 : vector<10xf32> to vector<10x1xf32>
    %cst_18 = arith.constant 6.400000e+01 : f32
    %41 = vector.broadcast %cst_18 : f32 to vector<10x1xf32>
    %42 = arith.divf %40, %41 : vector<10x1xf32>
    %43 = vector.broadcast %35 : vector<10x1xf32> to vector<10x64xf32>
    %44 = arith.subf %29, %43 : vector<10x64xf32>
    %cst_19 = arith.constant 9.99999974E-6 : f32
    %45 = vector.broadcast %cst_19 : f32 to vector<10x1xf32>
    %46 = arith.addf %42, %45 : vector<10x1xf32>
    %47 = math.rsqrt %46 : vector<10x1xf32>
    %48 = vector.broadcast %47 : vector<10x1xf32> to vector<10x64xf32>
    %49 = arith.mulf %44, %48 : vector<10x64xf32>
    %50 = vector.extract_strided_slice %31 {offsets = [0, 0], sizes = [1, 64], strides = [1, 1]} : vector<2x64xf32> to vector<1x64xf32>
    %51 = vector.broadcast %50 : vector<1x64xf32> to vector<10x64xf32>
    %52 = arith.mulf %49, %51 : vector<10x64xf32>
    %53 = vector.extract_strided_slice %31 {offsets = [1, 0], sizes = [1, 64], strides = [1, 1]} : vector<2x64xf32> to vector<1x64xf32>
    %54 = vector.broadcast %53 : vector<1x64xf32> to vector<10x64xf32>
    %55 = arith.addf %52, %54 : vector<10x64xf32>
    %c0_20 = arith.constant 0 : index
    %c0_21 = arith.constant 0 : index
    %c0_22 = arith.constant 0 : index
    %56 = vector.load %arg5[%c0_20, %c0_21, %c0_22] : memref<2x64x192xbf16, #tpu.memory_space<vmem>>, vector<1x64x192xbf16>
    %57 = vector.shape_cast %56 : vector<1x64x192xbf16> to vector<64x192xbf16>
    %58 = arith.truncf %55 : vector<10x64xf32> to vector<10x64xbf16>
    %cst_23 = arith.constant dense<0.000000e+00> : vector<10x192xf32>
    %59 = tpu.matmul %58, %57, %cst_23 {dimension_numbers = #tpu.dot_dimension_numbers<[1], [0], [0], [1], [0, 0, 1, 1], [], []>} : vector<10x64xbf16>, vector<64x192xbf16>, vector<10x192xf32> -> vector<10x192xf32>
    %c0_24 = arith.constant 0 : index
    %c0_25 = arith.constant 0 : index
    %c0_26 = arith.constant 0 : index
    %60 = vector.load %arg6[%c0_24, %c0_25, %c0_26] : memref<2x1x192xf32, #tpu.memory_space<vmem>>, vector<1x1x192xf32>
    %61 = vector.shape_cast %60 : vector<1x1x192xf32> to vector<1x192xf32>
    %62 = vector.broadcast %61 : vector<1x192xf32> to vector<10x192xf32>
    %63 = arith.addf %59, %62 : vector<10x192xf32>
    %64 = vector.extract_strided_slice %63 {offsets = [0, 0], sizes = [5, 32], strides = [1, 1]} : vector<10x192xf32> to vector<5x32xf32>
    %65 = vector.extract_strided_slice %63 {offsets = [0, 64], sizes = [5, 32], strides = [1, 1]} : vector<10x192xf32> to vector<5x32xf32>
    %66 = vector.extract_strided_slice %63 {offsets = [0, 128], sizes = [5, 32], strides = [1, 1]} : vector<10x192xf32> to vector<5x32xf32>
    %67 = arith.truncf %64 : vector<5x32xf32> to vector<5x32xbf16>
    %68 = arith.truncf %65 : vector<5x32xf32> to vector<5x32xbf16>
    %cst_27 = arith.constant dense<0.000000e+00> : vector<5x5xf32>
    %69 = tpu.matmul %67, %68, %cst_27 {dimension_numbers = #tpu.dot_dimension_numbers<[1], [1], [0], [0], [0, 0, 1, 0], [], []>} : vector<5x32xbf16>, vector<5x32xbf16>, vector<5x5xf32> -> vector<5x5xf32>
    %cst_28 = arith.constant 0.176776692 : f32
    %70 = vector.broadcast %cst_28 : f32 to vector<5x5xf32>
    %71 = arith.mulf %69, %70 : vector<5x5xf32>
    %cst_29 = arith.constant dense<0xFF800000> : vector<5xf32>
    %72 = vector.multi_reduction <maximumf>, %71, %cst_29 [1] : vector<5x5xf32> to vector<5xf32>
    %73 = vector.shape_cast %72 : vector<5xf32> to vector<5x1xf32>
    %74 = vector.broadcast %73 : vector<5x1xf32> to vector<5x5xf32>
    %75 = arith.subf %71, %74 : vector<5x5xf32>
    %76 = math.exp %75 : vector<5x5xf32>
    %cst_30 = arith.constant dense<0.000000e+00> : vector<5xf32>
    %77 = vector.multi_reduction <add>, %76, %cst_30 [1] : vector<5x5xf32> to vector<5xf32>
    %78 = vector.shape_cast %77 : vector<5xf32> to vector<5x1xf32>
    %79 = tpu.reciprocal %78 {approx = true} : vector<5x1xf32> -> vector<5x1xf32>
    %80 = vector.broadcast %79 : vector<5x1xf32> to vector<5x5xf32>
    %81 = arith.mulf %76, %80 : vector<5x5xf32>
    %82 = arith.truncf %81 : vector<5x5xf32> to vector<5x5xbf16>
    %83 = arith.truncf %66 : vector<5x32xf32> to vector<5x32xbf16>
    %cst_31 = arith.constant dense<0.000000e+00> : vector<5x32xf32>
    %84 = tpu.matmul %82, %83, %cst_31 {dimension_numbers = #tpu.dot_dimension_numbers<[1], [0], [0], [1], [0, 0, 1, 1], [], []>} : vector<5x5xbf16>, vector<5x32xbf16>, vector<5x32xf32> -> vector<5x32xf32>
    %85 = vector.extract_strided_slice %63 {offsets = [0, 32], sizes = [5, 32], strides = [1, 1]} : vector<10x192xf32> to vector<5x32xf32>
    %86 = vector.extract_strided_slice %63 {offsets = [0, 96], sizes = [5, 32], strides = [1, 1]} : vector<10x192xf32> to vector<5x32xf32>
    %87 = vector.extract_strided_slice %63 {offsets = [0, 160], sizes = [5, 32], strides = [1, 1]} : vector<10x192xf32> to vector<5x32xf32>
    %88 = arith.truncf %85 : vector<5x32xf32> to vector<5x32xbf16>
    %89 = arith.truncf %86 : vector<5x32xf32> to vector<5x32xbf16>
    %cst_32 = arith.constant dense<0.000000e+00> : vector<5x5xf32>
    %90 = tpu.matmul %88, %89, %cst_32 {dimension_numbers = #tpu.dot_dimension_numbers<[1], [1], [0], [0], [0, 0, 1, 0], [], []>} : vector<5x32xbf16>, vector<5x32xbf16>, vector<5x5xf32> -> vector<5x5xf32>
    %cst_33 = arith.constant 0.176776692 : f32
    %91 = vector.broadcast %cst_33 : f32 to vector<5x5xf32>
    %92 = arith.mulf %90, %91 : vector<5x5xf32>
    %cst_34 = arith.constant dense<0xFF800000> : vector<5xf32>
    %93 = vector.multi_reduction <maximumf>, %92, %cst_34 [1] : vector<5x5xf32> to vector<5xf32>
    %94 = vector.shape_cast %93 : vector<5xf32> to vector<5x1xf32>
    %95 = vector.broadcast %94 : vector<5x1xf32> to vector<5x5xf32>
    %96 = arith.subf %92, %95 : vector<5x5xf32>
    %97 = math.exp %96 : vector<5x5xf32>
    %cst_35 = arith.constant dense<0.000000e+00> : vector<5xf32>
    %98 = vector.multi_reduction <add>, %97, %cst_35 [1] : vector<5x5xf32> to vector<5xf32>
    %99 = vector.shape_cast %98 : vector<5xf32> to vector<5x1xf32>
    %100 = tpu.reciprocal %99 {approx = true} : vector<5x1xf32> -> vector<5x1xf32>
    %101 = vector.broadcast %100 : vector<5x1xf32> to vector<5x5xf32>
    %102 = arith.mulf %97, %101 : vector<5x5xf32>
    %103 = arith.truncf %102 : vector<5x5xf32> to vector<5x5xbf16>
    %104 = arith.truncf %87 : vector<5x32xf32> to vector<5x32xbf16>
    %cst_36 = arith.constant dense<0.000000e+00> : vector<5x32xf32>
    %105 = tpu.matmul %103, %104, %cst_36 {dimension_numbers = #tpu.dot_dimension_numbers<[1], [0], [0], [1], [0, 0, 1, 1], [], []>} : vector<5x5xbf16>, vector<5x32xbf16>, vector<5x32xf32> -> vector<5x32xf32>
    %106 = tpu.concatenate %84, %105 in 1 : vector<5x32xf32>, vector<5x32xf32> -> vector<5x64xf32>
    %107 = vector.extract_strided_slice %63 {offsets = [5, 0], sizes = [5, 32], strides = [1, 1]} : vector<10x192xf32> to vector<5x32xf32>
    %108 = vector.extract_strided_slice %63 {offsets = [5, 64], sizes = [5, 32], strides = [1, 1]} : vector<10x192xf32> to vector<5x32xf32>
    %109 = vector.extract_strided_slice %63 {offsets = [5, 128], sizes = [5, 32], strides = [1, 1]} : vector<10x192xf32> to vector<5x32xf32>
    %110 = arith.truncf %107 : vector<5x32xf32> to vector<5x32xbf16>
    %111 = arith.truncf %108 : vector<5x32xf32> to vector<5x32xbf16>
    %cst_37 = arith.constant dense<0.000000e+00> : vector<5x5xf32>
    %112 = tpu.matmul %110, %111, %cst_37 {dimension_numbers = #tpu.dot_dimension_numbers<[1], [1], [0], [0], [0, 0, 1, 0], [], []>} : vector<5x32xbf16>, vector<5x32xbf16>, vector<5x5xf32> -> vector<5x5xf32>
    %cst_38 = arith.constant 0.176776692 : f32
    %113 = vector.broadcast %cst_38 : f32 to vector<5x5xf32>
    %114 = arith.mulf %112, %113 : vector<5x5xf32>
    %cst_39 = arith.constant dense<0xFF800000> : vector<5xf32>
    %115 = vector.multi_reduction <maximumf>, %114, %cst_39 [1] : vector<5x5xf32> to vector<5xf32>
    %116 = vector.shape_cast %115 : vector<5xf32> to vector<5x1xf32>
    %117 = vector.broadcast %116 : vector<5x1xf32> to vector<5x5xf32>
    %118 = arith.subf %114, %117 : vector<5x5xf32>
    %119 = math.exp %118 : vector<5x5xf32>
    %cst_40 = arith.constant dense<0.000000e+00> : vector<5xf32>
    %120 = vector.multi_reduction <add>, %119, %cst_40 [1] : vector<5x5xf32> to vector<5xf32>
    %121 = vector.shape_cast %120 : vector<5xf32> to vector<5x1xf32>
    %122 = tpu.reciprocal %121 {approx = true} : vector<5x1xf32> -> vector<5x1xf32>
    %123 = vector.broadcast %122 : vector<5x1xf32> to vector<5x5xf32>
    %124 = arith.mulf %119, %123 : vector<5x5xf32>
    %125 = arith.truncf %124 : vector<5x5xf32> to vector<5x5xbf16>
    %126 = arith.truncf %109 : vector<5x32xf32> to vector<5x32xbf16>
    %cst_41 = arith.constant dense<0.000000e+00> : vector<5x32xf32>
    %127 = tpu.matmul %125, %126, %cst_41 {dimension_numbers = #tpu.dot_dimension_numbers<[1], [0], [0], [1], [0, 0, 1, 1], [], []>} : vector<5x5xbf16>, vector<5x32xbf16>, vector<5x32xf32> -> vector<5x32xf32>
    %128 = vector.extract_strided_slice %63 {offsets = [5, 32], sizes = [5, 32], strides = [1, 1]} : vector<10x192xf32> to vector<5x32xf32>
    %129 = vector.extract_strided_slice %63 {offsets = [5, 96], sizes = [5, 32], strides = [1, 1]} : vector<10x192xf32> to vector<5x32xf32>
    %130 = vector.extract_strided_slice %63 {offsets = [5, 160], sizes = [5, 32], strides = [1, 1]} : vector<10x192xf32> to vector<5x32xf32>
    %131 = arith.truncf %128 : vector<5x32xf32> to vector<5x32xbf16>
    %132 = arith.truncf %129 : vector<5x32xf32> to vector<5x32xbf16>
    %cst_42 = arith.constant dense<0.000000e+00> : vector<5x5xf32>
    %133 = tpu.matmul %131, %132, %cst_42 {dimension_numbers = #tpu.dot_dimension_numbers<[1], [1], [0], [0], [0, 0, 1, 0], [], []>} : vector<5x32xbf16>, vector<5x32xbf16>, vector<5x5xf32> -> vector<5x5xf32>
    %cst_43 = arith.constant 0.176776692 : f32
    %134 = vector.broadcast %cst_43 : f32 to vector<5x5xf32>
    %135 = arith.mulf %133, %134 : vector<5x5xf32>
    %cst_44 = arith.constant dense<0xFF800000> : vector<5xf32>
    %136 = vector.multi_reduction <maximumf>, %135, %cst_44 [1] : vector<5x5xf32> to vector<5xf32>
    %137 = vector.shape_cast %136 : vector<5xf32> to vector<5x1xf32>
    %138 = vector.broadcast %137 : vector<5x1xf32> to vector<5x5xf32>
    %139 = arith.subf %135, %138 : vector<5x5xf32>
    %140 = math.exp %139 : vector<5x5xf32>
    %cst_45 = arith.constant dense<0.000000e+00> : vector<5xf32>
    %141 = vector.multi_reduction <add>, %140, %cst_45 [1] : vector<5x5xf32> to vector<5xf32>
    %142 = vector.shape_cast %141 : vector<5xf32> to vector<5x1xf32>
    %143 = tpu.reciprocal %142 {approx = true} : vector<5x1xf32> -> vector<5x1xf32>
    %144 = vector.broadcast %143 : vector<5x1xf32> to vector<5x5xf32>
    %145 = arith.mulf %140, %144 : vector<5x5xf32>
    %146 = arith.truncf %145 : vector<5x5xf32> to vector<5x5xbf16>
    %147 = arith.truncf %130 : vector<5x32xf32> to vector<5x32xbf16>
    %cst_46 = arith.constant dense<0.000000e+00> : vector<5x32xf32>
    %148 = tpu.matmul %146, %147, %cst_46 {dimension_numbers = #tpu.dot_dimension_numbers<[1], [0], [0], [1], [0, 0, 1, 1], [], []>} : vector<5x5xbf16>, vector<5x32xbf16>, vector<5x32xf32> -> vector<5x32xf32>
    %149 = tpu.concatenate %127, %148 in 1 : vector<5x32xf32>, vector<5x32xf32> -> vector<5x64xf32>
    %150 = tpu.concatenate %106, %149 in 0 : vector<5x64xf32>, vector<5x64xf32> -> vector<10x64xf32>
    %c0_47 = arith.constant 0 : index
    %c0_48 = arith.constant 0 : index
    %c0_49 = arith.constant 0 : index
    %151 = vector.load %arg7[%c0_47, %c0_48, %c0_49] : memref<2x64x64xbf16, #tpu.memory_space<vmem>>, vector<1x64x64xbf16>
    %152 = vector.shape_cast %151 : vector<1x64x64xbf16> to vector<64x64xbf16>
    %153 = arith.truncf %150 : vector<10x64xf32> to vector<10x64xbf16>
    %cst_50 = arith.constant dense<0.000000e+00> : vector<10x64xf32>
    %154 = tpu.matmul %153, %152, %cst_50 {dimension_numbers = #tpu.dot_dimension_numbers<[1], [0], [0], [1], [0, 0, 1, 1], [], []>} : vector<10x64xbf16>, vector<64x64xbf16>, vector<10x64xf32> -> vector<10x64xf32>
    %155 = arith.addf %29, %154 : vector<10x64xf32>
    %c0_51 = arith.constant 0 : index
    %c0_52 = arith.constant 0 : index
    %c0_53 = arith.constant 0 : index
    %156 = vector.load %arg8[%c0_51, %c0_52, %c0_53] : memref<2x1x64xf32, #tpu.memory_space<vmem>>, vector<1x1x64xf32>
    %157 = vector.shape_cast %156 : vector<1x1x64xf32> to vector<1x64xf32>
    %158 = vector.broadcast %157 : vector<1x64xf32> to vector<10x64xf32>
    %159 = arith.addf %155, %158 : vector<10x64xf32>
    %c1 = arith.constant 1 : index
    %c0_54 = arith.constant 0 : index
    %c0_55 = arith.constant 0 : index
    %160 = vector.load %arg9[%c1, %c0_54, %c0_55] : memref<4x2x64xf32, #tpu.memory_space<vmem>>, vector<1x2x64xf32>
    %161 = vector.shape_cast %160 : vector<1x2x64xf32> to vector<2x64xf32>
    %cst_56 = arith.constant dense<0.000000e+00> : vector<10xf32>
    %162 = vector.multi_reduction <add>, %159, %cst_56 [1] : vector<10x64xf32> to vector<10xf32>
    %163 = vector.shape_cast %162 : vector<10xf32> to vector<10x1xf32>
    %cst_57 = arith.constant 6.400000e+01 : f32
    %164 = vector.broadcast %cst_57 : f32 to vector<10x1xf32>
    %165 = arith.divf %163, %164 : vector<10x1xf32>
    %166 = vector.broadcast %165 : vector<10x1xf32> to vector<10x64xf32>
    %167 = arith.subf %159, %166 : vector<10x64xf32>
    %168 = arith.mulf %167, %167 : vector<10x64xf32>
    %cst_58 = arith.constant dense<0.000000e+00> : vector<10xf32>
    %169 = vector.multi_reduction <add>, %168, %cst_58 [1] : vector<10x64xf32> to vector<10xf32>
    %170 = vector.shape_cast %169 : vector<10xf32> to vector<10x1xf32>
    %cst_59 = arith.constant 6.400000e+01 : f32
    %171 = vector.broadcast %cst_59 : f32 to vector<10x1xf32>
    %172 = arith.divf %170, %171 : vector<10x1xf32>
    %173 = vector.broadcast %165 : vector<10x1xf32> to vector<10x64xf32>
    %174 = arith.subf %159, %173 : vector<10x64xf32>
    %cst_60 = arith.constant 9.99999974E-6 : f32
    %175 = vector.broadcast %cst_60 : f32 to vector<10x1xf32>
    %176 = arith.addf %172, %175 : vector<10x1xf32>
    %177 = math.rsqrt %176 : vector<10x1xf32>
    %178 = vector.broadcast %177 : vector<10x1xf32> to vector<10x64xf32>
    %179 = arith.mulf %174, %178 : vector<10x64xf32>
    %180 = vector.extract_strided_slice %161 {offsets = [0, 0], sizes = [1, 64], strides = [1, 1]} : vector<2x64xf32> to vector<1x64xf32>
    %181 = vector.broadcast %180 : vector<1x64xf32> to vector<10x64xf32>
    %182 = arith.mulf %179, %181 : vector<10x64xf32>
    %183 = vector.extract_strided_slice %161 {offsets = [1, 0], sizes = [1, 64], strides = [1, 1]} : vector<2x64xf32> to vector<1x64xf32>
    %184 = vector.broadcast %183 : vector<1x64xf32> to vector<10x64xf32>
    %185 = arith.addf %182, %184 : vector<10x64xf32>
    %c0_61 = arith.constant 0 : index
    %c0_62 = arith.constant 0 : index
    %c0_63 = arith.constant 0 : index
    %186 = vector.load %arg10[%c0_61, %c0_62, %c0_63] : memref<2x64x128xbf16, #tpu.memory_space<vmem>>, vector<1x64x128xbf16>
    %187 = vector.shape_cast %186 : vector<1x64x128xbf16> to vector<64x128xbf16>
    %188 = arith.truncf %185 : vector<10x64xf32> to vector<10x64xbf16>
    %cst_64 = arith.constant dense<0.000000e+00> : vector<10x128xf32>
    %189 = tpu.matmul %188, %187, %cst_64 {dimension_numbers = #tpu.dot_dimension_numbers<[1], [0], [0], [1], [0, 0, 1, 1], [], []>} : vector<10x64xbf16>, vector<64x128xbf16>, vector<10x128xf32> -> vector<10x128xf32>
    %c0_65 = arith.constant 0 : index
    %c0_66 = arith.constant 0 : index
    %c0_67 = arith.constant 0 : index
    %190 = vector.load %arg11[%c0_65, %c0_66, %c0_67] : memref<2x1x128xf32, #tpu.memory_space<vmem>>, vector<1x1x128xf32>
    %191 = vector.shape_cast %190 : vector<1x1x128xf32> to vector<1x128xf32>
    %192 = vector.broadcast %191 : vector<1x128xf32> to vector<10x128xf32>
    %193 = arith.addf %189, %192 : vector<10x128xf32>
    %cst_68 = arith.constant 1.702000e+00 : f32
    %194 = vector.broadcast %cst_68 : f32 to vector<10x128xf32>
    %195 = arith.mulf %194, %193 : vector<10x128xf32>
    %196 = arith.negf %195 : vector<10x128xf32>
    %197 = math.exp %196 : vector<10x128xf32>
    %cst_69 = arith.constant 1.000000e+00 : f32
    %198 = vector.broadcast %cst_69 : f32 to vector<10x128xf32>
    %199 = arith.addf %198, %197 : vector<10x128xf32>
    %200 = arith.divf %198, %199 : vector<10x128xf32>
    %201 = arith.mulf %193, %200 : vector<10x128xf32>
    %c0_70 = arith.constant 0 : index
    %c0_71 = arith.constant 0 : index
    %c0_72 = arith.constant 0 : index
    %202 = vector.load %arg12[%c0_70, %c0_71, %c0_72] : memref<2x128x64xbf16, #tpu.memory_space<vmem>>, vector<1x128x64xbf16>
    %203 = vector.shape_cast %202 : vector<1x128x64xbf16> to vector<128x64xbf16>
    %204 = arith.truncf %201 : vector<10x128xf32> to vector<10x128xbf16>
    %cst_73 = arith.constant dense<0.000000e+00> : vector<10x64xf32>
    %205 = tpu.matmul %204, %203, %cst_73 {dimension_numbers = #tpu.dot_dimension_numbers<[1], [0], [0], [1], [0, 0, 1, 1], [], []>} : vector<10x128xbf16>, vector<128x64xbf16>, vector<10x64xf32> -> vector<10x64xf32>
    %206 = arith.addf %159, %205 : vector<10x64xf32>
    %c0_74 = arith.constant 0 : index
    %c0_75 = arith.constant 0 : index
    %c0_76 = arith.constant 0 : index
    %207 = vector.load %arg13[%c0_74, %c0_75, %c0_76] : memref<2x1x64xf32, #tpu.memory_space<vmem>>, vector<1x1x64xf32>
    %208 = vector.shape_cast %207 : vector<1x1x64xf32> to vector<1x64xf32>
    %209 = vector.broadcast %208 : vector<1x64xf32> to vector<10x64xf32>
    %210 = arith.addf %206, %209 : vector<10x64xf32>
    %c2 = arith.constant 2 : index
    %c0_77 = arith.constant 0 : index
    %c0_78 = arith.constant 0 : index
    %211 = vector.load %arg9[%c2, %c0_77, %c0_78] : memref<4x2x64xf32, #tpu.memory_space<vmem>>, vector<1x2x64xf32>
    %212 = vector.shape_cast %211 : vector<1x2x64xf32> to vector<2x64xf32>
    %cst_79 = arith.constant dense<0.000000e+00> : vector<10xf32>
    %213 = vector.multi_reduction <add>, %210, %cst_79 [1] : vector<10x64xf32> to vector<10xf32>
    %214 = vector.shape_cast %213 : vector<10xf32> to vector<10x1xf32>
    %cst_80 = arith.constant 6.400000e+01 : f32
    %215 = vector.broadcast %cst_80 : f32 to vector<10x1xf32>
    %216 = arith.divf %214, %215 : vector<10x1xf32>
    %217 = vector.broadcast %216 : vector<10x1xf32> to vector<10x64xf32>
    %218 = arith.subf %210, %217 : vector<10x64xf32>
    %219 = arith.mulf %218, %218 : vector<10x64xf32>
    %cst_81 = arith.constant dense<0.000000e+00> : vector<10xf32>
    %220 = vector.multi_reduction <add>, %219, %cst_81 [1] : vector<10x64xf32> to vector<10xf32>
    %221 = vector.shape_cast %220 : vector<10xf32> to vector<10x1xf32>
    %cst_82 = arith.constant 6.400000e+01 : f32
    %222 = vector.broadcast %cst_82 : f32 to vector<10x1xf32>
    %223 = arith.divf %221, %222 : vector<10x1xf32>
    %224 = vector.broadcast %216 : vector<10x1xf32> to vector<10x64xf32>
    %225 = arith.subf %210, %224 : vector<10x64xf32>
    %cst_83 = arith.constant 9.99999974E-6 : f32
    %226 = vector.broadcast %cst_83 : f32 to vector<10x1xf32>
    %227 = arith.addf %223, %226 : vector<10x1xf32>
    %228 = math.rsqrt %227 : vector<10x1xf32>
    %229 = vector.broadcast %228 : vector<10x1xf32> to vector<10x64xf32>
    %230 = arith.mulf %225, %229 : vector<10x64xf32>
    %231 = vector.extract_strided_slice %212 {offsets = [0, 0], sizes = [1, 64], strides = [1, 1]} : vector<2x64xf32> to vector<1x64xf32>
    %232 = vector.broadcast %231 : vector<1x64xf32> to vector<10x64xf32>
    %233 = arith.mulf %230, %232 : vector<10x64xf32>
    %234 = vector.extract_strided_slice %212 {offsets = [1, 0], sizes = [1, 64], strides = [1, 1]} : vector<2x64xf32> to vector<1x64xf32>
    %235 = vector.broadcast %234 : vector<1x64xf32> to vector<10x64xf32>
    %236 = arith.addf %233, %235 : vector<10x64xf32>
    %c1_84 = arith.constant 1 : index
    %c0_85 = arith.constant 0 : index
    %c0_86 = arith.constant 0 : index
    %237 = vector.load %arg5[%c1_84, %c0_85, %c0_86] : memref<2x64x192xbf16, #tpu.memory_space<vmem>>, vector<1x64x192xbf16>
    %238 = vector.shape_cast %237 : vector<1x64x192xbf16> to vector<64x192xbf16>
    %239 = arith.truncf %236 : vector<10x64xf32> to vector<10x64xbf16>
    %cst_87 = arith.constant dense<0.000000e+00> : vector<10x192xf32>
    %240 = tpu.matmul %239, %238, %cst_87 {dimension_numbers = #tpu.dot_dimension_numbers<[1], [0], [0], [1], [0, 0, 1, 1], [], []>} : vector<10x64xbf16>, vector<64x192xbf16>, vector<10x192xf32> -> vector<10x192xf32>
    %c1_88 = arith.constant 1 : index
    %c0_89 = arith.constant 0 : index
    %c0_90 = arith.constant 0 : index
    %241 = vector.load %arg6[%c1_88, %c0_89, %c0_90] : memref<2x1x192xf32, #tpu.memory_space<vmem>>, vector<1x1x192xf32>
    %242 = vector.shape_cast %241 : vector<1x1x192xf32> to vector<1x192xf32>
    %243 = vector.broadcast %242 : vector<1x192xf32> to vector<10x192xf32>
    %244 = arith.addf %240, %243 : vector<10x192xf32>
    %245 = vector.extract_strided_slice %244 {offsets = [0, 0], sizes = [5, 32], strides = [1, 1]} : vector<10x192xf32> to vector<5x32xf32>
    %246 = vector.extract_strided_slice %244 {offsets = [0, 64], sizes = [5, 32], strides = [1, 1]} : vector<10x192xf32> to vector<5x32xf32>
    %247 = vector.extract_strided_slice %244 {offsets = [0, 128], sizes = [5, 32], strides = [1, 1]} : vector<10x192xf32> to vector<5x32xf32>
    %248 = arith.truncf %245 : vector<5x32xf32> to vector<5x32xbf16>
    %249 = arith.truncf %246 : vector<5x32xf32> to vector<5x32xbf16>
    %cst_91 = arith.constant dense<0.000000e+00> : vector<5x5xf32>
    %250 = tpu.matmul %248, %249, %cst_91 {dimension_numbers = #tpu.dot_dimension_numbers<[1], [1], [0], [0], [0, 0, 1, 0], [], []>} : vector<5x32xbf16>, vector<5x32xbf16>, vector<5x5xf32> -> vector<5x5xf32>
    %cst_92 = arith.constant 0.176776692 : f32
    %251 = vector.broadcast %cst_92 : f32 to vector<5x5xf32>
    %252 = arith.mulf %250, %251 : vector<5x5xf32>
    %cst_93 = arith.constant dense<0xFF800000> : vector<5xf32>
    %253 = vector.multi_reduction <maximumf>, %252, %cst_93 [1] : vector<5x5xf32> to vector<5xf32>
    %254 = vector.shape_cast %253 : vector<5xf32> to vector<5x1xf32>
    %255 = vector.broadcast %254 : vector<5x1xf32> to vector<5x5xf32>
    %256 = arith.subf %252, %255 : vector<5x5xf32>
    %257 = math.exp %256 : vector<5x5xf32>
    %cst_94 = arith.constant dense<0.000000e+00> : vector<5xf32>
    %258 = vector.multi_reduction <add>, %257, %cst_94 [1] : vector<5x5xf32> to vector<5xf32>
    %259 = vector.shape_cast %258 : vector<5xf32> to vector<5x1xf32>
    %260 = tpu.reciprocal %259 {approx = true} : vector<5x1xf32> -> vector<5x1xf32>
    %261 = vector.broadcast %260 : vector<5x1xf32> to vector<5x5xf32>
    %262 = arith.mulf %257, %261 : vector<5x5xf32>
    %263 = arith.truncf %262 : vector<5x5xf32> to vector<5x5xbf16>
    %264 = arith.truncf %247 : vector<5x32xf32> to vector<5x32xbf16>
    %cst_95 = arith.constant dense<0.000000e+00> : vector<5x32xf32>
    %265 = tpu.matmul %263, %264, %cst_95 {dimension_numbers = #tpu.dot_dimension_numbers<[1], [0], [0], [1], [0, 0, 1, 1], [], []>} : vector<5x5xbf16>, vector<5x32xbf16>, vector<5x32xf32> -> vector<5x32xf32>
    %266 = vector.extract_strided_slice %244 {offsets = [0, 32], sizes = [5, 32], strides = [1, 1]} : vector<10x192xf32> to vector<5x32xf32>
    %267 = vector.extract_strided_slice %244 {offsets = [0, 96], sizes = [5, 32], strides = [1, 1]} : vector<10x192xf32> to vector<5x32xf32>
    %268 = vector.extract_strided_slice %244 {offsets = [0, 160], sizes = [5, 32], strides = [1, 1]} : vector<10x192xf32> to vector<5x32xf32>
    %269 = arith.truncf %266 : vector<5x32xf32> to vector<5x32xbf16>
    %270 = arith.truncf %267 : vector<5x32xf32> to vector<5x32xbf16>
    %cst_96 = arith.constant dense<0.000000e+00> : vector<5x5xf32>
    %271 = tpu.matmul %269, %270, %cst_96 {dimension_numbers = #tpu.dot_dimension_numbers<[1], [1], [0], [0], [0, 0, 1, 0], [], []>} : vector<5x32xbf16>, vector<5x32xbf16>, vector<5x5xf32> -> vector<5x5xf32>
    %cst_97 = arith.constant 0.176776692 : f32
    %272 = vector.broadcast %cst_97 : f32 to vector<5x5xf32>
    %273 = arith.mulf %271, %272 : vector<5x5xf32>
    %cst_98 = arith.constant dense<0xFF800000> : vector<5xf32>
    %274 = vector.multi_reduction <maximumf>, %273, %cst_98 [1] : vector<5x5xf32> to vector<5xf32>
    %275 = vector.shape_cast %274 : vector<5xf32> to vector<5x1xf32>
    %276 = vector.broadcast %275 : vector<5x1xf32> to vector<5x5xf32>
    %277 = arith.subf %273, %276 : vector<5x5xf32>
    %278 = math.exp %277 : vector<5x5xf32>
    %cst_99 = arith.constant dense<0.000000e+00> : vector<5xf32>
    %279 = vector.multi_reduction <add>, %278, %cst_99 [1] : vector<5x5xf32> to vector<5xf32>
    %280 = vector.shape_cast %279 : vector<5xf32> to vector<5x1xf32>
    %281 = tpu.reciprocal %280 {approx = true} : vector<5x1xf32> -> vector<5x1xf32>
    %282 = vector.broadcast %281 : vector<5x1xf32> to vector<5x5xf32>
    %283 = arith.mulf %278, %282 : vector<5x5xf32>
    %284 = arith.truncf %283 : vector<5x5xf32> to vector<5x5xbf16>
    %285 = arith.truncf %268 : vector<5x32xf32> to vector<5x32xbf16>
    %cst_100 = arith.constant dense<0.000000e+00> : vector<5x32xf32>
    %286 = tpu.matmul %284, %285, %cst_100 {dimension_numbers = #tpu.dot_dimension_numbers<[1], [0], [0], [1], [0, 0, 1, 1], [], []>} : vector<5x5xbf16>, vector<5x32xbf16>, vector<5x32xf32> -> vector<5x32xf32>
    %287 = tpu.concatenate %265, %286 in 1 : vector<5x32xf32>, vector<5x32xf32> -> vector<5x64xf32>
    %288 = vector.extract_strided_slice %244 {offsets = [5, 0], sizes = [5, 32], strides = [1, 1]} : vector<10x192xf32> to vector<5x32xf32>
    %289 = vector.extract_strided_slice %244 {offsets = [5, 64], sizes = [5, 32], strides = [1, 1]} : vector<10x192xf32> to vector<5x32xf32>
    %290 = vector.extract_strided_slice %244 {offsets = [5, 128], sizes = [5, 32], strides = [1, 1]} : vector<10x192xf32> to vector<5x32xf32>
    %291 = arith.truncf %288 : vector<5x32xf32> to vector<5x32xbf16>
    %292 = arith.truncf %289 : vector<5x32xf32> to vector<5x32xbf16>
    %cst_101 = arith.constant dense<0.000000e+00> : vector<5x5xf32>
    %293 = tpu.matmul %291, %292, %cst_101 {dimension_numbers = #tpu.dot_dimension_numbers<[1], [1], [0], [0], [0, 0, 1, 0], [], []>} : vector<5x32xbf16>, vector<5x32xbf16>, vector<5x5xf32> -> vector<5x5xf32>
    %cst_102 = arith.constant 0.176776692 : f32
    %294 = vector.broadcast %cst_102 : f32 to vector<5x5xf32>
    %295 = arith.mulf %293, %294 : vector<5x5xf32>
    %cst_103 = arith.constant dense<0xFF800000> : vector<5xf32>
    %296 = vector.multi_reduction <maximumf>, %295, %cst_103 [1] : vector<5x5xf32> to vector<5xf32>
    %297 = vector.shape_cast %296 : vector<5xf32> to vector<5x1xf32>
    %298 = vector.broadcast %297 : vector<5x1xf32> to vector<5x5xf32>
    %299 = arith.subf %295, %298 : vector<5x5xf32>
    %300 = math.exp %299 : vector<5x5xf32>
    %cst_104 = arith.constant dense<0.000000e+00> : vector<5xf32>
    %301 = vector.multi_reduction <add>, %300, %cst_104 [1] : vector<5x5xf32> to vector<5xf32>
    %302 = vector.shape_cast %301 : vector<5xf32> to vector<5x1xf32>
    %303 = tpu.reciprocal %302 {approx = true} : vector<5x1xf32> -> vector<5x1xf32>
    %304 = vector.broadcast %303 : vector<5x1xf32> to vector<5x5xf32>
    %305 = arith.mulf %300, %304 : vector<5x5xf32>
    %306 = arith.truncf %305 : vector<5x5xf32> to vector<5x5xbf16>
    %307 = arith.truncf %290 : vector<5x32xf32> to vector<5x32xbf16>
    %cst_105 = arith.constant dense<0.000000e+00> : vector<5x32xf32>
    %308 = tpu.matmul %306, %307, %cst_105 {dimension_numbers = #tpu.dot_dimension_numbers<[1], [0], [0], [1], [0, 0, 1, 1], [], []>} : vector<5x5xbf16>, vector<5x32xbf16>, vector<5x32xf32> -> vector<5x32xf32>
    %309 = vector.extract_strided_slice %244 {offsets = [5, 32], sizes = [5, 32], strides = [1, 1]} : vector<10x192xf32> to vector<5x32xf32>
    %310 = vector.extract_strided_slice %244 {offsets = [5, 96], sizes = [5, 32], strides = [1, 1]} : vector<10x192xf32> to vector<5x32xf32>
    %311 = vector.extract_strided_slice %244 {offsets = [5, 160], sizes = [5, 32], strides = [1, 1]} : vector<10x192xf32> to vector<5x32xf32>
    %312 = arith.truncf %309 : vector<5x32xf32> to vector<5x32xbf16>
    %313 = arith.truncf %310 : vector<5x32xf32> to vector<5x32xbf16>
    %cst_106 = arith.constant dense<0.000000e+00> : vector<5x5xf32>
    %314 = tpu.matmul %312, %313, %cst_106 {dimension_numbers = #tpu.dot_dimension_numbers<[1], [1], [0], [0], [0, 0, 1, 0], [], []>} : vector<5x32xbf16>, vector<5x32xbf16>, vector<5x5xf32> -> vector<5x5xf32>
    %cst_107 = arith.constant 0.176776692 : f32
    %315 = vector.broadcast %cst_107 : f32 to vector<5x5xf32>
    %316 = arith.mulf %314, %315 : vector<5x5xf32>
    %cst_108 = arith.constant dense<0xFF800000> : vector<5xf32>
    %317 = vector.multi_reduction <maximumf>, %316, %cst_108 [1] : vector<5x5xf32> to vector<5xf32>
    %318 = vector.shape_cast %317 : vector<5xf32> to vector<5x1xf32>
    %319 = vector.broadcast %318 : vector<5x1xf32> to vector<5x5xf32>
    %320 = arith.subf %316, %319 : vector<5x5xf32>
    %321 = math.exp %320 : vector<5x5xf32>
    %cst_109 = arith.constant dense<0.000000e+00> : vector<5xf32>
    %322 = vector.multi_reduction <add>, %321, %cst_109 [1] : vector<5x5xf32> to vector<5xf32>
    %323 = vector.shape_cast %322 : vector<5xf32> to vector<5x1xf32>
    %324 = tpu.reciprocal %323 {approx = true} : vector<5x1xf32> -> vector<5x1xf32>
    %325 = vector.broadcast %324 : vector<5x1xf32> to vector<5x5xf32>
    %326 = arith.mulf %321, %325 : vector<5x5xf32>
    %327 = arith.truncf %326 : vector<5x5xf32> to vector<5x5xbf16>
    %328 = arith.truncf %311 : vector<5x32xf32> to vector<5x32xbf16>
    %cst_110 = arith.constant dense<0.000000e+00> : vector<5x32xf32>
    %329 = tpu.matmul %327, %328, %cst_110 {dimension_numbers = #tpu.dot_dimension_numbers<[1], [0], [0], [1], [0, 0, 1, 1], [], []>} : vector<5x5xbf16>, vector<5x32xbf16>, vector<5x32xf32> -> vector<5x32xf32>
    %330 = tpu.concatenate %308, %329 in 1 : vector<5x32xf32>, vector<5x32xf32> -> vector<5x64xf32>
    %331 = tpu.concatenate %287, %330 in 0 : vector<5x64xf32>, vector<5x64xf32> -> vector<10x64xf32>
    %c1_111 = arith.constant 1 : index
    %c0_112 = arith.constant 0 : index
    %c0_113 = arith.constant 0 : index
    %332 = vector.load %arg7[%c1_111, %c0_112, %c0_113] : memref<2x64x64xbf16, #tpu.memory_space<vmem>>, vector<1x64x64xbf16>
    %333 = vector.shape_cast %332 : vector<1x64x64xbf16> to vector<64x64xbf16>
    %334 = arith.truncf %331 : vector<10x64xf32> to vector<10x64xbf16>
    %cst_114 = arith.constant dense<0.000000e+00> : vector<10x64xf32>
    %335 = tpu.matmul %334, %333, %cst_114 {dimension_numbers = #tpu.dot_dimension_numbers<[1], [0], [0], [1], [0, 0, 1, 1], [], []>} : vector<10x64xbf16>, vector<64x64xbf16>, vector<10x64xf32> -> vector<10x64xf32>
    %336 = arith.addf %210, %335 : vector<10x64xf32>
    %c1_115 = arith.constant 1 : index
    %c0_116 = arith.constant 0 : index
    %c0_117 = arith.constant 0 : index
    %337 = vector.load %arg8[%c1_115, %c0_116, %c0_117] : memref<2x1x64xf32, #tpu.memory_space<vmem>>, vector<1x1x64xf32>
    %338 = vector.shape_cast %337 : vector<1x1x64xf32> to vector<1x64xf32>
    %339 = vector.broadcast %338 : vector<1x64xf32> to vector<10x64xf32>
    %340 = arith.addf %336, %339 : vector<10x64xf32>
    %c3 = arith.constant 3 : index
    %c0_118 = arith.constant 0 : index
    %c0_119 = arith.constant 0 : index
    %341 = vector.load %arg9[%c3, %c0_118, %c0_119] : memref<4x2x64xf32, #tpu.memory_space<vmem>>, vector<1x2x64xf32>
    %342 = vector.shape_cast %341 : vector<1x2x64xf32> to vector<2x64xf32>
    %cst_120 = arith.constant dense<0.000000e+00> : vector<10xf32>
    %343 = vector.multi_reduction <add>, %340, %cst_120 [1] : vector<10x64xf32> to vector<10xf32>
    %344 = vector.shape_cast %343 : vector<10xf32> to vector<10x1xf32>
    %cst_121 = arith.constant 6.400000e+01 : f32
    %345 = vector.broadcast %cst_121 : f32 to vector<10x1xf32>
    %346 = arith.divf %344, %345 : vector<10x1xf32>
    %347 = vector.broadcast %346 : vector<10x1xf32> to vector<10x64xf32>
    %348 = arith.subf %340, %347 : vector<10x64xf32>
    %349 = arith.mulf %348, %348 : vector<10x64xf32>
    %cst_122 = arith.constant dense<0.000000e+00> : vector<10xf32>
    %350 = vector.multi_reduction <add>, %349, %cst_122 [1] : vector<10x64xf32> to vector<10xf32>
    %351 = vector.shape_cast %350 : vector<10xf32> to vector<10x1xf32>
    %cst_123 = arith.constant 6.400000e+01 : f32
    %352 = vector.broadcast %cst_123 : f32 to vector<10x1xf32>
    %353 = arith.divf %351, %352 : vector<10x1xf32>
    %354 = vector.broadcast %346 : vector<10x1xf32> to vector<10x64xf32>
    %355 = arith.subf %340, %354 : vector<10x64xf32>
    %cst_124 = arith.constant 9.99999974E-6 : f32
    %356 = vector.broadcast %cst_124 : f32 to vector<10x1xf32>
    %357 = arith.addf %353, %356 : vector<10x1xf32>
    %358 = math.rsqrt %357 : vector<10x1xf32>
    %359 = vector.broadcast %358 : vector<10x1xf32> to vector<10x64xf32>
    %360 = arith.mulf %355, %359 : vector<10x64xf32>
    %361 = vector.extract_strided_slice %342 {offsets = [0, 0], sizes = [1, 64], strides = [1, 1]} : vector<2x64xf32> to vector<1x64xf32>
    %362 = vector.broadcast %361 : vector<1x64xf32> to vector<10x64xf32>
    %363 = arith.mulf %360, %362 : vector<10x64xf32>
    %364 = vector.extract_strided_slice %342 {offsets = [1, 0], sizes = [1, 64], strides = [1, 1]} : vector<2x64xf32> to vector<1x64xf32>
    %365 = vector.broadcast %364 : vector<1x64xf32> to vector<10x64xf32>
    %366 = arith.addf %363, %365 : vector<10x64xf32>
    %c1_125 = arith.constant 1 : index
    %c0_126 = arith.constant 0 : index
    %c0_127 = arith.constant 0 : index
    %367 = vector.load %arg10[%c1_125, %c0_126, %c0_127] : memref<2x64x128xbf16, #tpu.memory_space<vmem>>, vector<1x64x128xbf16>
    %368 = vector.shape_cast %367 : vector<1x64x128xbf16> to vector<64x128xbf16>
    %369 = arith.truncf %366 : vector<10x64xf32> to vector<10x64xbf16>
    %cst_128 = arith.constant dense<0.000000e+00> : vector<10x128xf32>
    %370 = tpu.matmul %369, %368, %cst_128 {dimension_numbers = #tpu.dot_dimension_numbers<[1], [0], [0], [1], [0, 0, 1, 1], [], []>} : vector<10x64xbf16>, vector<64x128xbf16>, vector<10x128xf32> -> vector<10x128xf32>
    %c1_129 = arith.constant 1 : index
    %c0_130 = arith.constant 0 : index
    %c0_131 = arith.constant 0 : index
    %371 = vector.load %arg11[%c1_129, %c0_130, %c0_131] : memref<2x1x128xf32, #tpu.memory_space<vmem>>, vector<1x1x128xf32>
    %372 = vector.shape_cast %371 : vector<1x1x128xf32> to vector<1x128xf32>
    %373 = vector.broadcast %372 : vector<1x128xf32> to vector<10x128xf32>
    %374 = arith.addf %370, %373 : vector<10x128xf32>
    %cst_132 = arith.constant 1.702000e+00 : f32
    %375 = vector.broadcast %cst_132 : f32 to vector<10x128xf32>
    %376 = arith.mulf %375, %374 : vector<10x128xf32>
    %377 = arith.negf %376 : vector<10x128xf32>
    %378 = math.exp %377 : vector<10x128xf32>
    %cst_133 = arith.constant 1.000000e+00 : f32
    %379 = vector.broadcast %cst_133 : f32 to vector<10x128xf32>
    %380 = arith.addf %379, %378 : vector<10x128xf32>
    %381 = arith.divf %379, %380 : vector<10x128xf32>
    %382 = arith.mulf %374, %381 : vector<10x128xf32>
    %c1_134 = arith.constant 1 : index
    %c0_135 = arith.constant 0 : index
    %c0_136 = arith.constant 0 : index
    %383 = vector.load %arg12[%c1_134, %c0_135, %c0_136] : memref<2x128x64xbf16, #tpu.memory_space<vmem>>, vector<1x128x64xbf16>
    %384 = vector.shape_cast %383 : vector<1x128x64xbf16> to vector<128x64xbf16>
    %385 = arith.truncf %382 : vector<10x128xf32> to vector<10x128xbf16>
    %cst_137 = arith.constant dense<0.000000e+00> : vector<10x64xf32>
    %386 = tpu.matmul %385, %384, %cst_137 {dimension_numbers = #tpu.dot_dimension_numbers<[1], [0], [0], [1], [0, 0, 1, 1], [], []>} : vector<10x128xbf16>, vector<128x64xbf16>, vector<10x64xf32> -> vector<10x64xf32>
    %387 = arith.addf %340, %386 : vector<10x64xf32>
    %c1_138 = arith.constant 1 : index
    %c0_139 = arith.constant 0 : index
    %c0_140 = arith.constant 0 : index
    %388 = vector.load %arg13[%c1_138, %c0_139, %c0_140] : memref<2x1x64xf32, #tpu.memory_space<vmem>>, vector<1x1x64xf32>
    %389 = vector.shape_cast %388 : vector<1x1x64xf32> to vector<1x64xf32>
    %390 = vector.broadcast %389 : vector<1x64xf32> to vector<10x64xf32>
    %391 = arith.addf %387, %390 : vector<10x64xf32>
    %392 = vector.extract_strided_slice %391 {offsets = [0, 0], sizes = [1, 64], strides = [1, 1]} : vector<10x64xf32> to vector<1x64xf32>
    %393 = vector.extract_strided_slice %391 {offsets = [5, 0], sizes = [1, 64], strides = [1, 1]} : vector<10x64xf32> to vector<1x64xf32>
    %394 = tpu.concatenate %392, %393 in 0 : vector<1x64xf32>, vector<1x64xf32> -> vector<2x64xf32>
    %c0_141 = arith.constant 0 : index
    %c0_142 = arith.constant 0 : index
    %395 = vector.load %arg14[%c0_141, %c0_142] : memref<2x64xf32, #tpu.memory_space<vmem>>, vector<2x64xf32>
    %cst_143 = arith.constant dense<0.000000e+00> : vector<2xf32>
    %396 = vector.multi_reduction <add>, %394, %cst_143 [1] : vector<2x64xf32> to vector<2xf32>
    %397 = vector.shape_cast %396 : vector<2xf32> to vector<2x1xf32>
    %cst_144 = arith.constant 6.400000e+01 : f32
    %398 = vector.broadcast %cst_144 : f32 to vector<2x1xf32>
    %399 = arith.divf %397, %398 : vector<2x1xf32>
    %400 = vector.broadcast %399 : vector<2x1xf32> to vector<2x64xf32>
    %401 = arith.subf %394, %400 : vector<2x64xf32>
    %402 = arith.mulf %401, %401 : vector<2x64xf32>
    %cst_145 = arith.constant dense<0.000000e+00> : vector<2xf32>
    %403 = vector.multi_reduction <add>, %402, %cst_145 [1] : vector<2x64xf32> to vector<2xf32>
    %404 = vector.shape_cast %403 : vector<2xf32> to vector<2x1xf32>
    %cst_146 = arith.constant 6.400000e+01 : f32
    %405 = vector.broadcast %cst_146 : f32 to vector<2x1xf32>
    %406 = arith.divf %404, %405 : vector<2x1xf32>
    %407 = vector.broadcast %399 : vector<2x1xf32> to vector<2x64xf32>
    %408 = arith.subf %394, %407 : vector<2x64xf32>
    %cst_147 = arith.constant 9.99999974E-6 : f32
    %409 = vector.broadcast %cst_147 : f32 to vector<2x1xf32>
    %410 = arith.addf %406, %409 : vector<2x1xf32>
    %411 = math.rsqrt %410 : vector<2x1xf32>
    %412 = vector.broadcast %411 : vector<2x1xf32> to vector<2x64xf32>
    %413 = arith.mulf %408, %412 : vector<2x64xf32>
    %414 = vector.extract_strided_slice %395 {offsets = [0, 0], sizes = [1, 64], strides = [1, 1]} : vector<2x64xf32> to vector<1x64xf32>
    %415 = vector.broadcast %414 : vector<1x64xf32> to vector<2x64xf32>
    %416 = arith.mulf %413, %415 : vector<2x64xf32>
    %417 = vector.extract_strided_slice %395 {offsets = [1, 0], sizes = [1, 64], strides = [1, 1]} : vector<2x64xf32> to vector<1x64xf32>
    %418 = vector.broadcast %417 : vector<1x64xf32> to vector<2x64xf32>
    %419 = arith.addf %416, %418 : vector<2x64xf32>
    %c0_148 = arith.constant 0 : index
    %c0_149 = arith.constant 0 : index
    %420 = vector.load %arg16[%c0_148, %c0_149] : memref<1x64xf32, #tpu.memory_space<vmem>>, vector<1x64xf32>
    %421 = vector.broadcast %420 : vector<1x64xf32> to vector<2x64xf32>
    %422 = arith.mulf %419, %421 : vector<2x64xf32>
    %cst_150 = arith.constant dense<0.000000e+00> : vector<2xf32>
    %423 = vector.multi_reduction <add>, %422, %cst_150 [1] : vector<2x64xf32> to vector<2xf32>
    %424 = vector.shape_cast %423 : vector<2xf32> to vector<2x1xf32>
    %c0_151 = arith.constant 0 : index
    %c0_152 = arith.constant 0 : index
    %425 = vector.load %arg15[%c0_151, %c0_152] : memref<64x64xbf16, #tpu.memory_space<vmem>>, vector<64x64xbf16>
    %426 = arith.truncf %419 : vector<2x64xf32> to vector<2x64xbf16>
    %cst_153 = arith.constant dense<0.000000e+00> : vector<2x64xf32>
    %427 = tpu.matmul %426, %425, %cst_153 {dimension_numbers = #tpu.dot_dimension_numbers<[1], [0], [0], [1], [0, 0, 1, 1], [], []>} : vector<2x64xbf16>, vector<64x64xbf16>, vector<2x64xf32> -> vector<2x64xf32>
    %428 = arith.mulf %427, %419 : vector<2x64xf32>
    %cst_154 = arith.constant dense<0.000000e+00> : vector<2xf32>
    %429 = vector.multi_reduction <add>, %428, %cst_154 [1] : vector<2x64xf32> to vector<2xf32>
    %430 = vector.shape_cast %429 : vector<2xf32> to vector<2x1xf32>
    %431 = math.rsqrt %430 : vector<2x1xf32>
    %432 = arith.mulf %424, %431 : vector<2x1xf32>
    %c0_155 = arith.constant 0 : index
    %c0_156 = arith.constant 0 : index
    %433 = vector.load %arg17[%c0_155, %c0_156] : memref<1x1xf32, #tpu.memory_space<vmem>>, vector<1x1xf32>
    %434 = vector.broadcast %433 : vector<1x1xf32> to vector<2x1xf32>
    %435 = arith.addf %432, %434 : vector<2x1xf32>
    %436 = vector.shape_cast %435 : vector<2x1xf32> to vector<2x1xf32>
    %437 = vector.broadcast %436 : vector<2x1xf32> to vector<2x128xf32>
    %c0_157 = arith.constant 0 : index
    %c0_158 = arith.constant 0 : index
    %438 = vector.load %arg18[%c0_157, %c0_158] : memref<2x128xf32, #tpu.memory_space<vmem>>, vector<2x128xf32>
    tpu.vector_store %arg18[%c0_157, %c0_158], %437 {strides = array<i32>} : memref<2x128xf32, #tpu.memory_space<vmem>>, vector<2x128xf32>,
    return
  }
  func.func @transform_0(%arg0: i32) -> (i32, i32) {
    %c0_i32 = arith.constant 0 : i32
    %c0_i32_0 = arith.constant 0 : i32
    %c0_i32_1 = arith.constant 0 : i32
    return %c0_i32, %c0_i32_0 : i32, i32
  }
  func.func @transform_1(%arg0: i32) -> (i32, i32) {
    %c0_i32 = arith.constant 0 : i32
    %c0_i32_0 = arith.constant 0 : i32
    %c0_i32_1 = arith.constant 0 : i32
    return %c0_i32, %c0_i32_0 : i32, i32
  }
  func.func @transform_2(%arg0: i32) -> (i32, i32) {
    %c0_i32 = arith.constant 0 : i32
    %c0_i32_0 = arith.constant 0 : i32
    %c0_i32_1 = arith.constant 0 : i32
    return %c0_i32, %c0_i32_0 : i32, i32
  }
  func.func @transform_3(%arg0: i32) -> (i32, i32) {
    %c0_i32 = arith.constant 0 : i32
    %c0_i32_0 = arith.constant 0 : i32
    %c0_i32_1 = arith.constant 0 : i32
    return %c0_i32, %c0_i32_0 : i32, i32
  }
  func.func @transform_4(%arg0: i32) -> (i32, i32, i32) {
    %c0_i32 = arith.constant 0 : i32
    %c0_i32_0 = arith.constant 0 : i32
    %c0_i32_1 = arith.constant 0 : i32
    %c0_i32_2 = arith.constant 0 : i32
    return %c0_i32, %c0_i32_0, %c0_i32_1 : i32, i32, i32
  }
  func.func @transform_5(%arg0: i32) -> (i32, i32, i32) {
    %c0_i32 = arith.constant 0 : i32
    %c0_i32_0 = arith.constant 0 : i32
    %c0_i32_1 = arith.constant 0 : i32
    %c0_i32_2 = arith.constant 0 : i32
    return %c0_i32, %c0_i32_0, %c0_i32_1 : i32, i32, i32
  }
  func.func @transform_6(%arg0: i32) -> (i32, i32, i32) {
    %c0_i32 = arith.constant 0 : i32
    %c0_i32_0 = arith.constant 0 : i32
    %c0_i32_1 = arith.constant 0 : i32
    %c0_i32_2 = arith.constant 0 : i32
    return %c0_i32, %c0_i32_0, %c0_i32_1 : i32, i32, i32
  }
  func.func @transform_7(%arg0: i32) -> (i32, i32, i32) {
    %c0_i32 = arith.constant 0 : i32
    %c0_i32_0 = arith.constant 0 : i32
    %c0_i32_1 = arith.constant 0 : i32
    %c0_i32_2 = arith.constant 0 : i32
    return %c0_i32, %c0_i32_0, %c0_i32_1 : i32, i32, i32
  }
  func.func @transform_8(%arg0: i32) -> (i32, i32, i32) {
    %c0_i32 = arith.constant 0 : i32
    %c0_i32_0 = arith.constant 0 : i32
    %c0_i32_1 = arith.constant 0 : i32
    %c0_i32_2 = arith.constant 0 : i32
    return %c0_i32, %c0_i32_0, %c0_i32_1 : i32, i32, i32
  }
  func.func @transform_9(%arg0: i32) -> (i32, i32, i32) {
    %c0_i32 = arith.constant 0 : i32
    %c0_i32_0 = arith.constant 0 : i32
    %c0_i32_1 = arith.constant 0 : i32
    %c0_i32_2 = arith.constant 0 : i32
    return %c0_i32, %c0_i32_0, %c0_i32_1 : i32, i32, i32
  }
  func.func @transform_10(%arg0: i32) -> (i32, i32, i32) {
    %c0_i32 = arith.constant 0 : i32
    %c0_i32_0 = arith.constant 0 : i32
    %c0_i32_1 = arith.constant 0 : i32
    %c0_i32_2 = arith.constant 0 : i32
    return %c0_i32, %c0_i32_0, %c0_i32_1 : i32, i32, i32
  }
  func.func @transform_11(%arg0: i32) -> (i32, i32, i32) {
    %c0_i32 = arith.constant 0 : i32
    %c0_i32_0 = arith.constant 0 : i32
    %c0_i32_1 = arith.constant 0 : i32
    %c0_i32_2 = arith.constant 0 : i32
    return %c0_i32, %c0_i32_0, %c0_i32_1 : i32, i32, i32
  }
  func.func @transform_12(%arg0: i32) -> (i32, i32, i32) {
    %c0_i32 = arith.constant 0 : i32
    %c0_i32_0 = arith.constant 0 : i32
    %c0_i32_1 = arith.constant 0 : i32
    %c0_i32_2 = arith.constant 0 : i32
    return %c0_i32, %c0_i32_0, %c0_i32_1 : i32, i32, i32
  }
  func.func @transform_13(%arg0: i32) -> (i32, i32) {
    %c0_i32 = arith.constant 0 : i32
    %c0_i32_0 = arith.constant 0 : i32
    %c0_i32_1 = arith.constant 0 : i32
    return %c0_i32, %c0_i32_0 : i32, i32
  }
  func.func @transform_14(%arg0: i32) -> (i32, i32) {
    %c0_i32 = arith.constant 0 : i32
    %c0_i32_0 = arith.constant 0 : i32
    %c0_i32_1 = arith.constant 0 : i32
    return %c0_i32, %c0_i32_0 : i32, i32
  }
  func.func @transform_15(%arg0: i32) -> (i32, i32) {
    %c0_i32 = arith.constant 0 : i32
    %c0_i32_0 = arith.constant 0 : i32
    %c0_i32_1 = arith.constant 0 : i32
    return %c0_i32, %c0_i32_0 : i32, i32
  }
  func.func @transform_16(%arg0: i32) -> (i32, i32) {
    %c0_i32 = arith.constant 0 : i32
    %c0_i32_0 = arith.constant 0 : i32
    %c0_i32_1 = arith.constant 0 : i32
    return %c0_i32, %c0_i32_0 : i32, i32
  }
  func.func @transform_17(%arg0: i32) -> (i32, i32) {
    %c0_i32 = arith.constant 0 : i32
    %c0_i32_0 = arith.constant 0 : i32
    %c0_i32_1 = arith.constant 0 : i32
    return %c0_i32, %c0_i32_0 : i32, i32
  }
}

</mosaic_0001>

<llo_original>
// kernel: tile.9
$region0: #{tile.9}
  %s0 = inlined_call_operand.vmem [shape: f32[2,5,64], index: 0, kind: input, shape index: {}]
  %s1 = inlined_call_operand.vmem [shape: f32[10,64], index: 1, kind: output, shape index: {}]
  %v2 = vld [vmem:[%s0] sm:$0x1f]
  %vm3 = vcmask 523264
  %4 = vst.msk [vmem:[%s1] sm:$0x1f] %vm3, %v2
  %s5 = scalar_lea.vmem %s0, 8
  %v6 = vld [vmem:[%s5] sm:$0x1f]
  %vm7 = vcmask 523264
  %s8 = scalar_lea.vmem %s1, 5
  %9 = vst.msk [vmem:[%s8] sm:$0x1f] %vm7, %v6

// kernel: improved_aesthetic_predictor.1
$region0: #{improved_aesthetic_predictor.1}
  #allocation0 [shape = 'u32[]', space=smem, size = 0x4, offset = 0x4, fixed_abs, tag = 'smem constant byte address 0x4 - core index']
  #allocation1 [shape = 'u32[144,128]{1,0:T(1,128)}', space=vmem, size = 0x12000, scoped, tag = 'internal scratch']
  #allocation2 [shape = 'f32[1,1]{1,0:T(1,128)S(1)}', space=vmem, size = 0x200, scoped, tag = 'scoped memory for improved_aesthetic_predictor.1']
  %s0 = inlined_call_operand.vmem [shape: bf16[10,768], index: 0, kind: input, shape index: {}]
  %s1 = inlined_call_operand.vmem [shape: bf16[768,64], index: 1, kind: input, shape index: {}]
  %s2 = inlined_call_operand.vmem [shape: f32[10,64], index: 2, kind: input, shape index: {}]
  %s3 = inlined_call_operand.vmem [shape: f32[2,64], index: 3, kind: input, shape index: {}]
  %s4 = inlined_call_operand.vmem [shape: bf16[2,64,192], index: 4, kind: input, shape index: {}]
  %s5 = inlined_call_operand.vmem [shape: f32[2,1,192], index: 5, kind: input, shape index: {}]
  %s6 = inlined_call_operand.vmem [shape: bf16[2,64,64], index: 6, kind: input, shape index: {}]
  %s7 = inlined_call_operand.vmem [shape: f32[2,1,64], index: 7, kind: input, shape index: {}]
  %s8 = inlined_call_operand.vmem [shape: f32[4,2,64], index: 8, kind: input, shape index: {}]
  %s9 = inlined_call_operand.vmem [shape: bf16[2,64,128], index: 9, kind: input, shape index: {}]
  %s10 = inlined_call_operand.vmem [shape: f32[2,1,128], index: 10, kind: input, shape index: {}]
  %s11 = inlined_call_operand.vmem [shape: bf16[2,128,64], index: 11, kind: input, shape index: {}]
  %s12 = inlined_call_operand.vmem [shape: f32[2,1,64], index: 12, kind: input, shape index: {}]
  %s13 = inlined_call_operand.vmem [shape: f32[2,64], index: 13, kind: input, shape index: {}]
  %s14 = inlined_call_operand.vmem [shape: bf16[64,64], index: 14, kind: input, shape index: {}]
  %s15 = inlined_call_operand.vmem [shape: f32[1,64], index: 15, kind: input, shape index: {}]
  %s16 = inlined_call_operand.<no memory space> [shape: f32[1,1], index: 16, kind: input, shape index: {}]
  %s17 = inlined_call_operand.vmem [shape: f32[2,128], index: 17, kind: output, shape index: {}]
  %s18 = sld [smem:[#allocation0]]
  $region78: #{improved_aesthetic_predictor.1} parent=0
    _
  %s20 = ssub.s32 1, %s18
  %s21 = scalar_select 0, %s20, %s18
  %v22 = vstv %s16
  %23 = vst [vmem:[#allocation2] sm:$0x1] %v22
  // Predicated region
  $region2: #{improved_aesthetic_predictor.1} parent=0 // pred_check
    _
  $region3: #{improved_aesthetic_predictor.1} parent=0 // pred_check_branch
    %25 = sbr.rel (0) target = $region5
  $region4: #{improved_aesthetic_predictor.1} parent=0 // pred_region
    _
  $region5: #{improved_aesthetic_predictor.1} parent=0 // pred_fallthru
    _
  // Predicated region
  $region6: #{improved_aesthetic_predictor.1} parent=0 // pred_check
    _
  $region7: #{improved_aesthetic_predictor.1} parent=0 // pred_check_branch
    %27 = sbr.rel (0) target = $region9
  $region8: #{improved_aesthetic_predictor.1} parent=0 // pred_region
    _
  $region9: #{improved_aesthetic_predictor.1} parent=0 // pred_fallthru
    _
  // Predicated region
  $region10: #{improved_aesthetic_predictor.1} parent=0 // pred_check
    _
  $region11: #{improved_aesthetic_predictor.1} parent=0 // pred_check_branch
    %29 = sbr.rel (0) target = $region13
  $region12: #{improved_aesthetic_predictor.1} parent=0 // pred_region
    _
  $region13: #{improved_aesthetic_predictor.1} parent=0 // pred_fallthru
    _
  // Predicated region
  $region14: #{improved_aesthetic_predictor.1} parent=0 // pred_check
    _
  $region15: #{improved_aesthetic_predictor.1} parent=0 // pred_check_branch
    %31 = sbr.rel (0) target = $region17
  $region16: #{improved_aesthetic_predictor.1} parent=0 // pred_region
    _
  $region17: #{improved_aesthetic_predictor.1} parent=0 // pred_fallthru
    _
  // Predicated region
  $region18: #{improved_aesthetic_predictor.1} parent=0 // pred_check
    _
  $region19: #{improved_aesthetic_predictor.1} parent=0 // pred_check_branch
    %33 = sbr.rel (0) target = $region21
  $region20: #{improved_aesthetic_predictor.1} parent=0 // pred_region
    _
  $region21: #{improved_aesthetic_predictor.1} parent=0 // pred_fallthru
    _
  // Predicated region
  $region22: #{improved_aesthetic_predictor.1} parent=0 // pred_check
    _
  $region23: #{improved_aesthetic_predictor.1} parent=0 // pred_check_branch
    %35 = sbr.rel (0) target = $region25
  $region24: #{improved_aesthetic_predictor.1} parent=0 // pred_region
    _
  $region25: #{improved_aesthetic_predictor.1} parent=0 // pred_fallthru
    _
  // Predicated region
  $region26: #{improved_aesthetic_predictor.1} parent=0 // pred_check
    _
  $region27: #{improved_aesthetic_predictor.1} parent=0 // pred_check_branch
    %37 = sbr.rel (0) target = $region29
  $region28: #{improved_aesthetic_predictor.1} parent=0 // pred_region
    _
  $region29: #{improved_aesthetic_predictor.1} parent=0 // pred_fallthru
    _
  // Predicated region
  $region30: #{improved_aesthetic_predictor.1} parent=0 // pred_check
    _
  $region31: #{improved_aesthetic_predictor.1} parent=0 // pred_check_branch
    %39 = sbr.rel (0) target = $region33
  $region32: #{improved_aesthetic_predictor.1} parent=0 // pred_region
    _
  $region33: #{improved_aesthetic_predictor.1} parent=0 // pred_fallthru
    _
  // Predicated region
  $region34: #{improved_aesthetic_predictor.1} parent=0 // pred_check
    _
  $region35: #{improved_aesthetic_predictor.1} parent=0 // pred_check_branch
    %41 = sbr.rel (0) target = $region37
  $region36: #{improved_aesthetic_predictor.1} parent=0 // pred_region
    _
  $region37: #{improved_aesthetic_predictor.1} parent=0 // pred_fallthru
    _
  // Predicated region
  $region38: #{improved_aesthetic_predictor.1} parent=0 // pred_check
    _
  $region39: #{improved_aesthetic_predictor.1} parent=0 // pred_check_branch
    %43 = sbr.rel (0) target = $region41
  $region40: #{improved_aesthetic_predictor.1} parent=0 // pred_region
    _
  $region41: #{improved_aesthetic_predictor.1} parent=0 // pred_fallthru
    _
  // Predicated region
  $region42: #{improved_aesthetic_predictor.1} parent=0 // pred_check
    _
  $region43: #{improved_aesthetic_predictor.1} parent=0 // pred_check_branch
    %45 = sbr.rel (0) target = $region45
  $region44: #{improved_aesthetic_predictor.1} parent=0 // pred_region
    _
  $region45: #{improved_aesthetic_predictor.1} parent=0 // pred_fallthru
    _
  // Predicated region
  $region46: #{improved_aesthetic_predictor.1} parent=0 // pred_check
    _
  $region47: #{improved_aesthetic_predictor.1} parent=0 // pred_check_branch
    %47 = sbr.rel (0) target = $region49
  $region48: #{improved_aesthetic_predictor.1} parent=0 // pred_region
    _
  $region49: #{improved_aesthetic_predictor.1} parent=0 // pred_fallthru
    _
  // Predicated region
  $region50: #{improved_aesthetic_predictor.1} parent=0 // pred_check
    _
  $region51: #{improved_aesthetic_predictor.1} parent=0 // pred_check_branch
    %49 = sbr.rel (0) target = $region53
  $region52: #{improved_aesthetic_predictor.1} parent=0 // pred_region
    _
  $region53: #{improved_aesthetic_predictor.1} parent=0 // pred_fallthru
    _
  // Predicated region
  $region54: #{improved_aesthetic_predictor.1} parent=0 // pred_check
    _
  $region55: #{improved_aesthetic_predictor.1} parent=0 // pred_check_branch
    %51 = sbr.rel (0) target = $region57
  $region56: #{improved_aesthetic_predictor.1} parent=0 // pred_region
    _
  $region57: #{improved_aesthetic_predictor.1} parent=0 // pred_fallthru
    _
  // Predicated region
  $region58: #{improved_aesthetic_predictor.1} parent=0 // pred_check
    _
  $region59: #{improved_aesthetic_predictor.1} parent=0 // pred_check_branch
    %53 = sbr.rel (0) target = $region61
  $region60: #{improved_aesthetic_predictor.1} parent=0 // pred_region
    _
  $region61: #{improved_aesthetic_predictor.1} parent=0 // pred_fallthru
    _
  // Predicated region
  $region62: #{improved_aesthetic_predictor.1} parent=0 // pred_check
    _
  $region63: #{improved_aesthetic_predictor.1} parent=0 // pred_check_branch
    %55 = sbr.rel (0) target = $region65
  $region64: #{improved_aesthetic_predictor.1} parent=0 // pred_region
    _
  $region65: #{improved_aesthetic_predictor.1} parent=0 // pred_fallthru
    _
  // Predicated region
  $region66: #{improved_aesthetic_predictor.1} parent=0 // pred_check
    _
  $region67: #{improved_aesthetic_predictor.1} parent=0 // pred_check_branch
    %57 = sbr.rel (0) target = $region69
  $region68: #{improved_aesthetic_predictor.1} parent=0 // pred_region
    _
  $region69: #{improved_aesthetic_predictor.1} parent=0 // pred_fallthru
    _
  %v59 = vld [vmem:[%s0] sm:$0xff]
  %v60 = vld [vmem:[%s0 + $0x8] sm:$0xff]
  %v61 = vld [vmem:[%s0 + $0x10] sm:$0xff]
  %v62 = vld [vmem:[%s0 + $0x18] sm:$0x11]
  %v63 = vld [vmem:[%s0 + $0x20] sm:$0x11]
  %v64 = vld [vmem:[%s0 + $0x28] sm:$0x11]
  %v65 = vld [vmem:[%s1] sm:$0xf]
  %v66 = vld [vmem:[%s1 + $0x4] sm:$0xf]
  %v67 = vld [vmem:[%s1 + $0x8] sm:$0xf]
  %v68 = vld [vmem:[%s1 + $0xc] sm:$0xf]
  %v69 = vld [vmem:[%s1 + $0x10] sm:$0xf]
  %v70 = vld [vmem:[%s1 + $0x14] sm:$0xf]
  %v71 = vld [vmem:[%s1 + $0x18] sm:$0xf]
  %v72 = vld [vmem:[%s1 + $0x1c] sm:$0xf]
  %v73 = vld [vmem:[%s1 + $0x20] sm:$0xf]
  %v74 = vld [vmem:[%s1 + $0x24] sm:$0xf]
  %v75 = vld [vmem:[%s1 + $0x28] sm:$0xf]
  %v76 = vld [vmem:[%s1 + $0x2c] sm:$0xf]
  %v77 = vld [vmem:[%s1 + $0x30] sm:$0xf]
  %v78 = vld [vmem:[%s1 + $0x34] sm:$0xf]
  %v79 = vld [vmem:[%s1 + $0x38] sm:$0xf]
  %v80 = vld [vmem:[%s1 + $0x3c] sm:$0xf]
  %v81 = vld [vmem:[%s1 + $0x40] sm:$0xf]
  %v82 = vld [vmem:[%s1 + $0x44] sm:$0xf]
  %v83 = vld [vmem:[%s1 + $0x48] sm:$0xf]
  %v84 = vld [vmem:[%s1 + $0x4c] sm:$0xf]
  %v85 = vld [vmem:[%s1 + $0x50] sm:$0xf]
  %v86 = vld [vmem:[%s1 + $0x54] sm:$0xf]
  %v87 = vld [vmem:[%s1 + $0x58] sm:$0xf]
  %v88 = vld [vmem:[%s1 + $0x5c] sm:$0xf]
  %v89 = vld [vmem:[%s1 + $0x60] sm:$0xf]
  %v90 = vld [vmem:[%s1 + $0x64] sm:$0xf]
  %v91 = vld [vmem:[%s1 + $0x68] sm:$0xf]
  %v92 = vld [vmem:[%s1 + $0x6c] sm:$0xf]
  %v93 = vld [vmem:[%s1 + $0x70] sm:$0xf]
  %v94 = vld [vmem:[%s1 + $0x74] sm:$0xf]
  %v95 = vld [vmem:[%s1 + $0x78] sm:$0xf]
  %v96 = vld [vmem:[%s1 + $0x7c] sm:$0xf]
  %v97 = vld [vmem:[%s1 + $0x80] sm:$0xf]
  %v98 = vld [vmem:[%s1 + $0x84] sm:$0xf]
  %v99 = vld [vmem:[%s1 + $0x88] sm:$0xf]
  %v100 = vld [vmem:[%s1 + $0x8c] sm:$0xf]
  %v101 = vld [vmem:[%s1 + $0x90] sm:$0xf]
  %v102 = vld [vmem:[%s1 + $0x94] sm:$0xf]
  %v103 = vld [vmem:[%s1 + $0x98] sm:$0xf]
  %v104 = vld [vmem:[%s1 + $0x9c] sm:$0xf]
  %v105 = vld [vmem:[%s1 + $0xa0] sm:$0xf]
  %v106 = vld [vmem:[%s1 + $0xa4] sm:$0xf]
  %v107 = vld [vmem:[%s1 + $0xa8] sm:$0xf]
  %v108 = vld [vmem:[%s1 + $0xac] sm:$0xf]
  %v109 = vld [vmem:[%s1 + $0xb0] sm:$0xf]
  %v110 = vld [vmem:[%s1 + $0xb4] sm:$0xf]
  %v111 = vld [vmem:[%s1 + $0xb8] sm:$0xf]
  %v112 = vld [vmem:[%s1 + $0xbc] sm:$0xf]
  %v113 = vld [vmem:[%s1 + $0xc0] sm:$0xf]
  %v114 = vld [vmem:[%s1 + $0xc4] sm:$0xf]
  %v115 = vld [vmem:[%s1 + $0xc8] sm:$0xf]
  %v116 = vld [vmem:[%s1 + $0xcc] sm:$0xf]
  %v117 = vld [vmem:[%s1 + $0xd0] sm:$0xf]
  %v118 = vld [vmem:[%s1 + $0xd4] sm:$0xf]
  %v119 = vld [vmem:[%s1 + $0xd8] sm:$0xf]
  %v120 = vld [vmem:[%s1 + $0xdc] sm:$0xf]
  %v121 = vld [vmem:[%s1 + $0xe0] sm:$0xf]
  %v122 = vld [vmem:[%s1 + $0xe4] sm:$0xf]
  %v123 = vld [vmem:[%s1 + $0xe8] sm:$0xf]
  %v124 = vld [vmem:[%s1 + $0xec] sm:$0xf]
  %v125 = vld [vmem:[%s1 + $0xf0] sm:$0xf]
  %v126 = vld [vmem:[%s1 + $0xf4] sm:$0xf]
  %v127 = vld [vmem:[%s1 + $0xf8] sm:$0xf]
  %v128 = vld [vmem:[%s1 + $0xfc] sm:$0xf]
  %v129 = vld [vmem:[%s1 + $0x100] sm:$0xf]
  %v130 = vld [vmem:[%s1 + $0x104] sm:$0xf]
  %v131 = vld [vmem:[%s1 + $0x108] sm:$0xf]
  %v132 = vld [vmem:[%s1 + $0x10c] sm:$0xf]
  %v133 = vld [vmem:[%s1 + $0x110] sm:$0xf]
  %v134 = vld [vmem:[%s1 + $0x114] sm:$0xf]
  %v135 = vld [vmem:[%s1 + $0x118] sm:$0xf]
  %v136 = vld [vmem:[%s1 + $0x11c] sm:$0xf]
  %v137 = vld [vmem:[%s1 + $0x120] sm:$0xf]
  %v138 = vld [vmem:[%s1 + $0x124] sm:$0xf]
  %v139 = vld [vmem:[%s1 + $0x128] sm:$0xf]
  %v140 = vld [vmem:[%s1 + $0x12c] sm:$0xf]
  %v141 = vld [vmem:[%s1 + $0x130] sm:$0xf]
  %v142 = vld [vmem:[%s1 + $0x134] sm:$0xf]
  %v143 = vld [vmem:[%s1 + $0x138] sm:$0xf]
  %v144 = vld [vmem:[%s1 + $0x13c] sm:$0xf]
  %v145 = vld [vmem:[%s1 + $0x140] sm:$0xf]
  %v146 = vld [vmem:[%s1 + $0x144] sm:$0xf]
  %v147 = vld [vmem:[%s1 + $0x148] sm:$0xf]
  %v148 = vld [vmem:[%s1 + $0x14c] sm:$0xf]
  %v149 = vld [vmem:[%s1 + $0x150] sm:$0xf]
  %v150 = vld [vmem:[%s1 + $0x154] sm:$0xf]
  %v151 = vld [vmem:[%s1 + $0x158] sm:$0xf]
  %v152 = vld [vmem:[%s1 + $0x15c] sm:$0xf]
  %v153 = vld [vmem:[%s1 + $0x160] sm:$0xf]
  %v154 = vld [vmem:[%s1 + $0x164] sm:$0xf]
  %v155 = vld [vmem:[%s1 + $0x168] sm:$0xf]
  %v156 = vld [vmem:[%s1 + $0x16c] sm:$0xf]
  %v157 = vld [vmem:[%s1 + $0x170] sm:$0xf]
  %v158 = vld [vmem:[%s1 + $0x174] sm:$0xf]
  %v159 = vld [vmem:[%s1 + $0x178] sm:$0xf]
  %v160 = vld [vmem:[%s1 + $0x17c] sm:$0xf]
  %v161 = vld [vmem:[%s2] sm:$0xff]
  %v162 = vld [vmem:[%s2 + $0x8] sm:$0x3]
  %v169 = vunpack.c.l.b16 %v59
  %v170 = vunpack.c.h.b16 %v59
  %v171 = vunpack.c.l.b16 %v60
  %v172 = vunpack.c.h.b16 %v60
  %v173 = vunpack.c.l.b16 %v61
  %v174 = vunpack.c.h.b16 %v61
  %v175 = vunpack.c.l.b16 %v62
  %v176 = vunpack.c.h.b16 %v62
  %v177 = vunpack.c.l.b16 %v63
  %v178 = vunpack.c.h.b16 %v63
  %v179 = vunpack.c.l.b16 %v64
  %v180 = vunpack.c.h.b16 %v64
  %v181 = vpack.c.b16 %v175, %v169
  %v182 = vpack.c.b16 %v176, %v170
  %v183 = vpack.c.b16 %v177, %v171
  %v184 = vpack.c.b16 %v178, %v172
  %v185 = vpack.c.b16 %v179, %v173
  %v186 = vpack.c.b16 %v180, %v174
  %v289 = vunpack.c.l.b16 %v65
  %v290 = vunpack.c.l.b16 %v66
  %v291 = vunpack.c.l.b16 %v67
  %v292 = vunpack.c.l.b16 %v68
  %v293 = vunpack.c.l.b16 %v69
  %v294 = vunpack.c.l.b16 %v70
  %v295 = vunpack.c.l.b16 %v71
  %v296 = vunpack.c.l.b16 %v72
  %v297 = vunpack.c.l.b16 %v73
  %v298 = vunpack.c.l.b16 %v74
  %v299 = vunpack.c.l.b16 %v75
  %v300 = vunpack.c.l.b16 %v76
  %v301 = vunpack.c.l.b16 %v77
  %v302 = vunpack.c.l.b16 %v78
  %v303 = vunpack.c.l.b16 %v79
  %v304 = vunpack.c.l.b16 %v80
  %v305 = vunpack.c.l.b16 %v81
  %v306 = vunpack.c.l.b16 %v82
  %v307 = vunpack.c.l.b16 %v83
  %v308 = vunpack.c.l.b16 %v84
  %v309 = vunpack.c.l.b16 %v85
  %v310 = vunpack.c.l.b16 %v86
  %v311 = vunpack.c.l.b16 %v87
  %v312 = vunpack.c.l.b16 %v88
  %v313 = vunpack.c.l.b16 %v89
  %v314 = vunpack.c.l.b16 %v90
  %v315 = vunpack.c.l.b16 %v91
  %v316 = vunpack.c.l.b16 %v92
  %v317 = vunpack.c.l.b16 %v93
  %v318 = vunpack.c.l.b16 %v94
  %v319 = vunpack.c.l.b16 %v95
  %v320 = vunpack.c.l.b16 %v96
  %v321 = vunpack.c.l.b16 %v97
  %v322 = vunpack.c.l.b16 %v98
  %v323 = vunpack.c.l.b16 %v99
  %v324 = vunpack.c.l.b16 %v100
  %v325 = vunpack.c.l.b16 %v101
  %v326 = vunpack.c.l.b16 %v102
  %v327 = vunpack.c.l.b16 %v103
  %v328 = vunpack.c.l.b16 %v104
  %v329 = vunpack.c.l.b16 %v105
  %v330 = vunpack.c.l.b16 %v106
  %v331 = vunpack.c.l.b16 %v107
  %v332 = vunpack.c.l.b16 %v108
  %v333 = vunpack.c.l.b16 %v109
  %v334 = vunpack.c.l.b16 %v110
  %v335 = vunpack.c.l.b16 %v111
  %v336 = vunpack.c.l.b16 %v112
  %v337 = vunpack.c.l.b16 %v113
  %v338 = vunpack.c.l.b16 %v114
  %v339 = vunpack.c.l.b16 %v115
  %v340 = vunpack.c.l.b16 %v116
  %v341 = vunpack.c.l.b16 %v117
  %v342 = vunpack.c.l.b16 %v118
  %v343 = vunpack.c.l.b16 %v119
  %v344 = vunpack.c.l.b16 %v120
  %v345 = vunpack.c.l.b16 %v121
  %v346 = vunpack.c.l.b16 %v122
  %v347 = vunpack.c.l.b16 %v123
  %v348 = vunpack.c.l.b16 %v124
  %v349 = vunpack.c.l.b16 %v125
  %v350 = vunpack.c.l.b16 %v126
  %v351 = vunpack.c.l.b16 %v127
  %v352 = vunpack.c.l.b16 %v128
  %v353 = vunpack.c.l.b16 %v129
  %v354 = vunpack.c.l.b16 %v130
  %v355 = vunpack.c.l.b16 %v131
  %v356 = vunpack.c.l.b16 %v132
  %v357 = vunpack.c.l.b16 %v133
  %v358 = vunpack.c.l.b16 %v134
  %v359 = vunpack.c.l.b16 %v135
  %v360 = vunpack.c.l.b16 %v136
  %v361 = vunpack.c.l.b16 %v137
  %v362 = vunpack.c.l.b16 %v138
  %v363 = vunpack.c.l.b16 %v139
  %v364 = vunpack.c.l.b16 %v140
  %v365 = vunpack.c.l.b16 %v141
  %v366 = vunpack.c.l.b16 %v142
  %v367 = vunpack.c.l.b16 %v143
  %v368 = vunpack.c.l.b16 %v144
  %v369 = vunpack.c.l.b16 %v145
  %v370 = vunpack.c.l.b16 %v146
  %v371 = vunpack.c.l.b16 %v147
  %v372 = vunpack.c.l.b16 %v148
  %v373 = vunpack.c.l.b16 %v149
  %v374 = vunpack.c.l.b16 %v150
  %v375 = vunpack.c.l.b16 %v151
  %v376 = vunpack.c.l.b16 %v152
  %v377 = vunpack.c.l.b16 %v153
  %v378 = vunpack.c.l.b16 %v154
  %v379 = vunpack.c.l.b16 %v155
  %v380 = vunpack.c.l.b16 %v156
  %v381 = vunpack.c.l.b16 %v157
  %v382 = vunpack.c.l.b16 %v158
  %v383 = vunpack.c.l.b16 %v159
  %v384 = vunpack.c.l.b16 %v160
  %v385 = vpack.c.b16 %v290, %v289
  %v386 = vpack.c.b16 %v292, %v291
  %v387 = vpack.c.b16 %v294, %v293
  %v388 = vpack.c.b16 %v296, %v295
  %v389 = vpack.c.b16 %v298, %v297
  %v390 = vpack.c.b16 %v300, %v299
  %v391 = vpack.c.b16 %v302, %v301
  %v392 = vpack.c.b16 %v304, %v303
  %v393 = vpack.c.b16 %v306, %v305
  %v394 = vpack.c.b16 %v308, %v307
  %v395 = vpack.c.b16 %v310, %v309
  %v396 = vpack.c.b16 %v312, %v311
  %v397 = vpack.c.b16 %v314, %v313
  %v398 = vpack.c.b16 %v316, %v315
  %v399 = vpack.c.b16 %v318, %v317
  %v400 = vpack.c.b16 %v320, %v319
  %v401 = vpack.c.b16 %v322, %v321
  %v402 = vpack.c.b16 %v324, %v323
  %v403 = vpack.c.b16 %v326, %v325
  %v404 = vpack.c.b16 %v328, %v327
  %v405 = vpack.c.b16 %v330, %v329
  %v406 = vpack.c.b16 %v332, %v331
  %v407 = vpack.c.b16 %v334, %v333
  %v408 = vpack.c.b16 %v336, %v335
  %v409 = vpack.c.b16 %v338, %v337
  %v410 = vpack.c.b16 %v340, %v339
  %v411 = vpack.c.b16 %v342, %v341
  %v412 = vpack.c.b16 %v344, %v343
  %v413 = vpack.c.b16 %v346, %v345
  %v414 = vpack.c.b16 %v348, %v347
  %v415 = vpack.c.b16 %v350, %v349
  %v416 = vpack.c.b16 %v352, %v351
  %v417 = vpack.c.b16 %v354, %v353
  %v418 = vpack.c.b16 %v356, %v355
  %v419 = vpack.c.b16 %v358, %v357
  %v420 = vpack.c.b16 %v360, %v359
  %v421 = vpack.c.b16 %v362, %v361
  %v422 = vpack.c.b16 %v364, %v363
  %v423 = vpack.c.b16 %v366, %v365
  %v424 = vpack.c.b16 %v368, %v367
  %v425 = vpack.c.b16 %v370, %v369
  %v426 = vpack.c.b16 %v372, %v371
  %v427 = vpack.c.b16 %v374, %v373
  %v428 = vpack.c.b16 %v376, %v375
  %v429 = vpack.c.b16 %v378, %v377
  %v430 = vpack.c.b16 %v380, %v379
  %v431 = vpack.c.b16 %v382, %v381
  %v432 = vpack.c.b16 %v384, %v383
  %481 = vmatprep.subr.bf16.mxu0 0
  %482 = vmatpush1.bf16.msra.mxu0 %v385
  %483 = vmatprep.subr.bf16.mxu0 0
  %484 = vmatpush1.bf16.msra.mxu0 %v386
  %485 = vmatprep.subr.bf16.mxu0 0
  %486 = vmatpush1.bf16.msra.mxu0 %v387
  %487 = vmatprep.subr.bf16.mxu0 0
  %488 = vmatpush1.bf16.msra.mxu0 %v388
  %489 = vmatprep.subr.bf16.mxu0 0
  %490 = vmatpush1.bf16.msra.mxu0 %v389
  %491 = vmatprep.subr.bf16.mxu0 0
  %492 = vmatpush1.bf16.msra.mxu0 %v390
  %493 = vmatprep.subr.bf16.mxu0 0
  %494 = vmatpush1.bf16.msra.mxu0 %v391
  %495 = vmatprep.subr.bf16.mxu0 0
  %496 = vmatpush1.bf16.msra.mxu0 %v392
  %497 = vmatprep.subr.bf16.mxu0 0
  %498 = vmatpush1.bf16.msra.mxu0 %v393
  %499 = vmatprep.subr.bf16.mxu0 0
  %500 = vmatpush1.bf16.msra.mxu0 %v394
  %501 = vmatprep.subr.bf16.mxu0 0
  %502 = vmatpush1.bf16.msra.mxu0 %v395
  %503 = vmatprep.subr.bf16.mxu0 0
  %504 = vmatpush1.bf16.msra.mxu0 %v396
  %505 = vmatprep.subr.bf16.mxu0 0
  %506 = vmatpush1.bf16.msra.mxu0 %v397
  %507 = vmatprep.subr.bf16.mxu0 0
  %508 = vmatpush1.bf16.msra.mxu0 %v398
  %509 = vmatprep.subr.bf16.mxu0 0
  %510 = vmatpush1.bf16.msra.mxu0 %v399
  %511 = vmatprep.subr.bf16.mxu0 0
  %512 = vmatpush1.bf16.msra.mxu0 %v400
  %513 = vmatprep.mubr.bf16.mxu0 %v182
  %514 = vmatmul.mubr.bf16.gmra.mrb[0].mxu0 %v181
  %v515 = vpop.f32.mrb[0].mxu0
  %v516 = vadd.f32 %v161, %v515
  %v517 = vpop.f32.mrb[0].mxu0
  %v518 = vpop.f32.mrb[0].mxu0
  %v519 = vadd.f32 %v162, %v518
  %v520 = vpop.f32.mrb[0].mxu0
  %521 = vdwg.mxu0
  %522 = vmatprep.subr.bf16.mxu0 0
  %523 = vmatpush1.bf16.msra.mxu0 %v401
  %524 = vmatprep.subr.bf16.mxu0 0
  %525 = vmatpush1.bf16.msra.mxu0 %v402
  %526 = vmatprep.subr.bf16.mxu0 0
  %527 = vmatpush1.bf16.msra.mxu0 %v403
  %528 = vmatprep.subr.bf16.mxu0 0
  %529 = vmatpush1.bf16.msra.mxu0 %v404
  %530 = vmatprep.subr.bf16.mxu0 0
  %531 = vmatpush1.bf16.msra.mxu0 %v405
  %532 = vmatprep.subr.bf16.mxu0 0
  %533 = vmatpush1.bf16.msra.mxu0 %v406
  %534 = vmatprep.subr.bf16.mxu0 0
  %535 = vmatpush1.bf16.msra.mxu0 %v407
  %536 = vmatprep.subr.bf16.mxu0 0
  %537 = vmatpush1.bf16.msra.mxu0 %v408
  %538 = vmatprep.subr.bf16.mxu0 0
  %539 = vmatpush1.bf16.msra.mxu0 %v409
  %540 = vmatprep.subr.bf16.mxu0 0
  %541 = vmatpush1.bf16.msra.mxu0 %v410
  %542 = vmatprep.subr.bf16.mxu0 0
  %543 = vmatpush1.bf16.msra.mxu0 %v411
  %544 = vmatprep.subr.bf16.mxu0 0
  %545 = vmatpush1.bf16.msra.mxu0 %v412
  %546 = vmatprep.subr.bf16.mxu0 0
  %547 = vmatpush1.bf16.msra.mxu0 %v413
  %548 = vmatprep.subr.bf16.mxu0 0
  %549 = vmatpush1.bf16.msra.mxu0 %v414
  %550 = vmatprep.subr.bf16.mxu0 0
  %551 = vmatpush1.bf16.msra.mxu0 %v415
  %552 = vmatprep.subr.bf16.mxu0 0
  %553 = vmatpush1.bf16.msra.mxu0 %v416
  %554 = vmatprep.mubr.bf16.mxu0 %v184
  %555 = vmatmul.mubr.bf16.gmra.mrb[0].mxu0 %v183
  %v556 = vpop.f32.mrb[0].mxu0
  %v557 = vadd.f32 %v516, %v556
  %v558 = vpop.f32.mrb[0].mxu0
  %v559 = vpop.f32.mrb[0].mxu0
  %v560 = vadd.f32 %v519, %v559
  %v561 = vpop.f32.mrb[0].mxu0
  %562 = vdwg.mxu0
  %563 = vmatprep.subr.bf16.mxu0 0
  %564 = vmatpush1.bf16.msra.mxu0 %v417
  %565 = vmatprep.subr.bf16.mxu0 0
  %566 = vmatpush1.bf16.msra.mxu0 %v418
  %567 = vmatprep.subr.bf16.mxu0 0
  %568 = vmatpush1.bf16.msra.mxu0 %v419
  %569 = vmatprep.subr.bf16.mxu0 0
  %570 = vmatpush1.bf16.msra.mxu0 %v420
  %571 = vmatprep.subr.bf16.mxu0 0
  %572 = vmatpush1.bf16.msra.mxu0 %v421
  %573 = vmatprep.subr.bf16.mxu0 0
  %574 = vmatpush1.bf16.msra.mxu0 %v422
  %575 = vmatprep.subr.bf16.mxu0 0
  %576 = vmatpush1.bf16.msra.mxu0 %v423
  %577 = vmatprep.subr.bf16.mxu0 0
  %578 = vmatpush1.bf16.msra.mxu0 %v424
  %579 = vmatprep.subr.bf16.mxu0 0
  %580 = vmatpush1.bf16.msra.mxu0 %v425
  %581 = vmatprep.subr.bf16.mxu0 0
  %582 = vmatpush1.bf16.msra.mxu0 %v426
  %583 = vmatprep.subr.bf16.mxu0 0
  %584 = vmatpush1.bf16.msra.mxu0 %v427
  %585 = vmatprep.subr.bf16.mxu0 0
  %586 = vmatpush1.bf16.msra.mxu0 %v428
  %587 = vmatprep.subr.bf16.mxu0 0
  %588 = vmatpush1.bf16.msra.mxu0 %v429
  %589 = vmatprep.subr.bf16.mxu0 0
  %590 = vmatpush1.bf16.msra.mxu0 %v430
  %591 = vmatprep.subr.bf16.mxu0 0
  %592 = vmatpush1.bf16.msra.mxu0 %v431
  %593 = vmatprep.subr.bf16.mxu0 0
  %594 = vmatpush1.bf16.msra.mxu0 %v432
  %595 = vmatprep.mubr.bf16.mxu0 %v186
  %596 = vmatmul.mubr.bf16.gmra.mrb[0].mxu0 %v185
  %v597 = vpop.f32.mrb[0].mxu0
  %v598 = vadd.f32 %v557, %v597
  %v599 = vpop.f32.mrb[0].mxu0
  %v600 = vpop.f32.mrb[0].mxu0
  %v601 = vadd.f32 %v560, %v600
  %v602 = vpop.f32.mrb[0].mxu0
  %603 = vdwg.mxu0
  %v604 = vld [vmem:[%s3] sm:$0x3]
  %vm605 = vcmask 523264
  %v606 = vsel %vm605, %v598, 0.0
  %607 = vadd.xlane.f32.xlu0 %v606
  %v608 = vpop.xlane.xlu0 %607
  %vm609 = vcmask 517120
  %v610 = vsel %vm609, %v601, 0.0
  %611 = vadd.xlane.f32.xlu0 %v610
  %v612 = vpop.xlane.xlu0 %611
  %v613 = vrcp.pop 64.0
  %v614 = vmul.f32 %v608, %v613
  %v615 = vmul.f32 %v612, %v613
  %v616 = vsub.f32 %v598, %v614
  %v617 = vsub.f32 %v601, %v615
  %v618 = vmul.f32 %v616, %v616
  %v619 = vmul.f32 %v617, %v617
  %v620 = vsel %vm605, %v618, 0.0
  %621 = vadd.xlane.f32.xlu0 %v620
  %v622 = vpop.xlane.xlu0 %621
  %v623 = vsel %vm609, %v619, 0.0
  %624 = vadd.xlane.f32.xlu0 %v623
  %v625 = vpop.xlane.xlu0 %624
  %v626 = vmul.f32 %v622, %v613
  %v627 = vmul.f32 %v625, %v613
  %v628 = vadd.f32 %v626, 1e-05
  %v629 = vadd.f32 %v627, 1e-05
  %v630 = vrsqrt.pop %v628
  %v631 = vrsqrt.pop %v629
  %v632 = vmul.f32 %v616, %v630
  %v633 = vmul.f32 %v617, %v631
  %v634 = vlaneseq
  %v635 = vshrl.u32 %v634, 7
  %v636 = vsub.s32 0, %v635
  %v637 = vrot.slane %v604, %v636
  %v638 = vmul.f32 %v632, %v637
  %v639 = vmul.f32 %v633, %v637
  %v640 = vlaneseq
  %v641 = vshrl.u32 %v640, 7
  %v642 = vsub.s32 1, %v641
  %v643 = vrot.slane %v604, %v642
  %v644 = vadd.f32 %v638, %v643
  %v645 = vadd.f32 %v639, %v643
  %v646 = vld [vmem:[%s8] sm:$0x3]
  %v647 = vsel %vm605, %v644, 0.0
  %648 = vadd.xlane.f32.xlu0 %v647
  %v649 = vpop.xlane.xlu0 %648
  %v650 = vsel %vm609, %v645, 0.0
  %651 = vadd.xlane.f32.xlu0 %v650
  %v652 = vpop.xlane.xlu0 %651
  %v653 = vmul.f32 %v649, %v613
  %v654 = vmul.f32 %v652, %v613
  %v655 = vsub.f32 %v644, %v653
  %v656 = vsub.f32 %v645, %v654
  %v657 = vmul.f32 %v655, %v655
  %v658 = vmul.f32 %v656, %v656
  %v659 = vsel %vm605, %v657, 0.0
  %660 = vadd.xlane.f32.xlu0 %v659
  %v661 = vpop.xlane.xlu0 %660
  %v662 = vsel %vm609, %v658, 0.0
  %663 = vadd.xlane.f32.xlu0 %v662
  %v664 = vpop.xlane.xlu0 %663
  %v665 = vmul.f32 %v661, %v613
  %v666 = vmul.f32 %v664, %v613
  %v667 = vadd.f32 %v665, 1e-05
  %v668 = vadd.f32 %v666, 1e-05
  %v669 = vrsqrt.pop %v667
  %v670 = vrsqrt.pop %v668
  %v671 = vmul.f32 %v655, %v669
  %v672 = vmul.f32 %v656, %v670
  %v673 = vlaneseq
  %v674 = vshrl.u32 %v673, 7
  %v675 = vsub.s32 0, %v674
  %v676 = vrot.slane %v646, %v675
  %v677 = vmul.f32 %v671, %v676
  %v678 = vmul.f32 %v672, %v676
  %v679 = vlaneseq
  %v680 = vshrl.u32 %v679, 7
  %v681 = vsub.s32 1, %v680
  %v682 = vrot.slane %v646, %v681
  %v683 = vadd.f32 %v677, %v682
  %v684 = vadd.f32 %v678, %v682
  %v685 = vld [vmem:[%s4] sm:$0xff]
  %v686 = vld [vmem:[%s4 + $0x8] sm:$0xff]
  %v687 = vld [vmem:[%s4 + $0x10] sm:$0xff]
  %v688 = vld [vmem:[%s4 + $0x18] sm:$0xff]
  %v689 = vld [vmem:[%s4 + $0x20] sm:$0xff]
  %v690 = vld [vmem:[%s4 + $0x28] sm:$0xff]
  %v691 = vld [vmem:[%s4 + $0x30] sm:$0xff]
  %v692 = vld [vmem:[%s4 + $0x38] sm:$0xff]
  %v693 = vpack.c.bf16 %v684, %v683
  %v694 = vld [vmem:[%s5] sm:$0x3]
  %v696 = vlaneseq
  %v697 = vshrl.u32 %v696, 7
  %v698 = vsub.s32 0, %v697
  %v699 = vrot.slane %v694, %v698
  %v700 = vlaneseq
  %v701 = vshrl.u32 %v700, 7
  %v702 = vsub.s32 1, %v701
  %v703 = vrot.slane %v694, %v702
  %v714 = vunpack.c.l.b16 %v685
  %v715 = vunpack.c.h.b16 %v685
  %v716 = vunpack.c.l.b16 %v686
  %v717 = vunpack.c.h.b16 %v686
  %v718 = vunpack.c.l.b16 %v687
  %v719 = vunpack.c.h.b16 %v687
  %v720 = vunpack.c.l.b16 %v688
  %v721 = vunpack.c.h.b16 %v688
  %v722 = vunpack.c.l.b16 %v689
  %v723 = vunpack.c.h.b16 %v689
  %v724 = vunpack.c.l.b16 %v690
  %v725 = vunpack.c.h.b16 %v690
  %v726 = vunpack.c.l.b16 %v691
  %v727 = vunpack.c.h.b16 %v691
  %v728 = vunpack.c.l.b16 %v692
  %v729 = vunpack.c.h.b16 %v692
  %v730 = vpack.c.b16 %v716, %v714
  %v731 = vpack.c.b16 %v717, %v715
  %v732 = vpack.c.b16 %v720, %v718
  %v733 = vpack.c.b16 %v721, %v719
  %v734 = vpack.c.b16 %v724, %v722
  %v735 = vpack.c.b16 %v725, %v723
  %v736 = vpack.c.b16 %v728, %v726
  %v737 = vpack.c.b16 %v729, %v727
  %v747 = vsel %vm605, %v693, 0
  %749 = vmatprep.subr.bf16.mxu0 %v731
  %750 = vmatpush1.bf16.msra.mxu0 %v730
  %751 = vmatprep.subr.bf16.mxu0 %v733
  %752 = vmatpush1.bf16.msra.mxu0 %v732
  %753 = vmatprep.subr.bf16.mxu0 %v735
  %754 = vmatpush1.bf16.msra.mxu0 %v734
  %755 = vmatprep.subr.bf16.mxu0 %v737
  %756 = vmatpush1.bf16.msra.mxu0 %v736
  %757 = vmatprep.subr.bf16.mxu0 0
  %758 = vmatpush1.bf16.msra.mxu0 0
  %759 = vmatprep.subr.bf16.mxu0 0
  %760 = vmatpush1.bf16.msra.mxu0 0
  %761 = vmatprep.subr.bf16.mxu0 0
  %762 = vmatpush1.bf16.msra.mxu0 0
  %763 = vmatprep.subr.bf16.mxu0 0
  %764 = vmatpush1.bf16.msra.mxu0 0
  %765 = vmatprep.subr.bf16.mxu0 0
  %766 = vmatpush1.bf16.msra.mxu0 0
  %767 = vmatprep.subr.bf16.mxu0 0
  %768 = vmatpush1.bf16.msra.mxu0 0
  %769 = vmatprep.subr.bf16.mxu0 0
  %770 = vmatpush1.bf16.msra.mxu0 0
  %771 = vmatprep.subr.bf16.mxu0 0
  %772 = vmatpush1.bf16.msra.mxu0 0
  %773 = vmatprep.subr.bf16.mxu0 0
  %774 = vmatpush1.bf16.msra.mxu0 0
  %775 = vmatprep.subr.bf16.mxu0 0
  %776 = vmatpush1.bf16.msra.mxu0 0
  %777 = vmatprep.subr.bf16.mxu0 0
  %778 = vmatpush1.bf16.msra.mxu0 0
  %779 = vmatprep.subr.bf16.mxu0 0
  %780 = vmatpush1.bf16.msra.mxu0 0
  %781 = vmatprep.mubr.bf16.mxu0 0
  %782 = vmatmul.mubr.bf16.gmra.mrb[0].mxu0 %v747
  %v783 = vpop.f32.mrb[0].mxu0
  %v784 = vadd.f32 %v699, %v783
  %v785 = vpop.f32.mrb[0].mxu0
  %v786 = vadd.f32 %v703, %v785
  %v787 = vpop.f32.mrb[0].mxu0
  %v788 = vadd.f32 %v699, %v787
  %v789 = vpop.f32.mrb[0].mxu0
  %v790 = vadd.f32 %v703, %v789
  %791 = vdwg.mxu0
  %v792 = vpack.c.bf16 %v784, %v784
  %794 = vrot.lane.b32.xlu0 %v792, 64
  %v795 = vpop.permute.xlu0 %794
  %vm796 = vcmask 261120
  %v798 = vsel %vm796, %v792, 0
  %v801 = vsel %vm796, %v795, 0
  %803 = vmatprep.subr.bf16.mxu0 0
  %804 = vmatpush1.bf16.xpose.msra.mxu0 %v801
  %805 = vmatprep.subr.bf16.mxu0 0
  %806 = vmatpush1.bf16.xpose.msra.mxu0 0
  %807 = vmatprep.subr.bf16.mxu0 0
  %808 = vmatpush1.bf16.xpose.msra.mxu0 0
  %809 = vmatprep.subr.bf16.mxu0 0
  %810 = vmatpush1.bf16.xpose.msra.mxu0 0
  %811 = vmatprep.subr.bf16.mxu0 0
  %812 = vmatpush1.bf16.xpose.msra.mxu0 0
  %813 = vmatprep.subr.bf16.mxu0 0
  %814 = vmatpush1.bf16.xpose.msra.mxu0 0
  %815 = vmatprep.subr.bf16.mxu0 0
  %816 = vmatpush1.bf16.xpose.msra.mxu0 0
  %817 = vmatprep.subr.bf16.mxu0 0
  %818 = vmatpush1.bf16.xpose.msra.mxu0 0
  %819 = vmatprep.subr.bf16.mxu0 0
  %820 = vmatpush1.bf16.xpose.msra.mxu0 0
  %821 = vmatprep.subr.bf16.mxu0 0
  %822 = vmatpush1.bf16.xpose.msra.mxu0 0
  %823 = vmatprep.subr.bf16.mxu0 0
  %824 = vmatpush1.bf16.xpose.msra.mxu0 0
  %825 = vmatprep.subr.bf16.mxu0 0
  %826 = vmatpush1.bf16.xpose.msra.mxu0 0
  %827 = vmatprep.subr.bf16.mxu0 0
  %828 = vmatpush1.bf16.xpose.msra.mxu0 0
  %829 = vmatprep.subr.bf16.mxu0 0
  %830 = vmatpush1.bf16.xpose.msra.mxu0 0
  %831 = vmatprep.subr.bf16.mxu0 0
  %832 = vmatpush1.bf16.xpose.msra.mxu0 0
  %833 = vmatprep.subr.bf16.mxu0 0
  %834 = vmatpush1.bf16.xpose.msra.mxu0 0
  %835 = vmatprep.mubr.bf16.mxu0 0
  %836 = vmatmul.mubr.bf16.gmra.mrb[0].mxu0 %v798
  %v837 = vpop.f32.mrb[0].mxu0
  %v838 = vadd.f32 0.0, %v837
  %v839 = vpop.f32.mrb[0].mxu0
  %v840 = vpop.f32.mrb[0].mxu0
  %v841 = vpop.f32.mrb[0].mxu0
  %842 = vdwg.mxu0
  %v843 = vmul.f32 %v838, 0.17677669
  %vm844 = vcmask 36864
  %v845 = vsel %vm844, %v843, -inf
  %846 = vmax.xlane.f32.xlu0 %v845
  %v847 = vpop.xlane.xlu0 %846
  %v848 = vsub.f32 %v843, %v847
  %v849 = vmul.f32 %v848, 1.442695
  %v850 = vpow.pop %v849
  %v851 = vsel %vm844, %v850, 0.0
  %852 = vadd.xlane.f32.xlu0 %v851
  %v853 = vpop.xlane.xlu0 %852
  %v854 = vrcp.pop %v853
  %v855 = vmul.f32 %v850, %v854
  %v856 = vpack.c.bf16 %v855, %v855
  %v857 = vpack.c.bf16 %v786, %v786
  %vm858 = vcmask 39936
  %v860 = vsel %vm858, %v856, 0
  %vm862 = vcmask 1041408
  %vm863 = vcmask 1042432
  %v864 = vsel %vm862, 4294967295, 65535
  %v865 = vsel %vm863, %v864, 0
  %v867 = vand.u32 %v857, %v865
  %869 = vmatprep.subr.bf16.mxu0 0
  %870 = vmatpush1.bf16.msra.mxu0 %v867
  %871 = vmatprep.subr.bf16.mxu0 0
  %872 = vmatpush1.bf16.msra.mxu0 0
  %873 = vmatprep.subr.bf16.mxu0 0
  %874 = vmatpush1.bf16.msra.mxu0 0
  %875 = vmatprep.subr.bf16.mxu0 0
  %876 = vmatpush1.bf16.msra.mxu0 0
  %877 = vmatprep.subr.bf16.mxu0 0
  %878 = vmatpush1.bf16.msra.mxu0 0
  %879 = vmatprep.subr.bf16.mxu0 0
  %880 = vmatpush1.bf16.msra.mxu0 0
  %881 = vmatprep.subr.bf16.mxu0 0
  %882 = vmatpush1.bf16.msra.mxu0 0
  %883 = vmatprep.subr.bf16.mxu0 0
  %884 = vmatpush1.bf16.msra.mxu0 0
  %885 = vmatprep.subr.bf16.mxu0 0
  %886 = vmatpush1.bf16.msra.mxu0 0
  %887 = vmatprep.subr.bf16.mxu0 0
  %888 = vmatpush1.bf16.msra.mxu0 0
  %889 = vmatprep.subr.bf16.mxu0 0
  %890 = vmatpush1.bf16.msra.mxu0 0
  %891 = vmatprep.subr.bf16.mxu0 0
  %892 = vmatpush1.bf16.msra.mxu0 0
  %893 = vmatprep.subr.bf16.mxu0 0
  %894 = vmatpush1.bf16.msra.mxu0 0
  %895 = vmatprep.subr.bf16.mxu0 0
  %896 = vmatpush1.bf16.msra.mxu0 0
  %897 = vmatprep.subr.bf16.mxu0 0
  %898 = vmatpush1.bf16.msra.mxu0 0
  %899 = vmatprep.subr.bf16.mxu0 0
  %900 = vmatpush1.bf16.msra.mxu0 0
  %901 = vmatprep.mubr.bf16.mxu0 0
  %902 = vmatmul.mubr.bf16.gmra.mrb[0].mxu0 %v860
  %v903 = vpop.f32.mrb[0].mxu0
  %v904 = vadd.f32 0.0, %v903
  %v905 = vpop.f32.mrb[0].mxu0
  %v906 = vpop.f32.mrb[0].mxu0
  %v907 = vpop.f32.mrb[0].mxu0
  %908 = vdwg.mxu0
  %909 = vrot.lane.b32.xlu0 %v792, 96
  %v910 = vpop.permute.xlu0 %909
  %911 = vrot.lane.b32.xlu0 %v792, 32
  %v912 = vpop.permute.xlu0 %911
  %v914 = vsel %vm796, %v910, 0
  %v917 = vsel %vm796, %v912, 0
  %919 = vmatprep.subr.bf16.mxu0 0
  %920 = vmatpush1.bf16.xpose.msra.mxu0 %v917
  %921 = vmatprep.subr.bf16.mxu0 0
  %922 = vmatpush1.bf16.xpose.msra.mxu0 0
  %923 = vmatprep.subr.bf16.mxu0 0
  %924 = vmatpush1.bf16.xpose.msra.mxu0 0
  %925 = vmatprep.subr.bf16.mxu0 0
  %926 = vmatpush1.bf16.xpose.msra.mxu0 0
  %927 = vmatprep.subr.bf16.mxu0 0
  %928 = vmatpush1.bf16.xpose.msra.mxu0 0
  %929 = vmatprep.subr.bf16.mxu0 0
  %930 = vmatpush1.bf16.xpose.msra.mxu0 0
  %931 = vmatprep.subr.bf16.mxu0 0
  %932 = vmatpush1.bf16.xpose.msra.mxu0 0
  %933 = vmatprep.subr.bf16.mxu0 0
  %934 = vmatpush1.bf16.xpose.msra.mxu0 0
  %935 = vmatprep.subr.bf16.mxu0 0
  %936 = vmatpush1.bf16.xpose.msra.mxu0 0
  %937 = vmatprep.subr.bf16.mxu0 0
  %938 = vmatpush1.bf16.xpose.msra.mxu0 0
  %939 = vmatprep.subr.bf16.mxu0 0
  %940 = vmatpush1.bf16.xpose.msra.mxu0 0
  %941 = vmatprep.subr.bf16.mxu0 0
  %942 = vmatpush1.bf16.xpose.msra.mxu0 0
  %943 = vmatprep.subr.bf16.mxu0 0
  %944 = vmatpush1.bf16.xpose.msra.mxu0 0
  %945 = vmatprep.subr.bf16.mxu0 0
  %946 = vmatpush1.bf16.xpose.msra.mxu0 0
  %947 = vmatprep.subr.bf16.mxu0 0
  %948 = vmatpush1.bf16.xpose.msra.mxu0 0
  %949 = vmatprep.subr.bf16.mxu0 0
  %950 = vmatpush1.bf16.xpose.msra.mxu0 0
  %951 = vmatprep.mubr.bf16.mxu0 0
  %952 = vmatmul.mubr.bf16.gmra.mrb[0].mxu0 %v914
  %v953 = vpop.f32.mrb[0].mxu0
  %v954 = vadd.f32 0.0, %v953
  %v955 = vpop.f32.mrb[0].mxu0
  %v956 = vpop.f32.mrb[0].mxu0
  %v957 = vpop.f32.mrb[0].mxu0
  %958 = vdwg.mxu0
  %v959 = vmul.f32 %v954, 0.17677669
  %v960 = vsel %vm844, %v959, -inf
  %961 = vmax.xlane.f32.xlu0 %v960
  %v962 = vpop.xlane.xlu0 %961
  %v963 = vsub.f32 %v959, %v962
  %v964 = vmul.f32 %v963, 1.442695
  %v965 = vpow.pop %v964
  %v966 = vsel %vm844, %v965, 0.0
  %967 = vadd.xlane.f32.xlu0 %v966
  %v968 = vpop.xlane.xlu0 %967
  %v969 = vrcp.pop %v968
  %v970 = vmul.f32 %v965, %v969
  %v971 = vpack.c.bf16 %v970, %v970
  %973 = vrot.lane.b32.xlu0 %v857, 96
  %v974 = vpop.permute.xlu0 %973
  %v976 = vsel %vm858, %v971, 0
  %v979 = vand.u32 %v974, %v865
  %981 = vmatprep.subr.bf16.mxu0 0
  %982 = vmatpush1.bf16.msra.mxu0 %v979
  %983 = vmatprep.subr.bf16.mxu0 0
  %984 = vmatpush1.bf16.msra.mxu0 0
  %985 = vmatprep.subr.bf16.mxu0 0
  %986 = vmatpush1.bf16.msra.mxu0 0
  %987 = vmatprep.subr.bf16.mxu0 0
  %988 = vmatpush1.bf16.msra.mxu0 0
  %989 = vmatprep.subr.bf16.mxu0 0
  %990 = vmatpush1.bf16.msra.mxu0 0
  %991 = vmatprep.subr.bf16.mxu0 0
  %992 = vmatpush1.bf16.msra.mxu0 0
  %993 = vmatprep.subr.bf16.mxu0 0
  %994 = vmatpush1.bf16.msra.mxu0 0
  %995 = vmatprep.subr.bf16.mxu0 0
  %996 = vmatpush1.bf16.msra.mxu0 0
  %997 = vmatprep.subr.bf16.mxu0 0
  %998 = vmatpush1.bf16.msra.mxu0 0
  %999 = vmatprep.subr.bf16.mxu0 0
  %1000 = vmatpush1.bf16.msra.mxu0 0
  %1001 = vmatprep.subr.bf16.mxu0 0
  %1002 = vmatpush1.bf16.msra.mxu0 0
  %1003 = vmatprep.subr.bf16.mxu0 0
  %1004 = vmatpush1.bf16.msra.mxu0 0
  %1005 = vmatprep.subr.bf16.mxu0 0
  %1006 = vmatpush1.bf16.msra.mxu0 0
  %1007 = vmatprep.subr.bf16.mxu0 0
  %1008 = vmatpush1.bf16.msra.mxu0 0
  %1009 = vmatprep.subr.bf16.mxu0 0
  %1010 = vmatpush1.bf16.msra.mxu0 0
  %1011 = vmatprep.subr.bf16.mxu0 0
  %1012 = vmatpush1.bf16.msra.mxu0 0
  %1013 = vmatprep.mubr.bf16.mxu0 0
  %1014 = vmatmul.mubr.bf16.gmra.mrb[0].mxu0 %v976
  %v1015 = vpop.f32.mrb[0].mxu0
  %v1016 = vadd.f32 0.0, %v1015
  %v1017 = vpop.f32.mrb[0].mxu0
  %v1018 = vpop.f32.mrb[0].mxu0
  %v1019 = vpop.f32.mrb[0].mxu0
  %1020 = vdwg.mxu0
  %1022 = vrot.lane.b32.xlu0 %v1016, 32
  %v1023 = vpop.permute.xlu0 %1022
  %v1025 = vsel %vm796, %v904, %v1023
  %v1026 = vpack.c.bf16 %v788, %v784
  %v1028 = vshrl.u32 %v1026, 16
  %v1030 = vrot.slane %v1028, 2
  %v1031 = vshll.u32 %v1026, 16
  %v1033 = vrot.slane %v1031, 3
  %v1034 = vor.u32 %v1030, %v1033
  %1035 = vrot.lane.b32.xlu0 %v1034, 64
  %v1036 = vpop.permute.xlu0 %1035
  %v1038 = vsel %vm796, %v1034, 0
  %v1041 = vsel %vm796, %v1036, 0
  %1043 = vmatprep.subr.bf16.mxu0 0
  %1044 = vmatpush1.bf16.xpose.msra.mxu0 %v1041
  %1045 = vmatprep.subr.bf16.mxu0 0
  %1046 = vmatpush1.bf16.xpose.msra.mxu0 0
  %1047 = vmatprep.subr.bf16.mxu0 0
  %1048 = vmatpush1.bf16.xpose.msra.mxu0 0
  %1049 = vmatprep.subr.bf16.mxu0 0
  %1050 = vmatpush1.bf16.xpose.msra.mxu0 0
  %1051 = vmatprep.subr.bf16.mxu0 0
  %1052 = vmatpush1.bf16.xpose.msra.mxu0 0
  %1053 = vmatprep.subr.bf16.mxu0 0
  %1054 = vmatpush1.bf16.xpose.msra.mxu0 0
  %1055 = vmatprep.subr.bf16.mxu0 0
  %1056 = vmatpush1.bf16.xpose.msra.mxu0 0
  %1057 = vmatprep.subr.bf16.mxu0 0
  %1058 = vmatpush1.bf16.xpose.msra.mxu0 0
  %1059 = vmatprep.subr.bf16.mxu0 0
  %1060 = vmatpush1.bf16.xpose.msra.mxu0 0
  %1061 = vmatprep.subr.bf16.mxu0 0
  %1062 = vmatpush1.bf16.xpose.msra.mxu0 0
  %1063 = vmatprep.subr.bf16.mxu0 0
  %1064 = vmatpush1.bf16.xpose.msra.mxu0 0
  %1065 = vmatprep.subr.bf16.mxu0 0
  %1066 = vmatpush1.bf16.xpose.msra.mxu0 0
  %1067 = vmatprep.subr.bf16.mxu0 0
  %1068 = vmatpush1.bf16.xpose.msra.mxu0 0
  %1069 = vmatprep.subr.bf16.mxu0 0
  %1070 = vmatpush1.bf16.xpose.msra.mxu0 0
  %1071 = vmatprep.subr.bf16.mxu0 0
  %1072 = vmatpush1.bf16.xpose.msra.mxu0 0
  %1073 = vmatprep.subr.bf16.mxu0 0
  %1074 = vmatpush1.bf16.xpose.msra.mxu0 0
  %1075 = vmatprep.mubr.bf16.mxu0 0
  %1076 = vmatmul.mubr.bf16.gmra.mrb[0].mxu0 %v1038
  %v1077 = vpop.f32.mrb[0].mxu0
  %v1078 = vadd.f32 0.0, %v1077
  %v1079 = vpop.f32.mrb[0].mxu0
  %v1080 = vpop.f32.mrb[0].mxu0
  %v1081 = vpop.f32.mrb[0].mxu0
  %1082 = vdwg.mxu0
  %v1083 = vmul.f32 %v1078, 0.17677669
  %v1084 = vsel %vm844, %v1083, -inf
  %1085 = vmax.xlane.f32.xlu0 %v1084
  %v1086 = vpop.xlane.xlu0 %1085
  %v1087 = vsub.f32 %v1083, %v1086
  %v1088 = vmul.f32 %v1087, 1.442695
  %v1089 = vpow.pop %v1088
  %v1090 = vsel %vm844, %v1089, 0.0
  %1091 = vadd.xlane.f32.xlu0 %v1090
  %v1092 = vpop.xlane.xlu0 %1091
  %v1093 = vrcp.pop %v1092
  %v1094 = vmul.f32 %v1089, %v1093
  %v1095 = vpack.c.bf16 %v1094, %v1094
  %v1096 = vpack.c.bf16 %v790, %v786
  %v1098 = vshrl.u32 %v1096, 16
  %v1100 = vrot.slane %v1098, 2
  %v1101 = vshll.u32 %v1096, 16
  %v1103 = vrot.slane %v1101, 3
  %v1104 = vor.u32 %v1100, %v1103
  %v1106 = vsel %vm858, %v1095, 0
  %v1109 = vand.u32 %v1104, %v865
  %1111 = vmatprep.subr.bf16.mxu0 0
  %1112 = vmatpush1.bf16.msra.mxu0 %v1109
  %1113 = vmatprep.subr.bf16.mxu0 0
  %1114 = vmatpush1.bf16.msra.mxu0 0
  %1115 = vmatprep.subr.bf16.mxu0 0
  %1116 = vmatpush1.bf16.msra.mxu0 0
  %1117 = vmatprep.subr.bf16.mxu0 0
  %1118 = vmatpush1.bf16.msra.mxu0 0
  %1119 = vmatprep.subr.bf16.mxu0 0
  %1120 = vmatpush1.bf16.msra.mxu0 0
  %1121 = vmatprep.subr.bf16.mxu0 0
  %1122 = vmatpush1.bf16.msra.mxu0 0
  %1123 = vmatprep.subr.bf16.mxu0 0
  %1124 = vmatpush1.bf16.msra.mxu0 0
  %1125 = vmatprep.subr.bf16.mxu0 0
  %1126 = vmatpush1.bf16.msra.mxu0 0
  %1127 = vmatprep.subr.bf16.mxu0 0
  %1128 = vmatpush1.bf16.msra.mxu0 0
  %1129 = vmatprep.subr.bf16.mxu0 0
  %1130 = vmatpush1.bf16.msra.mxu0 0
  %1131 = vmatprep.subr.bf16.mxu0 0
  %1132 = vmatpush1.bf16.msra.mxu0 0
  %1133 = vmatprep.subr.bf16.mxu0 0
  %1134 = vmatpush1.bf16.msra.mxu0 0
  %1135 = vmatprep.subr.bf16.mxu0 0
  %1136 = vmatpush1.bf16.msra.mxu0 0
  %1137 = vmatprep.subr.bf16.mxu0 0
  %1138 = vmatpush1.bf16.msra.mxu0 0
  %1139 = vmatprep.subr.bf16.mxu0 0
  %1140 = vmatpush1.bf16.msra.mxu0 0
  %1141 = vmatprep.subr.bf16.mxu0 0
  %1142 = vmatpush1.bf16.msra.mxu0 0
  %1143 = vmatprep.mubr.bf16.mxu0 0
  %1144 = vmatmul.mubr.bf16.gmra.mrb[0].mxu0 %v1106
  %v1145 = vpop.f32.mrb[0].mxu0
  %v1146 = vadd.f32 0.0, %v1145
  %v1147 = vpop.f32.mrb[0].mxu0
  %v1148 = vpop.f32.mrb[0].mxu0
  %v1149 = vpop.f32.mrb[0].mxu0
  %1150 = vdwg.mxu0
  %1151 = vrot.lane.b32.xlu0 %v1034, 96
  %v1152 = vpop.permute.xlu0 %1151
  %1153 = vrot.lane.b32.xlu0 %v1034, 32
  %v1154 = vpop.permute.xlu0 %1153
  %v1156 = vsel %vm796, %v1152, 0
  %v1159 = vsel %vm796, %v1154, 0
  %1161 = vmatprep.subr.bf16.mxu0 0
  %1162 = vmatpush1.bf16.xpose.msra.mxu0 %v1159
  %1163 = vmatprep.subr.bf16.mxu0 0
  %1164 = vmatpush1.bf16.xpose.msra.mxu0 0
  %1165 = vmatprep.subr.bf16.mxu0 0
  %1166 = vmatpush1.bf16.xpose.msra.mxu0 0
  %1167 = vmatprep.subr.bf16.mxu0 0
  %1168 = vmatpush1.bf16.xpose.msra.mxu0 0
  %1169 = vmatprep.subr.bf16.mxu0 0
  %1170 = vmatpush1.bf16.xpose.msra.mxu0 0
  %1171 = vmatprep.subr.bf16.mxu0 0
  %1172 = vmatpush1.bf16.xpose.msra.mxu0 0
  %1173 = vmatprep.subr.bf16.mxu0 0
  %1174 = vmatpush1.bf16.xpose.msra.mxu0 0
  %1175 = vmatprep.subr.bf16.mxu0 0
  %1176 = vmatpush1.bf16.xpose.msra.mxu0 0
  %1177 = vmatprep.subr.bf16.mxu0 0
  %1178 = vmatpush1.bf16.xpose.msra.mxu0 0
  %1179 = vmatprep.subr.bf16.mxu0 0
  %1180 = vmatpush1.bf16.xpose.msra.mxu0 0
  %1181 = vmatprep.subr.bf16.mxu0 0
  %1182 = vmatpush1.bf16.xpose.msra.mxu0 0
  %1183 = vmatprep.subr.bf16.mxu0 0
  %1184 = vmatpush1.bf16.xpose.msra.mxu0 0
  %1185 = vmatprep.subr.bf16.mxu0 0
  %1186 = vmatpush1.bf16.xpose.msra.mxu0 0
  %1187 = vmatprep.subr.bf16.mxu0 0
  %1188 = vmatpush1.bf16.xpose.msra.mxu0 0
  %1189 = vmatprep.subr.bf16.mxu0 0
  %1190 = vmatpush1.bf16.xpose.msra.mxu0 0
  %1191 = vmatprep.subr.bf16.mxu0 0
  %1192 = vmatpush1.bf16.xpose.msra.mxu0 0
  %1193 = vmatprep.mubr.bf16.mxu0 0
  %1194 = vmatmul.mubr.bf16.gmra.mrb[0].mxu0 %v1156
  %v1195 = vpop.f32.mrb[0].mxu0
  %v1196 = vadd.f32 0.0, %v1195
  %v1197 = vpop.f32.mrb[0].mxu0
  %v1198 = vpop.f32.mrb[0].mxu0
  %v1199 = vpop.f32.mrb[0].mxu0
  %1200 = vdwg.mxu0
  %v1201 = vmul.f32 %v1196, 0.17677669
  %v1202 = vsel %vm844, %v1201, -inf
  %1203 = vmax.xlane.f32.xlu0 %v1202
  %v1204 = vpop.xlane.xlu0 %1203
  %v1205 = vsub.f32 %v1201, %v1204
  %v1206 = vmul.f32 %v1205, 1.442695
  %v1207 = vpow.pop %v1206
  %v1208 = vsel %vm844, %v1207, 0.0
  %1209 = vadd.xlane.f32.xlu0 %v1208
  %v1210 = vpop.xlane.xlu0 %1209
  %v1211 = vrcp.pop %v1210
  %v1212 = vmul.f32 %v1207, %v1211
  %v1213 = vpack.c.bf16 %v1212, %v1212
  %1214 = vrot.lane.b32.xlu0 %v1104, 96
  %v1215 = vpop.permute.xlu0 %1214
  %v1217 = vsel %vm858, %v1213, 0
  %v1220 = vand.u32 %v1215, %v865
  %1222 = vmatprep.subr.bf16.mxu0 0
  %1223 = vmatpush1.bf16.msra.mxu0 %v1220
  %1224 = vmatprep.subr.bf16.mxu0 0
  %1225 = vmatpush1.bf16.msra.mxu0 0
  %1226 = vmatprep.subr.bf16.mxu0 0
  %1227 = vmatpush1.bf16.msra.mxu0 0
  %1228 = vmatprep.subr.bf16.mxu0 0
  %1229 = vmatpush1.bf16.msra.mxu0 0
  %1230 = vmatprep.subr.bf16.mxu0 0
  %1231 = vmatpush1.bf16.msra.mxu0 0
  %1232 = vmatprep.subr.bf16.mxu0 0
  %1233 = vmatpush1.bf16.msra.mxu0 0
  %1234 = vmatprep.subr.bf16.mxu0 0
  %1235 = vmatpush1.bf16.msra.mxu0 0
  %1236 = vmatprep.subr.bf16.mxu0 0
  %1237 = vmatpush1.bf16.msra.mxu0 0
  %1238 = vmatprep.subr.bf16.mxu0 0
  %1239 = vmatpush1.bf16.msra.mxu0 0
  %1240 = vmatprep.subr.bf16.mxu0 0
  %1241 = vmatpush1.bf16.msra.mxu0 0
  %1242 = vmatprep.subr.bf16.mxu0 0
  %1243 = vmatpush1.bf16.msra.mxu0 0
  %1244 = vmatprep.subr.bf16.mxu0 0
  %1245 = vmatpush1.bf16.msra.mxu0 0
  %1246 = vmatprep.subr.bf16.mxu0 0
  %1247 = vmatpush1.bf16.msra.mxu0 0
  %1248 = vmatprep.subr.bf16.mxu0 0
  %1249 = vmatpush1.bf16.msra.mxu0 0
  %1250 = vmatprep.subr.bf16.mxu0 0
  %1251 = vmatpush1.bf16.msra.mxu0 0
  %1252 = vmatprep.subr.bf16.mxu0 0
  %1253 = vmatpush1.bf16.msra.mxu0 0
  %1254 = vmatprep.mubr.bf16.mxu0 0
  %1255 = vmatmul.mubr.bf16.gmra.mrb[0].mxu0 %v1217
  %v1256 = vpop.f32.mrb[0].mxu0
  %v1257 = vadd.f32 0.0, %v1256
  %v1258 = vpop.f32.mrb[0].mxu0
  %v1259 = vpop.f32.mrb[0].mxu0
  %v1260 = vpop.f32.mrb[0].mxu0
  %1261 = vdwg.mxu0
  %1263 = vrot.lane.b32.xlu0 %v1257, 32
  %v1264 = vpop.permute.xlu0 %1263
  %v1266 = vsel %vm796, %v1146, %v1264
  %v1268 = vrot.slane %v1266, 3
  %vm1270 = vcmask 1044480
  %v1271 = vsel %vm1270, %v1025, %v1268
  %v1272 = vld [vmem:[%s6] sm:$0xf]
  %v1273 = vld [vmem:[%s6 + $0x4] sm:$0xf]
  %v1274 = vld [vmem:[%s6 + $0x8] sm:$0xf]
  %v1275 = vld [vmem:[%s6 + $0xc] sm:$0xf]
  %v1276 = vld [vmem:[%s6 + $0x10] sm:$0xf]
  %v1277 = vld [vmem:[%s6 + $0x14] sm:$0xf]
  %v1278 = vld [vmem:[%s6 + $0x18] sm:$0xf]
  %v1279 = vld [vmem:[%s6 + $0x1c] sm:$0xf]
  %v1280 = vpack.c.bf16 %v1268, %v1271
  %v1289 = vunpack.c.l.b16 %v1272
  %v1290 = vunpack.c.l.b16 %v1273
  %v1291 = vunpack.c.l.b16 %v1274
  %v1292 = vunpack.c.l.b16 %v1275
  %v1293 = vunpack.c.l.b16 %v1276
  %v1294 = vunpack.c.l.b16 %v1277
  %v1295 = vunpack.c.l.b16 %v1278
  %v1296 = vunpack.c.l.b16 %v1279
  %v1297 = vpack.c.b16 %v1290, %v1289
  %v1298 = vpack.c.b16 %v1292, %v1291
  %v1299 = vpack.c.b16 %v1294, %v1293
  %v1300 = vpack.c.b16 %v1296, %v1295
  %v1306 = vsel %vm605, %v1280, 0
  %1308 = vmatprep.subr.bf16.mxu0 0
  %1309 = vmatpush1.bf16.msra.mxu0 %v1297
  %1310 = vmatprep.subr.bf16.mxu0 0
  %1311 = vmatpush1.bf16.msra.mxu0 %v1298
  %1312 = vmatprep.subr.bf16.mxu0 0
  %1313 = vmatpush1.bf16.msra.mxu0 %v1299
  %1314 = vmatprep.subr.bf16.mxu0 0
  %1315 = vmatpush1.bf16.msra.mxu0 %v1300
  %1316 = vmatprep.subr.bf16.mxu0 0
  %1317 = vmatpush1.bf16.msra.mxu0 0
  %1318 = vmatprep.subr.bf16.mxu0 0
  %1319 = vmatpush1.bf16.msra.mxu0 0
  %1320 = vmatprep.subr.bf16.mxu0 0
  %1321 = vmatpush1.bf16.msra.mxu0 0
  %1322 = vmatprep.subr.bf16.mxu0 0
  %1323 = vmatpush1.bf16.msra.mxu0 0
  %1324 = vmatprep.subr.bf16.mxu0 0
  %1325 = vmatpush1.bf16.msra.mxu0 0
  %1326 = vmatprep.subr.bf16.mxu0 0
  %1327 = vmatpush1.bf16.msra.mxu0 0
  %1328 = vmatprep.subr.bf16.mxu0 0
  %1329 = vmatpush1.bf16.msra.mxu0 0
  %1330 = vmatprep.subr.bf16.mxu0 0
  %1331 = vmatpush1.bf16.msra.mxu0 0
  %1332 = vmatprep.subr.bf16.mxu0 0
  %1333 = vmatpush1.bf16.msra.mxu0 0
  %1334 = vmatprep.subr.bf16.mxu0 0
  %1335 = vmatpush1.bf16.msra.mxu0 0
  %1336 = vmatprep.subr.bf16.mxu0 0
  %1337 = vmatpush1.bf16.msra.mxu0 0
  %1338 = vmatprep.subr.bf16.mxu0 0
  %1339 = vmatpush1.bf16.msra.mxu0 0
  %1340 = vmatprep.mubr.bf16.mxu0 0
  %1341 = vmatmul.mubr.bf16.gmra.mrb[0].mxu0 %v1306
  %v1342 = vpop.f32.mrb[0].mxu0
  %v1343 = vadd.f32 0.0, %v1342
  %v1344 = vpop.f32.mrb[0].mxu0
  %v1345 = vpop.f32.mrb[0].mxu0
  %v1346 = vadd.f32 0.0, %v1345
  %v1347 = vpop.f32.mrb[0].mxu0
  %1348 = vdwg.mxu0
  %v1349 = vadd.f32 %v644, %v1343
  %v1350 = vadd.f32 %v645, %v1346
  %v1351 = vld [vmem:[%s7] sm:$0x1]
  %v1353 = vlaneseq
  %v1354 = vshrl.u32 %v1353, 7
  %v1355 = vsub.s32 0, %v1354
  %v1356 = vrot.slane %v1351, %v1355
  %v1358 = vadd.f32 %v1349, %v1356
  %v1359 = vadd.f32 %v1350, %v1356
  %s1360 = scalar_lea.vmem %s8, 2
  %v1361 = vld [vmem:[%s1360] sm:$0x3]
  %v1362 = vsel %vm605, %v1358, 0.0
  %1363 = vadd.xlane.f32.xlu0 %v1362
  %v1364 = vpop.xlane.xlu0 %1363
  %v1365 = vsel %vm609, %v1359, 0.0
  %1366 = vadd.xlane.f32.xlu0 %v1365
  %v1367 = vpop.xlane.xlu0 %1366
  %v1368 = vmul.f32 %v1364, %v613
  %v1369 = vmul.f32 %v1367, %v613
  %v1370 = vsub.f32 %v1358, %v1368
  %v1371 = vsub.f32 %v1359, %v1369
  %v1372 = vmul.f32 %v1370, %v1370
  %v1373 = vmul.f32 %v1371, %v1371
  %v1374 = vsel %vm605, %v1372, 0.0
  %1375 = vadd.xlane.f32.xlu0 %v1374
  %v1376 = vpop.xlane.xlu0 %1375
  %v1377 = vsel %vm609, %v1373, 0.0
  %1378 = vadd.xlane.f32.xlu0 %v1377
  %v1379 = vpop.xlane.xlu0 %1378
  %v1380 = vmul.f32 %v1376, %v613
  %v1381 = vmul.f32 %v1379, %v613
  %v1382 = vadd.f32 %v1380, 1e-05
  %v1383 = vadd.f32 %v1381, 1e-05
  %v1384 = vrsqrt.pop %v1382
  %v1385 = vrsqrt.pop %v1383
  %v1386 = vmul.f32 %v1370, %v1384
  %v1387 = vmul.f32 %v1371, %v1385
  %v1388 = vlaneseq
  %v1389 = vshrl.u32 %v1388, 7
  %v1390 = vsub.s32 0, %v1389
  %v1391 = vrot.slane %v1361, %v1390
  %v1392 = vmul.f32 %v1386, %v1391
  %v1393 = vmul.f32 %v1387, %v1391
  %v1394 = vlaneseq
  %v1395 = vshrl.u32 %v1394, 7
  %v1396 = vsub.s32 1, %v1395
  %v1397 = vrot.slane %v1361, %v1396
  %v1398 = vadd.f32 %v1392, %v1397
  %v1399 = vadd.f32 %v1393, %v1397
  %v1400 = vld [vmem:[%s9] sm:$0xf]
  %v1401 = vld [vmem:[%s9 + $0x4] sm:$0xf]
  %v1402 = vld [vmem:[%s9 + $0x8] sm:$0xf]
  %v1403 = vld [vmem:[%s9 + $0xc] sm:$0xf]
  %v1404 = vld [vmem:[%s9 + $0x10] sm:$0xf]
  %v1405 = vld [vmem:[%s9 + $0x14] sm:$0xf]
  %v1406 = vld [vmem:[%s9 + $0x18] sm:$0xf]
  %v1407 = vld [vmem:[%s9 + $0x1c] sm:$0xf]
  %v1408 = vpack.c.bf16 %v1399, %v1398
  %v1409 = vld [vmem:[%s10] sm:$0x1]
  %v1411 = vlaneseq
  %v1412 = vshrl.u32 %v1411, 7
  %v1413 = vsub.s32 0, %v1412
  %v1414 = vrot.slane %v1409, %v1413
  %v1424 = vunpack.c.l.b16 %v1400
  %v1425 = vunpack.c.l.b16 %v1401
  %v1426 = vunpack.c.l.b16 %v1402
  %v1427 = vunpack.c.l.b16 %v1403
  %v1428 = vunpack.c.l.b16 %v1404
  %v1429 = vunpack.c.l.b16 %v1405
  %v1430 = vunpack.c.l.b16 %v1406
  %v1431 = vunpack.c.l.b16 %v1407
  %v1432 = vpack.c.b16 %v1425, %v1424
  %v1433 = vpack.c.b16 %v1427, %v1426
  %v1434 = vpack.c.b16 %v1429, %v1428
  %v1435 = vpack.c.b16 %v1431, %v1430
  %v1441 = vsel %vm605, %v1408, 0
  %1443 = vmatprep.subr.bf16.mxu0 0
  %1444 = vmatpush1.bf16.msra.mxu0 %v1432
  %1445 = vmatprep.subr.bf16.mxu0 0
  %1446 = vmatpush1.bf16.msra.mxu0 %v1433
  %1447 = vmatprep.subr.bf16.mxu0 0
  %1448 = vmatpush1.bf16.msra.mxu0 %v1434
  %1449 = vmatprep.subr.bf16.mxu0 0
  %1450 = vmatpush1.bf16.msra.mxu0 %v1435
  %1451 = vmatprep.subr.bf16.mxu0 0
  %1452 = vmatpush1.bf16.msra.mxu0 0
  %1453 = vmatprep.subr.bf16.mxu0 0
  %1454 = vmatpush1.bf16.msra.mxu0 0
  %1455 = vmatprep.subr.bf16.mxu0 0
  %1456 = vmatpush1.bf16.msra.mxu0 0
  %1457 = vmatprep.subr.bf16.mxu0 0
  %1458 = vmatpush1.bf16.msra.mxu0 0
  %1459 = vmatprep.subr.bf16.mxu0 0
  %1460 = vmatpush1.bf16.msra.mxu0 0
  %1461 = vmatprep.subr.bf16.mxu0 0
  %1462 = vmatpush1.bf16.msra.mxu0 0
  %1463 = vmatprep.subr.bf16.mxu0 0
  %1464 = vmatpush1.bf16.msra.mxu0 0
  %1465 = vmatprep.subr.bf16.mxu0 0
  %1466 = vmatpush1.bf16.msra.mxu0 0
  %1467 = vmatprep.subr.bf16.mxu0 0
  %1468 = vmatpush1.bf16.msra.mxu0 0
  %1469 = vmatprep.subr.bf16.mxu0 0
  %1470 = vmatpush1.bf16.msra.mxu0 0
  %1471 = vmatprep.subr.bf16.mxu0 0
  %1472 = vmatpush1.bf16.msra.mxu0 0
  %1473 = vmatprep.subr.bf16.mxu0 0
  %1474 = vmatpush1.bf16.msra.mxu0 0
  %1475 = vmatprep.mubr.bf16.mxu0 0
  %1476 = vmatmul.mubr.bf16.gmra.mrb[0].mxu0 %v1441
  %v1477 = vpop.f32.mrb[0].mxu0
  %v1478 = vadd.f32 %v1414, %v1477
  %v1479 = vpop.f32.mrb[0].mxu0
  %v1480 = vpop.f32.mrb[0].mxu0
  %v1481 = vadd.f32 %v1414, %v1480
  %v1482 = vpop.f32.mrb[0].mxu0
  %1483 = vdwg.mxu0
  %v1484 = vmul.f32 %v1478, 1.702
  %v1485 = vmul.f32 %v1481, 1.702
  %v1486 = vxor.u32 %v1484, 2147483648
  %v1487 = vxor.u32 %v1485, 2147483648
  %v1488 = vmul.f32 %v1486, 1.442695
  %v1489 = vpow.pop %v1488
  %v1490 = vmul.f32 %v1487, 1.442695
  %v1491 = vpow.pop %v1490
  %v1492 = vadd.f32 %v1489, 1.0
  %v1493 = vadd.f32 %v1491, 1.0
  %v1494 = vrcp.pop %v1492
  %v1495 = vmul.f32 1.0, %v1494
  %v1496 = vrcp.pop %v1493
  %v1497 = vmul.f32 1.0, %v1496
  %v1498 = vmul.f32 %v1478, %v1495
  %v1499 = vmul.f32 %v1481, %v1497
  %v1500 = vld [vmem:[%s11] sm:$0xf]
  %v1501 = vld [vmem:[%s11 + $0x4] sm:$0xf]
  %v1502 = vld [vmem:[%s11 + $0x8] sm:$0xf]
  %v1503 = vld [vmem:[%s11 + $0xc] sm:$0xf]
  %v1504 = vld [vmem:[%s11 + $0x10] sm:$0xf]
  %v1505 = vld [vmem:[%s11 + $0x14] sm:$0xf]
  %v1506 = vld [vmem:[%s11 + $0x18] sm:$0xf]
  %v1507 = vld [vmem:[%s11 + $0x1c] sm:$0xf]
  %v1508 = vld [vmem:[%s11 + $0x20] sm:$0xf]
  %v1509 = vld [vmem:[%s11 + $0x24] sm:$0xf]
  %v1510 = vld [vmem:[%s11 + $0x28] sm:$0xf]
  %v1511 = vld [vmem:[%s11 + $0x2c] sm:$0xf]
  %v1512 = vld [vmem:[%s11 + $0x30] sm:$0xf]
  %v1513 = vld [vmem:[%s11 + $0x34] sm:$0xf]
  %v1514 = vld [vmem:[%s11 + $0x38] sm:$0xf]
  %v1515 = vld [vmem:[%s11 + $0x3c] sm:$0xf]
  %v1516 = vpack.c.bf16 %v1499, %v1498
  %v1533 = vunpack.c.l.b16 %v1500
  %v1534 = vunpack.c.l.b16 %v1501
  %v1535 = vunpack.c.l.b16 %v1502
  %v1536 = vunpack.c.l.b16 %v1503
  %v1537 = vunpack.c.l.b16 %v1504
  %v1538 = vunpack.c.l.b16 %v1505
  %v1539 = vunpack.c.l.b16 %v1506
  %v1540 = vunpack.c.l.b16 %v1507
  %v1541 = vunpack.c.l.b16 %v1508
  %v1542 = vunpack.c.l.b16 %v1509
  %v1543 = vunpack.c.l.b16 %v1510
  %v1544 = vunpack.c.l.b16 %v1511
  %v1545 = vunpack.c.l.b16 %v1512
  %v1546 = vunpack.c.l.b16 %v1513
  %v1547 = vunpack.c.l.b16 %v1514
  %v1548 = vunpack.c.l.b16 %v1515
  %v1549 = vpack.c.b16 %v1534, %v1533
  %v1550 = vpack.c.b16 %v1536, %v1535
  %v1551 = vpack.c.b16 %v1538, %v1537
  %v1552 = vpack.c.b16 %v1540, %v1539
  %v1553 = vpack.c.b16 %v1542, %v1541
  %v1554 = vpack.c.b16 %v1544, %v1543
  %v1555 = vpack.c.b16 %v1546, %v1545
  %v1556 = vpack.c.b16 %v1548, %v1547
  %1565 = vmatprep.subr.bf16.mxu0 0
  %1566 = vmatpush1.bf16.msra.mxu0 %v1549
  %1567 = vmatprep.subr.bf16.mxu0 0
  %1568 = vmatpush1.bf16.msra.mxu0 %v1550
  %1569 = vmatprep.subr.bf16.mxu0 0
  %1570 = vmatpush1.bf16.msra.mxu0 %v1551
  %1571 = vmatprep.subr.bf16.mxu0 0
  %1572 = vmatpush1.bf16.msra.mxu0 %v1552
  %1573 = vmatprep.subr.bf16.mxu0 0
  %1574 = vmatpush1.bf16.msra.mxu0 %v1553
  %1575 = vmatprep.subr.bf16.mxu0 0
  %1576 = vmatpush1.bf16.msra.mxu0 %v1554
  %1577 = vmatprep.subr.bf16.mxu0 0
  %1578 = vmatpush1.bf16.msra.mxu0 %v1555
  %1579 = vmatprep.subr.bf16.mxu0 0
  %1580 = vmatpush1.bf16.msra.mxu0 %v1556
  %1581 = vmatprep.subr.bf16.mxu0 0
  %1582 = vmatpush1.bf16.msra.mxu0 0
  %1583 = vmatprep.subr.bf16.mxu0 0
  %1584 = vmatpush1.bf16.msra.mxu0 0
  %1585 = vmatprep.subr.bf16.mxu0 0
  %1586 = vmatpush1.bf16.msra.mxu0 0
  %1587 = vmatprep.subr.bf16.mxu0 0
  %1588 = vmatpush1.bf16.msra.mxu0 0
  %1589 = vmatprep.subr.bf16.mxu0 0
  %1590 = vmatpush1.bf16.msra.mxu0 0
  %1591 = vmatprep.subr.bf16.mxu0 0
  %1592 = vmatpush1.bf16.msra.mxu0 0
  %1593 = vmatprep.subr.bf16.mxu0 0
  %1594 = vmatpush1.bf16.msra.mxu0 0
  %1595 = vmatprep.subr.bf16.mxu0 0
  %1596 = vmatpush1.bf16.msra.mxu0 0
  %1597 = vmatprep.mubr.bf16.mxu0 0
  %1598 = vmatmul.mubr.bf16.gmra.mrb[0].mxu0 %v1516
  %v1599 = vpop.f32.mrb[0].mxu0
  %v1600 = vadd.f32 0.0, %v1599
  %v1601 = vpop.f32.mrb[0].mxu0
  %v1602 = vpop.f32.mrb[0].mxu0
  %v1603 = vadd.f32 0.0, %v1602
  %v1604 = vpop.f32.mrb[0].mxu0
  %1605 = vdwg.mxu0
  %v1606 = vadd.f32 %v1358, %v1600
  %v1607 = vadd.f32 %v1359, %v1603
  %v1608 = vld [vmem:[%s12] sm:$0x1]
  %v1610 = vlaneseq
  %v1611 = vshrl.u32 %v1610, 7
  %v1612 = vsub.s32 0, %v1611
  %v1613 = vrot.slane %v1608, %v1612
  %v1615 = vadd.f32 %v1606, %v1613
  %v1616 = vadd.f32 %v1607, %v1613
  %s1617 = scalar_lea.vmem %s8, 4
  %v1618 = vld [vmem:[%s1617] sm:$0x3]
  %v1619 = vsel %vm605, %v1615, 0.0
  %1620 = vadd.xlane.f32.xlu0 %v1619
  %v1621 = vpop.xlane.xlu0 %1620
  %v1622 = vsel %vm609, %v1616, 0.0
  %1623 = vadd.xlane.f32.xlu0 %v1622
  %v1624 = vpop.xlane.xlu0 %1623
  %v1625 = vmul.f32 %v1621, %v613
  %v1626 = vmul.f32 %v1624, %v613
  %v1627 = vsub.f32 %v1615, %v1625
  %v1628 = vsub.f32 %v1616, %v1626
  %v1629 = vmul.f32 %v1627, %v1627
  %v1630 = vmul.f32 %v1628, %v1628
  %v1631 = vsel %vm605, %v1629, 0.0
  %1632 = vadd.xlane.f32.xlu0 %v1631
  %v1633 = vpop.xlane.xlu0 %1632
  %v1634 = vsel %vm609, %v1630, 0.0
  %1635 = vadd.xlane.f32.xlu0 %v1634
  %v1636 = vpop.xlane.xlu0 %1635
  %v1637 = vmul.f32 %v1633, %v613
  %v1638 = vmul.f32 %v1636, %v613
  %v1639 = vadd.f32 %v1637, 1e-05
  %v1640 = vadd.f32 %v1638, 1e-05
  %v1641 = vrsqrt.pop %v1639
  %v1642 = vrsqrt.pop %v1640
  %v1643 = vmul.f32 %v1627, %v1641
  %v1644 = vmul.f32 %v1628, %v1642
  %v1645 = vlaneseq
  %v1646 = vshrl.u32 %v1645, 7
  %v1647 = vsub.s32 0, %v1646
  %v1648 = vrot.slane %v1618, %v1647
  %v1649 = vmul.f32 %v1643, %v1648
  %v1650 = vmul.f32 %v1644, %v1648
  %v1651 = vlaneseq
  %v1652 = vshrl.u32 %v1651, 7
  %v1653 = vsub.s32 1, %v1652
  %v1654 = vrot.slane %v1618, %v1653
  %v1655 = vadd.f32 %v1649, %v1654
  %v1656 = vadd.f32 %v1650, %v1654
  %s1657 = scalar_lea.vmem %s4, 64
  %v1658 = vld [vmem:[%s1657] sm:$0xff]
  %v1659 = vld [vmem:[%s1657 + $0x8] sm:$0xff]
  %v1660 = vld [vmem:[%s1657 + $0x10] sm:$0xff]
  %v1661 = vld [vmem:[%s1657 + $0x18] sm:$0xff]
  %v1662 = vld [vmem:[%s1657 + $0x20] sm:$0xff]
  %v1663 = vld [vmem:[%s1657 + $0x28] sm:$0xff]
  %v1664 = vld [vmem:[%s1657 + $0x30] sm:$0xff]
  %v1665 = vld [vmem:[%s1657 + $0x38] sm:$0xff]
  %v1666 = vpack.c.bf16 %v1656, %v1655
  %s1667 = scalar_lea.vmem %s5, 2
  %v1668 = vld [vmem:[%s1667] sm:$0x3]
  %v1670 = vlaneseq
  %v1671 = vshrl.u32 %v1670, 7
  %v1672 = vsub.s32 0, %v1671
  %v1673 = vrot.slane %v1668, %v1672
  %v1674 = vlaneseq
  %v1675 = vshrl.u32 %v1674, 7
  %v1676 = vsub.s32 1, %v1675
  %v1677 = vrot.slane %v1668, %v1676
  %v1688 = vunpack.c.l.b16 %v1658
  %v1689 = vunpack.c.h.b16 %v1658
  %v1690 = vunpack.c.l.b16 %v1659
  %v1691 = vunpack.c.h.b16 %v1659
  %v1692 = vunpack.c.l.b16 %v1660
  %v1693 = vunpack.c.h.b16 %v1660
  %v1694 = vunpack.c.l.b16 %v1661
  %v1695 = vunpack.c.h.b16 %v1661
  %v1696 = vunpack.c.l.b16 %v1662
  %v1697 = vunpack.c.h.b16 %v1662
  %v1698 = vunpack.c.l.b16 %v1663
  %v1699 = vunpack.c.h.b16 %v1663
  %v1700 = vunpack.c.l.b16 %v1664
  %v1701 = vunpack.c.h.b16 %v1664
  %v1702 = vunpack.c.l.b16 %v1665
  %v1703 = vunpack.c.h.b16 %v1665
  %v1704 = vpack.c.b16 %v1690, %v1688
  %v1705 = vpack.c.b16 %v1691, %v1689
  %v1706 = vpack.c.b16 %v1694, %v1692
  %v1707 = vpack.c.b16 %v1695, %v1693
  %v1708 = vpack.c.b16 %v1698, %v1696
  %v1709 = vpack.c.b16 %v1699, %v1697
  %v1710 = vpack.c.b16 %v1702, %v1700
  %v1711 = vpack.c.b16 %v1703, %v1701
  %v1721 = vsel %vm605, %v1666, 0
  %1723 = vmatprep.subr.bf16.mxu0 %v1705
  %1724 = vmatpush1.bf16.msra.mxu0 %v1704
  %1725 = vmatprep.subr.bf16.mxu0 %v1707
  %1726 = vmatpush1.bf16.msra.mxu0 %v1706
  %1727 = vmatprep.subr.bf16.mxu0 %v1709
  %1728 = vmatpush1.bf16.msra.mxu0 %v1708
  %1729 = vmatprep.subr.bf16.mxu0 %v1711
  %1730 = vmatpush1.bf16.msra.mxu0 %v1710
  %1731 = vmatprep.subr.bf16.mxu0 0
  %1732 = vmatpush1.bf16.msra.mxu0 0
  %1733 = vmatprep.subr.bf16.mxu0 0
  %1734 = vmatpush1.bf16.msra.mxu0 0
  %1735 = vmatprep.subr.bf16.mxu0 0
  %1736 = vmatpush1.bf16.msra.mxu0 0
  %1737 = vmatprep.subr.bf16.mxu0 0
  %1738 = vmatpush1.bf16.msra.mxu0 0
  %1739 = vmatprep.subr.bf16.mxu0 0
  %1740 = vmatpush1.bf16.msra.mxu0 0
  %1741 = vmatprep.subr.bf16.mxu0 0
  %1742 = vmatpush1.bf16.msra.mxu0 0
  %1743 = vmatprep.subr.bf16.mxu0 0
  %1744 = vmatpush1.bf16.msra.mxu0 0
  %1745 = vmatprep.subr.bf16.mxu0 0
  %1746 = vmatpush1.bf16.msra.mxu0 0
  %1747 = vmatprep.subr.bf16.mxu0 0
  %1748 = vmatpush1.bf16.msra.mxu0 0
  %1749 = vmatprep.subr.bf16.mxu0 0
  %1750 = vmatpush1.bf16.msra.mxu0 0
  %1751 = vmatprep.subr.bf16.mxu0 0
  %1752 = vmatpush1.bf16.msra.mxu0 0
  %1753 = vmatprep.subr.bf16.mxu0 0
  %1754 = vmatpush1.bf16.msra.mxu0 0
  %1755 = vmatprep.mubr.bf16.mxu0 0
  %1756 = vmatmul.mubr.bf16.gmra.mrb[0].mxu0 %v1721
  %v1757 = vpop.f32.mrb[0].mxu0
  %v1758 = vadd.f32 %v1673, %v1757
  %v1759 = vpop.f32.mrb[0].mxu0
  %v1760 = vadd.f32 %v1677, %v1759
  %v1761 = vpop.f32.mrb[0].mxu0
  %v1762 = vadd.f32 %v1673, %v1761
  %v1763 = vpop.f32.mrb[0].mxu0
  %v1764 = vadd.f32 %v1677, %v1763
  %1765 = vdwg.mxu0
  %v1766 = vpack.c.bf16 %v1758, %v1758
  %1768 = vrot.lane.b32.xlu0 %v1766, 64
  %v1769 = vpop.permute.xlu0 %1768
  %v1771 = vsel %vm796, %v1766, 0
  %v1774 = vsel %vm796, %v1769, 0
  %1776 = vmatprep.subr.bf16.mxu0 0
  %1777 = vmatpush1.bf16.xpose.msra.mxu0 %v1774
  %1778 = vmatprep.subr.bf16.mxu0 0
  %1779 = vmatpush1.bf16.xpose.msra.mxu0 0
  %1780 = vmatprep.subr.bf16.mxu0 0
  %1781 = vmatpush1.bf16.xpose.msra.mxu0 0
  %1782 = vmatprep.subr.bf16.mxu0 0
  %1783 = vmatpush1.bf16.xpose.msra.mxu0 0
  %1784 = vmatprep.subr.bf16.mxu0 0
  %1785 = vmatpush1.bf16.xpose.msra.mxu0 0
  %1786 = vmatprep.subr.bf16.mxu0 0
  %1787 = vmatpush1.bf16.xpose.msra.mxu0 0
  %1788 = vmatprep.subr.bf16.mxu0 0
  %1789 = vmatpush1.bf16.xpose.msra.mxu0 0
  %1790 = vmatprep.subr.bf16.mxu0 0
  %1791 = vmatpush1.bf16.xpose.msra.mxu0 0
  %1792 = vmatprep.subr.bf16.mxu0 0
  %1793 = vmatpush1.bf16.xpose.msra.mxu0 0
  %1794 = vmatprep.subr.bf16.mxu0 0
  %1795 = vmatpush1.bf16.xpose.msra.mxu0 0
  %1796 = vmatprep.subr.bf16.mxu0 0
  %1797 = vmatpush1.bf16.xpose.msra.mxu0 0
  %1798 = vmatprep.subr.bf16.mxu0 0
  %1799 = vmatpush1.bf16.xpose.msra.mxu0 0
  %1800 = vmatprep.subr.bf16.mxu0 0
  %1801 = vmatpush1.bf16.xpose.msra.mxu0 0
  %1802 = vmatprep.subr.bf16.mxu0 0
  %1803 = vmatpush1.bf16.xpose.msra.mxu0 0
  %1804 = vmatprep.subr.bf16.mxu0 0
  %1805 = vmatpush1.bf16.xpose.msra.mxu0 0
  %1806 = vmatprep.subr.bf16.mxu0 0
  %1807 = vmatpush1.bf16.xpose.msra.mxu0 0
  %1808 = vmatprep.mubr.bf16.mxu0 0
  %1809 = vmatmul.mubr.bf16.gmra.mrb[0].mxu0 %v1771
  %v1810 = vpop.f32.mrb[0].mxu0
  %v1811 = vadd.f32 0.0, %v1810
  %v1812 = vpop.f32.mrb[0].mxu0
  %v1813 = vpop.f32.mrb[0].mxu0
  %v1814 = vpop.f32.mrb[0].mxu0
  %1815 = vdwg.mxu0
  %v1816 = vmul.f32 %v1811, 0.17677669
  %v1817 = vsel %vm844, %v1816, -inf
  %1818 = vmax.xlane.f32.xlu0 %v1817
  %v1819 = vpop.xlane.xlu0 %1818
  %v1820 = vsub.f32 %v1816, %v1819
  %v1821 = vmul.f32 %v1820, 1.442695
  %v1822 = vpow.pop %v1821
  %v1823 = vsel %vm844, %v1822, 0.0
  %1824 = vadd.xlane.f32.xlu0 %v1823
  %v1825 = vpop.xlane.xlu0 %1824
  %v1826 = vrcp.pop %v1825
  %v1827 = vmul.f32 %v1822, %v1826
  %v1828 = vpack.c.bf16 %v1827, %v1827
  %v1829 = vpack.c.bf16 %v1760, %v1760
  %v1831 = vsel %vm858, %v1828, 0
  %v1834 = vand.u32 %v1829, %v865
  %1836 = vmatprep.subr.bf16.mxu0 0
  %1837 = vmatpush1.bf16.msra.mxu0 %v1834
  %1838 = vmatprep.subr.bf16.mxu0 0
  %1839 = vmatpush1.bf16.msra.mxu0 0
  %1840 = vmatprep.subr.bf16.mxu0 0
  %1841 = vmatpush1.bf16.msra.mxu0 0
  %1842 = vmatprep.subr.bf16.mxu0 0
  %1843 = vmatpush1.bf16.msra.mxu0 0
  %1844 = vmatprep.subr.bf16.mxu0 0
  %1845 = vmatpush1.bf16.msra.mxu0 0
  %1846 = vmatprep.subr.bf16.mxu0 0
  %1847 = vmatpush1.bf16.msra.mxu0 0
  %1848 = vmatprep.subr.bf16.mxu0 0
  %1849 = vmatpush1.bf16.msra.mxu0 0
  %1850 = vmatprep.subr.bf16.mxu0 0
  %1851 = vmatpush1.bf16.msra.mxu0 0
  %1852 = vmatprep.subr.bf16.mxu0 0
  %1853 = vmatpush1.bf16.msra.mxu0 0
  %1854 = vmatprep.subr.bf16.mxu0 0
  %1855 = vmatpush1.bf16.msra.mxu0 0
  %1856 = vmatprep.subr.bf16.mxu0 0
  %1857 = vmatpush1.bf16.msra.mxu0 0
  %1858 = vmatprep.subr.bf16.mxu0 0
  %1859 = vmatpush1.bf16.msra.mxu0 0
  %1860 = vmatprep.subr.bf16.mxu0 0
  %1861 = vmatpush1.bf16.msra.mxu0 0
  %1862 = vmatprep.subr.bf16.mxu0 0
  %1863 = vmatpush1.bf16.msra.mxu0 0
  %1864 = vmatprep.subr.bf16.mxu0 0
  %1865 = vmatpush1.bf16.msra.mxu0 0
  %1866 = vmatprep.subr.bf16.mxu0 0
  %1867 = vmatpush1.bf16.msra.mxu0 0
  %1868 = vmatprep.mubr.bf16.mxu0 0
  %1869 = vmatmul.mubr.bf16.gmra.mrb[0].mxu0 %v1831
  %v1870 = vpop.f32.mrb[0].mxu0
  %v1871 = vadd.f32 0.0, %v1870
  %v1872 = vpop.f32.mrb[0].mxu0
  %v1873 = vpop.f32.mrb[0].mxu0
  %v1874 = vpop.f32.mrb[0].mxu0
  %1875 = vdwg.mxu0
  %1876 = vrot.lane.b32.xlu0 %v1766, 96
  %v1877 = vpop.permute.xlu0 %1876
  %1878 = vrot.lane.b32.xlu0 %v1766, 32
  %v1879 = vpop.permute.xlu0 %1878
  %v1881 = vsel %vm796, %v1877, 0
  %v1884 = vsel %vm796, %v1879, 0
  %1886 = vmatprep.subr.bf16.mxu0 0
  %1887 = vmatpush1.bf16.xpose.msra.mxu0 %v1884
  %1888 = vmatprep.subr.bf16.mxu0 0
  %1889 = vmatpush1.bf16.xpose.msra.mxu0 0
  %1890 = vmatprep.subr.bf16.mxu0 0
  %1891 = vmatpush1.bf16.xpose.msra.mxu0 0
  %1892 = vmatprep.subr.bf16.mxu0 0
  %1893 = vmatpush1.bf16.xpose.msra.mxu0 0
  %1894 = vmatprep.subr.bf16.mxu0 0
  %1895 = vmatpush1.bf16.xpose.msra.mxu0 0
  %1896 = vmatprep.subr.bf16.mxu0 0
  %1897 = vmatpush1.bf16.xpose.msra.mxu0 0
  %1898 = vmatprep.subr.bf16.mxu0 0
  %1899 = vmatpush1.bf16.xpose.msra.mxu0 0
  %1900 = vmatprep.subr.bf16.mxu0 0
  %1901 = vmatpush1.bf16.xpose.msra.mxu0 0
  %1902 = vmatprep.subr.bf16.mxu0 0
  %1903 = vmatpush1.bf16.xpose.msra.mxu0 0
  %1904 = vmatprep.subr.bf16.mxu0 0
  %1905 = vmatpush1.bf16.xpose.msra.mxu0 0
  %1906 = vmatprep.subr.bf16.mxu0 0
  %1907 = vmatpush1.bf16.xpose.msra.mxu0 0
  %1908 = vmatprep.subr.bf16.mxu0 0
  %1909 = vmatpush1.bf16.xpose.msra.mxu0 0
  %1910 = vmatprep.subr.bf16.mxu0 0
  %1911 = vmatpush1.bf16.xpose.msra.mxu0 0
  %1912 = vmatprep.subr.bf16.mxu0 0
  %1913 = vmatpush1.bf16.xpose.msra.mxu0 0
  %1914 = vmatprep.subr.bf16.mxu0 0
  %1915 = vmatpush1.bf16.xpose.msra.mxu0 0
  %1916 = vmatprep.subr.bf16.mxu0 0
  %1917 = vmatpush1.bf16.xpose.msra.mxu0 0
  %1918 = vmatprep.mubr.bf16.mxu0 0
  %1919 = vmatmul.mubr.bf16.gmra.mrb[0].mxu0 %v1881
  %v1920 = vpop.f32.mrb[0].mxu0
  %v1921 = vadd.f32 0.0, %v1920
  %v1922 = vpop.f32.mrb[0].mxu0
  %v1923 = vpop.f32.mrb[0].mxu0
  %v1924 = vpop.f32.mrb[0].mxu0
  %1925 = vdwg.mxu0
  %v1926 = vmul.f32 %v1921, 0.17677669
  %v1927 = vsel %vm844, %v1926, -inf
  %1928 = vmax.xlane.f32.xlu0 %v1927
  %v1929 = vpop.xlane.xlu0 %1928
  %v1930 = vsub.f32 %v1926, %v1929
  %v1931 = vmul.f32 %v1930, 1.442695
  %v1932 = vpow.pop %v1931
  %v1933 = vsel %vm844, %v1932, 0.0
  %1934 = vadd.xlane.f32.xlu0 %v1933
  %v1935 = vpop.xlane.xlu0 %1934
  %v1936 = vrcp.pop %v1935
  %v1937 = vmul.f32 %v1932, %v1936
  %v1938 = vpack.c.bf16 %v1937, %v1937
  %1940 = vrot.lane.b32.xlu0 %v1829, 96
  %v1941 = vpop.permute.xlu0 %1940
  %v1943 = vsel %vm858, %v1938, 0
  %v1946 = vand.u32 %v1941, %v865
  %1948 = vmatprep.subr.bf16.mxu0 0
  %1949 = vmatpush1.bf16.msra.mxu0 %v1946
  %1950 = vmatprep.subr.bf16.mxu0 0
  %1951 = vmatpush1.bf16.msra.mxu0 0
  %1952 = vmatprep.subr.bf16.mxu0 0
  %1953 = vmatpush1.bf16.msra.mxu0 0
  %1954 = vmatprep.subr.bf16.mxu0 0
  %1955 = vmatpush1.bf16.msra.mxu0 0
  %1956 = vmatprep.subr.bf16.mxu0 0
  %1957 = vmatpush1.bf16.msra.mxu0 0
  %1958 = vmatprep.subr.bf16.mxu0 0
  %1959 = vmatpush1.bf16.msra.mxu0 0
  %1960 = vmatprep.subr.bf16.mxu0 0
  %1961 = vmatpush1.bf16.msra.mxu0 0
  %1962 = vmatprep.subr.bf16.mxu0 0
  %1963 = vmatpush1.bf16.msra.mxu0 0
  %1964 = vmatprep.subr.bf16.mxu0 0
  %1965 = vmatpush1.bf16.msra.mxu0 0
  %1966 = vmatprep.subr.bf16.mxu0 0
  %1967 = vmatpush1.bf16.msra.mxu0 0
  %1968 = vmatprep.subr.bf16.mxu0 0
  %1969 = vmatpush1.bf16.msra.mxu0 0
  %1970 = vmatprep.subr.bf16.mxu0 0
  %1971 = vmatpush1.bf16.msra.mxu0 0
  %1972 = vmatprep.subr.bf16.mxu0 0
  %1973 = vmatpush1.bf16.msra.mxu0 0
  %1974 = vmatprep.subr.bf16.mxu0 0
  %1975 = vmatpush1.bf16.msra.mxu0 0
  %1976 = vmatprep.subr.bf16.mxu0 0
  %1977 = vmatpush1.bf16.msra.mxu0 0
  %1978 = vmatprep.subr.bf16.mxu0 0
  %1979 = vmatpush1.bf16.msra.mxu0 0
  %1980 = vmatprep.mubr.bf16.mxu0 0
  %1981 = vmatmul.mubr.bf16.gmra.mrb[0].mxu0 %v1943
  %v1982 = vpop.f32.mrb[0].mxu0
  %v1983 = vadd.f32 0.0, %v1982
  %v1984 = vpop.f32.mrb[0].mxu0
  %v1985 = vpop.f32.mrb[0].mxu0
  %v1986 = vpop.f32.mrb[0].mxu0
  %1987 = vdwg.mxu0
  %1989 = vrot.lane.b32.xlu0 %v1983, 32
  %v1990 = vpop.permute.xlu0 %1989
  %v1992 = vsel %vm796, %v1871, %v1990
  %v1993 = vpack.c.bf16 %v1762, %v1758
  %v1995 = vshrl.u32 %v1993, 16
  %v1997 = vrot.slane %v1995, 2
  %v1998 = vshll.u32 %v1993, 16
  %v2000 = vrot.slane %v1998, 3
  %v2001 = vor.u32 %v1997, %v2000
  %2002 = vrot.lane.b32.xlu0 %v2001, 64
  %v2003 = vpop.permute.xlu0 %2002
  %v2005 = vsel %vm796, %v2001, 0
  %v2008 = vsel %vm796, %v2003, 0
  %2010 = vmatprep.subr.bf16.mxu0 0
  %2011 = vmatpush1.bf16.xpose.msra.mxu0 %v2008
  %2012 = vmatprep.subr.bf16.mxu0 0
  %2013 = vmatpush1.bf16.xpose.msra.mxu0 0
  %2014 = vmatprep.subr.bf16.mxu0 0
  %2015 = vmatpush1.bf16.xpose.msra.mxu0 0
  %2016 = vmatprep.subr.bf16.mxu0 0
  %2017 = vmatpush1.bf16.xpose.msra.mxu0 0
  %2018 = vmatprep.subr.bf16.mxu0 0
  %2019 = vmatpush1.bf16.xpose.msra.mxu0 0
  %2020 = vmatprep.subr.bf16.mxu0 0
  %2021 = vmatpush1.bf16.xpose.msra.mxu0 0
  %2022 = vmatprep.subr.bf16.mxu0 0
  %2023 = vmatpush1.bf16.xpose.msra.mxu0 0
  %2024 = vmatprep.subr.bf16.mxu0 0
  %2025 = vmatpush1.bf16.xpose.msra.mxu0 0
  %2026 = vmatprep.subr.bf16.mxu0 0
  %2027 = vmatpush1.bf16.xpose.msra.mxu0 0
  %2028 = vmatprep.subr.bf16.mxu0 0
  %2029 = vmatpush1.bf16.xpose.msra.mxu0 0
  %2030 = vmatprep.subr.bf16.mxu0 0
  %2031 = vmatpush1.bf16.xpose.msra.mxu0 0
  %2032 = vmatprep.subr.bf16.mxu0 0
  %2033 = vmatpush1.bf16.xpose.msra.mxu0 0
  %2034 = vmatprep.subr.bf16.mxu0 0
  %2035 = vmatpush1.bf16.xpose.msra.mxu0 0
  %2036 = vmatprep.subr.bf16.mxu0 0
  %2037 = vmatpush1.bf16.xpose.msra.mxu0 0
  %2038 = vmatprep.subr.bf16.mxu0 0
  %2039 = vmatpush1.bf16.xpose.msra.mxu0 0
  %2040 = vmatprep.subr.bf16.mxu0 0
  %2041 = vmatpush1.bf16.xpose.msra.mxu0 0
  %2042 = vmatprep.mubr.bf16.mxu0 0
  %2043 = vmatmul.mubr.bf16.gmra.mrb[0].mxu0 %v2005
  %v2044 = vpop.f32.mrb[0].mxu0
  %v2045 = vadd.f32 0.0, %v2044
  %v2046 = vpop.f32.mrb[0].mxu0
  %v2047 = vpop.f32.mrb[0].mxu0
  %v2048 = vpop.f32.mrb[0].mxu0
  %2049 = vdwg.mxu0
  %v2050 = vmul.f32 %v2045, 0.17677669
  %v2051 = vsel %vm844, %v2050, -inf
  %2052 = vmax.xlane.f32.xlu0 %v2051
  %v2053 = vpop.xlane.xlu0 %2052
  %v2054 = vsub.f32 %v2050, %v2053
  %v2055 = vmul.f32 %v2054, 1.442695
  %v2056 = vpow.pop %v2055
  %v2057 = vsel %vm844, %v2056, 0.0
  %2058 = vadd.xlane.f32.xlu0 %v2057
  %v2059 = vpop.xlane.xlu0 %2058
  %v2060 = vrcp.pop %v2059
  %v2061 = vmul.f32 %v2056, %v2060
  %v2062 = vpack.c.bf16 %v2061, %v2061
  %v2063 = vpack.c.bf16 %v1764, %v1760
  %v2065 = vshrl.u32 %v2063, 16
  %v2067 = vrot.slane %v2065, 2
  %v2068 = vshll.u32 %v2063, 16
  %v2070 = vrot.slane %v2068, 3
  %v2071 = vor.u32 %v2067, %v2070
  %v2073 = vsel %vm858, %v2062, 0
  %v2076 = vand.u32 %v2071, %v865
  %2078 = vmatprep.subr.bf16.mxu0 0
  %2079 = vmatpush1.bf16.msra.mxu0 %v2076
  %2080 = vmatprep.subr.bf16.mxu0 0
  %2081 = vmatpush1.bf16.msra.mxu0 0
  %2082 = vmatprep.subr.bf16.mxu0 0
  %2083 = vmatpush1.bf16.msra.mxu0 0
  %2084 = vmatprep.subr.bf16.mxu0 0
  %2085 = vmatpush1.bf16.msra.mxu0 0
  %2086 = vmatprep.subr.bf16.mxu0 0
  %2087 = vmatpush1.bf16.msra.mxu0 0
  %2088 = vmatprep.subr.bf16.mxu0 0
  %2089 = vmatpush1.bf16.msra.mxu0 0
  %2090 = vmatprep.subr.bf16.mxu0 0
  %2091 = vmatpush1.bf16.msra.mxu0 0
  %2092 = vmatprep.subr.bf16.mxu0 0
  %2093 = vmatpush1.bf16.msra.mxu0 0
  %2094 = vmatprep.subr.bf16.mxu0 0
  %2095 = vmatpush1.bf16.msra.mxu0 0
  %2096 = vmatprep.subr.bf16.mxu0 0
  %2097 = vmatpush1.bf16.msra.mxu0 0
  %2098 = vmatprep.subr.bf16.mxu0 0
  %2099 = vmatpush1.bf16.msra.mxu0 0
  %2100 = vmatprep.subr.bf16.mxu0 0
  %2101 = vmatpush1.bf16.msra.mxu0 0
  %2102 = vmatprep.subr.bf16.mxu0 0
  %2103 = vmatpush1.bf16.msra.mxu0 0
  %2104 = vmatprep.subr.bf16.mxu0 0
  %2105 = vmatpush1.bf16.msra.mxu0 0
  %2106 = vmatprep.subr.bf16.mxu0 0
  %2107 = vmatpush1.bf16.msra.mxu0 0
  %2108 = vmatprep.subr.bf16.mxu0 0
  %2109 = vmatpush1.bf16.msra.mxu0 0
  %2110 = vmatprep.mubr.bf16.mxu0 0
  %2111 = vmatmul.mubr.bf16.gmra.mrb[0].mxu0 %v2073
  %v2112 = vpop.f32.mrb[0].mxu0
  %v2113 = vadd.f32 0.0, %v2112
  %v2114 = vpop.f32.mrb[0].mxu0
  %v2115 = vpop.f32.mrb[0].mxu0
  %v2116 = vpop.f32.mrb[0].mxu0
  %2117 = vdwg.mxu0
  %2118 = vrot.lane.b32.xlu0 %v2001, 96
  %v2119 = vpop.permute.xlu0 %2118
  %2120 = vrot.lane.b32.xlu0 %v2001, 32
  %v2121 = vpop.permute.xlu0 %2120
  %v2123 = vsel %vm796, %v2119, 0
  %v2126 = vsel %vm796, %v2121, 0
  %2128 = vmatprep.subr.bf16.mxu0 0
  %2129 = vmatpush1.bf16.xpose.msra.mxu0 %v2126
  %2130 = vmatprep.subr.bf16.mxu0 0
  %2131 = vmatpush1.bf16.xpose.msra.mxu0 0
  %2132 = vmatprep.subr.bf16.mxu0 0
  %2133 = vmatpush1.bf16.xpose.msra.mxu0 0
  %2134 = vmatprep.subr.bf16.mxu0 0
  %2135 = vmatpush1.bf16.xpose.msra.mxu0 0
  %2136 = vmatprep.subr.bf16.mxu0 0
  %2137 = vmatpush1.bf16.xpose.msra.mxu0 0
  %2138 = vmatprep.subr.bf16.mxu0 0
  %2139 = vmatpush1.bf16.xpose.msra.mxu0 0
  %2140 = vmatprep.subr.bf16.mxu0 0
  %2141 = vmatpush1.bf16.xpose.msra.mxu0 0
  %2142 = vmatprep.subr.bf16.mxu0 0
  %2143 = vmatpush1.bf16.xpose.msra.mxu0 0
  %2144 = vmatprep.subr.bf16.mxu0 0
  %2145 = vmatpush1.bf16.xpose.msra.mxu0 0
  %2146 = vmatprep.subr.bf16.mxu0 0
  %2147 = vmatpush1.bf16.xpose.msra.mxu0 0
  %2148 = vmatprep.subr.bf16.mxu0 0
  %2149 = vmatpush1.bf16.xpose.msra.mxu0 0
  %2150 = vmatprep.subr.bf16.mxu0 0
  %2151 = vmatpush1.bf16.xpose.msra.mxu0 0
  %2152 = vmatprep.subr.bf16.mxu0 0
  %2153 = vmatpush1.bf16.xpose.msra.mxu0 0
  %2154 = vmatprep.subr.bf16.mxu0 0
  %2155 = vmatpush1.bf16.xpose.msra.mxu0 0
  %2156 = vmatprep.subr.bf16.mxu0 0
  %2157 = vmatpush1.bf16.xpose.msra.mxu0 0
  %2158 = vmatprep.subr.bf16.mxu0 0
  %2159 = vmatpush1.bf16.xpose.msra.mxu0 0
  %2160 = vmatprep.mubr.bf16.mxu0 0
  %2161 = vmatmul.mubr.bf16.gmra.mrb[0].mxu0 %v2123
  %v2162 = vpop.f32.mrb[0].mxu0
  %v2163 = vadd.f32 0.0, %v2162
  %v2164 = vpop.f32.mrb[0].mxu0
  %v2165 = vpop.f32.mrb[0].mxu0
  %v2166 = vpop.f32.mrb[0].mxu0
  %2167 = vdwg.mxu0
  %v2168 = vmul.f32 %v2163, 0.17677669
  %v2169 = vsel %vm844, %v2168, -inf
  %2170 = vmax.xlane.f32.xlu0 %v2169
  %v2171 = vpop.xlane.xlu0 %2170
  %v2172 = vsub.f32 %v2168, %v2171
  %v2173 = vmul.f32 %v2172, 1.442695
  %v2174 = vpow.pop %v2173
  %v2175 = vsel %vm844, %v2174, 0.0
  %2176 = vadd.xlane.f32.xlu0 %v2175
  %v2177 = vpop.xlane.xlu0 %2176
  %v2178 = vrcp.pop %v2177
  %v2179 = vmul.f32 %v2174, %v2178
  %v2180 = vpack.c.bf16 %v2179, %v2179
  %2181 = vrot.lane.b32.xlu0 %v2071, 96
  %v2182 = vpop.permute.xlu0 %2181
  %v2184 = vsel %vm858, %v2180, 0
  %v2187 = vand.u32 %v2182, %v865
  %2189 = vmatprep.subr.bf16.mxu0 0
  %2190 = vmatpush1.bf16.msra.mxu0 %v2187
  %2191 = vmatprep.subr.bf16.mxu0 0
  %2192 = vmatpush1.bf16.msra.mxu0 0
  %2193 = vmatprep.subr.bf16.mxu0 0
  %2194 = vmatpush1.bf16.msra.mxu0 0
  %2195 = vmatprep.subr.bf16.mxu0 0
  %2196 = vmatpush1.bf16.msra.mxu0 0
  %2197 = vmatprep.subr.bf16.mxu0 0
  %2198 = vmatpush1.bf16.msra.mxu0 0
  %2199 = vmatprep.subr.bf16.mxu0 0
  %2200 = vmatpush1.bf16.msra.mxu0 0
  %2201 = vmatprep.subr.bf16.mxu0 0
  %2202 = vmatpush1.bf16.msra.mxu0 0
  %2203 = vmatprep.subr.bf16.mxu0 0
  %2204 = vmatpush1.bf16.msra.mxu0 0
  %2205 = vmatprep.subr.bf16.mxu0 0
  %2206 = vmatpush1.bf16.msra.mxu0 0
  %2207 = vmatprep.subr.bf16.mxu0 0
  %2208 = vmatpush1.bf16.msra.mxu0 0
  %2209 = vmatprep.subr.bf16.mxu0 0
  %2210 = vmatpush1.bf16.msra.mxu0 0
  %2211 = vmatprep.subr.bf16.mxu0 0
  %2212 = vmatpush1.bf16.msra.mxu0 0
  %2213 = vmatprep.subr.bf16.mxu0 0
  %2214 = vmatpush1.bf16.msra.mxu0 0
  %2215 = vmatprep.subr.bf16.mxu0 0
  %2216 = vmatpush1.bf16.msra.mxu0 0
  %2217 = vmatprep.subr.bf16.mxu0 0
  %2218 = vmatpush1.bf16.msra.mxu0 0
  %2219 = vmatprep.subr.bf16.mxu0 0
  %2220 = vmatpush1.bf16.msra.mxu0 0
  %2221 = vmatprep.mubr.bf16.mxu0 0
  %2222 = vmatmul.mubr.bf16.gmra.mrb[0].mxu0 %v2184
  %v2223 = vpop.f32.mrb[0].mxu0
  %v2224 = vadd.f32 0.0, %v2223
  %v2225 = vpop.f32.mrb[0].mxu0
  %v2226 = vpop.f32.mrb[0].mxu0
  %v2227 = vpop.f32.mrb[0].mxu0
  %2228 = vdwg.mxu0
  %2230 = vrot.lane.b32.xlu0 %v2224, 32
  %v2231 = vpop.permute.xlu0 %2230
  %v2233 = vsel %vm796, %v2113, %v2231
  %v2235 = vrot.slane %v2233, 3
  %v2237 = vsel %vm1270, %v1992, %v2235
  %s2238 = scalar_lea.vmem %s6, 32
  %v2239 = vld [vmem:[%s2238] sm:$0xf]
  %v2240 = vld [vmem:[%s2238 + $0x4] sm:$0xf]
  %v2241 = vld [vmem:[%s2238 + $0x8] sm:$0xf]
  %v2242 = vld [vmem:[%s2238 + $0xc] sm:$0xf]
  %v2243 = vld [vmem:[%s2238 + $0x10] sm:$0xf]
  %v2244 = vld [vmem:[%s2238 + $0x14] sm:$0xf]
  %v2245 = vld [vmem:[%s2238 + $0x18] sm:$0xf]
  %v2246 = vld [vmem:[%s2238 + $0x1c] sm:$0xf]
  %v2247 = vpack.c.bf16 %v2235, %v2237
  %v2256 = vunpack.c.l.b16 %v2239
  %v2257 = vunpack.c.l.b16 %v2240
  %v2258 = vunpack.c.l.b16 %v2241
  %v2259 = vunpack.c.l.b16 %v2242
  %v2260 = vunpack.c.l.b16 %v2243
  %v2261 = vunpack.c.l.b16 %v2244
  %v2262 = vunpack.c.l.b16 %v2245
  %v2263 = vunpack.c.l.b16 %v2246
  %v2264 = vpack.c.b16 %v2257, %v2256
  %v2265 = vpack.c.b16 %v2259, %v2258
  %v2266 = vpack.c.b16 %v2261, %v2260
  %v2267 = vpack.c.b16 %v2263, %v2262
  %v2273 = vsel %vm605, %v2247, 0
  %2275 = vmatprep.subr.bf16.mxu0 0
  %2276 = vmatpush1.bf16.msra.mxu0 %v2264
  %2277 = vmatprep.subr.bf16.mxu0 0
  %2278 = vmatpush1.bf16.msra.mxu0 %v2265
  %2279 = vmatprep.subr.bf16.mxu0 0
  %2280 = vmatpush1.bf16.msra.mxu0 %v2266
  %2281 = vmatprep.subr.bf16.mxu0 0
  %2282 = vmatpush1.bf16.msra.mxu0 %v2267
  %2283 = vmatprep.subr.bf16.mxu0 0
  %2284 = vmatpush1.bf16.msra.mxu0 0
  %2285 = vmatprep.subr.bf16.mxu0 0
  %2286 = vmatpush1.bf16.msra.mxu0 0
  %2287 = vmatprep.subr.bf16.mxu0 0
  %2288 = vmatpush1.bf16.msra.mxu0 0
  %2289 = vmatprep.subr.bf16.mxu0 0
  %2290 = vmatpush1.bf16.msra.mxu0 0
  %2291 = vmatprep.subr.bf16.mxu0 0
  %2292 = vmatpush1.bf16.msra.mxu0 0
  %2293 = vmatprep.subr.bf16.mxu0 0
  %2294 = vmatpush1.bf16.msra.mxu0 0
  %2295 = vmatprep.subr.bf16.mxu0 0
  %2296 = vmatpush1.bf16.msra.mxu0 0
  %2297 = vmatprep.subr.bf16.mxu0 0
  %2298 = vmatpush1.bf16.msra.mxu0 0
  %2299 = vmatprep.subr.bf16.mxu0 0
  %2300 = vmatpush1.bf16.msra.mxu0 0
  %2301 = vmatprep.subr.bf16.mxu0 0
  %2302 = vmatpush1.bf16.msra.mxu0 0
  %2303 = vmatprep.subr.bf16.mxu0 0
  %2304 = vmatpush1.bf16.msra.mxu0 0
  %2305 = vmatprep.subr.bf16.mxu0 0
  %2306 = vmatpush1.bf16.msra.mxu0 0
  %2307 = vmatprep.mubr.bf16.mxu0 0
  %2308 = vmatmul.mubr.bf16.gmra.mrb[0].mxu0 %v2273
  %v2309 = vpop.f32.mrb[0].mxu0
  %v2310 = vadd.f32 0.0, %v2309
  %v2311 = vpop.f32.mrb[0].mxu0
  %v2312 = vpop.f32.mrb[0].mxu0
  %v2313 = vadd.f32 0.0, %v2312
  %v2314 = vpop.f32.mrb[0].mxu0
  %2315 = vdwg.mxu0
  %v2316 = vadd.f32 %v1615, %v2310
  %v2317 = vadd.f32 %v1616, %v2313
  %s2318 = scalar_lea.vmem %s7, 1
  %v2319 = vld [vmem:[%s2318] sm:$0x1]
  %v2321 = vlaneseq
  %v2322 = vshrl.u32 %v2321, 7
  %v2323 = vsub.s32 0, %v2322
  %v2324 = vrot.slane %v2319, %v2323
  %v2326 = vadd.f32 %v2316, %v2324
  %v2327 = vadd.f32 %v2317, %v2324
  %s2328 = scalar_lea.vmem %s8, 6
  %v2329 = vld [vmem:[%s2328] sm:$0x3]
  %v2330 = vsel %vm605, %v2326, 0.0
  %2331 = vadd.xlane.f32.xlu0 %v2330
  %v2332 = vpop.xlane.xlu0 %2331
  %v2333 = vsel %vm609, %v2327, 0.0
  %2334 = vadd.xlane.f32.xlu0 %v2333
  %v2335 = vpop.xlane.xlu0 %2334
  %v2336 = vmul.f32 %v2332, %v613
  %v2337 = vmul.f32 %v2335, %v613
  %v2338 = vsub.f32 %v2326, %v2336
  %v2339 = vsub.f32 %v2327, %v2337
  %v2340 = vmul.f32 %v2338, %v2338
  %v2341 = vmul.f32 %v2339, %v2339
  %v2342 = vsel %vm605, %v2340, 0.0
  %2343 = vadd.xlane.f32.xlu0 %v2342
  %v2344 = vpop.xlane.xlu0 %2343
  %v2345 = vsel %vm609, %v2341, 0.0
  %2346 = vadd.xlane.f32.xlu0 %v2345
  %v2347 = vpop.xlane.xlu0 %2346
  %v2348 = vmul.f32 %v2344, %v613
  %v2349 = vmul.f32 %v2347, %v613
  %v2350 = vadd.f32 %v2348, 1e-05
  %v2351 = vadd.f32 %v2349, 1e-05
  %v2352 = vrsqrt.pop %v2350
  %v2353 = vrsqrt.pop %v2351
  %v2354 = vmul.f32 %v2338, %v2352
  %v2355 = vmul.f32 %v2339, %v2353
  %v2356 = vlaneseq
  %v2357 = vshrl.u32 %v2356, 7
  %v2358 = vsub.s32 0, %v2357
  %v2359 = vrot.slane %v2329, %v2358
  %v2360 = vmul.f32 %v2354, %v2359
  %v2361 = vmul.f32 %v2355, %v2359
  %v2362 = vlaneseq
  %v2363 = vshrl.u32 %v2362, 7
  %v2364 = vsub.s32 1, %v2363
  %v2365 = vrot.slane %v2329, %v2364
  %v2366 = vadd.f32 %v2360, %v2365
  %v2367 = vadd.f32 %v2361, %v2365
  %s2368 = scalar_lea.vmem %s9, 32
  %v2369 = vld [vmem:[%s2368] sm:$0xf]
  %v2370 = vld [vmem:[%s2368 + $0x4] sm:$0xf]
  %v2371 = vld [vmem:[%s2368 + $0x8] sm:$0xf]
  %v2372 = vld [vmem:[%s2368 + $0xc] sm:$0xf]
  %v2373 = vld [vmem:[%s2368 + $0x10] sm:$0xf]
  %v2374 = vld [vmem:[%s2368 + $0x14] sm:$0xf]
  %v2375 = vld [vmem:[%s2368 + $0x18] sm:$0xf]
  %v2376 = vld [vmem:[%s2368 + $0x1c] sm:$0xf]
  %v2377 = vpack.c.bf16 %v2367, %v2366
  %s2378 = scalar_lea.vmem %s10, 1
  %v2379 = vld [vmem:[%s2378] sm:$0x1]
  %v2381 = vlaneseq
  %v2382 = vshrl.u32 %v2381, 7
  %v2383 = vsub.s32 0, %v2382
  %v2384 = vrot.slane %v2379, %v2383
  %v2394 = vunpack.c.l.b16 %v2369
  %v2395 = vunpack.c.l.b16 %v2370
  %v2396 = vunpack.c.l.b16 %v2371
  %v2397 = vunpack.c.l.b16 %v2372
  %v2398 = vunpack.c.l.b16 %v2373
  %v2399 = vunpack.c.l.b16 %v2374
  %v2400 = vunpack.c.l.b16 %v2375
  %v2401 = vunpack.c.l.b16 %v2376
  %v2402 = vpack.c.b16 %v2395, %v2394
  %v2403 = vpack.c.b16 %v2397, %v2396
  %v2404 = vpack.c.b16 %v2399, %v2398
  %v2405 = vpack.c.b16 %v2401, %v2400
  %v2411 = vsel %vm605, %v2377, 0
  %2413 = vmatprep.subr.bf16.mxu0 0
  %2414 = vmatpush1.bf16.msra.mxu0 %v2402
  %2415 = vmatprep.subr.bf16.mxu0 0
  %2416 = vmatpush1.bf16.msra.mxu0 %v2403
  %2417 = vmatprep.subr.bf16.mxu0 0
  %2418 = vmatpush1.bf16.msra.mxu0 %v2404
  %2419 = vmatprep.subr.bf16.mxu0 0
  %2420 = vmatpush1.bf16.msra.mxu0 %v2405
  %2421 = vmatprep.subr.bf16.mxu0 0
  %2422 = vmatpush1.bf16.msra.mxu0 0
  %2423 = vmatprep.subr.bf16.mxu0 0
  %2424 = vmatpush1.bf16.msra.mxu0 0
  %2425 = vmatprep.subr.bf16.mxu0 0
  %2426 = vmatpush1.bf16.msra.mxu0 0
  %2427 = vmatprep.subr.bf16.mxu0 0
  %2428 = vmatpush1.bf16.msra.mxu0 0
  %2429 = vmatprep.subr.bf16.mxu0 0
  %2430 = vmatpush1.bf16.msra.mxu0 0
  %2431 = vmatprep.subr.bf16.mxu0 0
  %2432 = vmatpush1.bf16.msra.mxu0 0
  %2433 = vmatprep.subr.bf16.mxu0 0
  %2434 = vmatpush1.bf16.msra.mxu0 0
  %2435 = vmatprep.subr.bf16.mxu0 0
  %2436 = vmatpush1.bf16.msra.mxu0 0
  %2437 = vmatprep.subr.bf16.mxu0 0
  %2438 = vmatpush1.bf16.msra.mxu0 0
  %2439 = vmatprep.subr.bf16.mxu0 0
  %2440 = vmatpush1.bf16.msra.mxu0 0
  %2441 = vmatprep.subr.bf16.mxu0 0
  %2442 = vmatpush1.bf16.msra.mxu0 0
  %2443 = vmatprep.subr.bf16.mxu0 0
  %2444 = vmatpush1.bf16.msra.mxu0 0
  %2445 = vmatprep.mubr.bf16.mxu0 0
  %2446 = vmatmul.mubr.bf16.gmra.mrb[0].mxu0 %v2411
  %v2447 = vpop.f32.mrb[0].mxu0
  %v2448 = vadd.f32 %v2384, %v2447
  %v2449 = vpop.f32.mrb[0].mxu0
  %v2450 = vpop.f32.mrb[0].mxu0
  %v2451 = vadd.f32 %v2384, %v2450
  %v2452 = vpop.f32.mrb[0].mxu0
  %2453 = vdwg.mxu0
  %v2454 = vmul.f32 %v2448, 1.702
  %v2455 = vmul.f32 %v2451, 1.702
  %v2456 = vxor.u32 %v2454, 2147483648
  %v2457 = vxor.u32 %v2455, 2147483648
  %v2458 = vmul.f32 %v2456, 1.442695
  %v2459 = vpow.pop %v2458
  %v2460 = vmul.f32 %v2457, 1.442695
  %v2461 = vpow.pop %v2460
  %v2462 = vadd.f32 %v2459, 1.0
  %v2463 = vadd.f32 %v2461, 1.0
  %v2464 = vrcp.pop %v2462
  %v2465 = vmul.f32 1.0, %v2464
  %v2466 = vrcp.pop %v2463
  %v2467 = vmul.f32 1.0, %v2466
  %v2468 = vmul.f32 %v2448, %v2465
  %v2469 = vmul.f32 %v2451, %v2467
  %s2470 = scalar_lea.vmem %s11, 64
  %v2471 = vld [vmem:[%s2470] sm:$0xf]
  %v2472 = vld [vmem:[%s2470 + $0x4] sm:$0xf]
  %v2473 = vld [vmem:[%s2470 + $0x8] sm:$0xf]
  %v2474 = vld [vmem:[%s2470 + $0xc] sm:$0xf]
  %v2475 = vld [vmem:[%s2470 + $0x10] sm:$0xf]
  %v2476 = vld [vmem:[%s2470 + $0x14] sm:$0xf]
  %v2477 = vld [vmem:[%s2470 + $0x18] sm:$0xf]
  %v2478 = vld [vmem:[%s2470 + $0x1c] sm:$0xf]
  %v2479 = vld [vmem:[%s2470 + $0x20] sm:$0xf]
  %v2480 = vld [vmem:[%s2470 + $0x24] sm:$0xf]
  %v2481 = vld [vmem:[%s2470 + $0x28] sm:$0xf]
  %v2482 = vld [vmem:[%s2470 + $0x2c] sm:$0xf]
  %v2483 = vld [vmem:[%s2470 + $0x30] sm:$0xf]
  %v2484 = vld [vmem:[%s2470 + $0x34] sm:$0xf]
  %v2485 = vld [vmem:[%s2470 + $0x38] sm:$0xf]
  %v2486 = vld [vmem:[%s2470 + $0x3c] sm:$0xf]
  %v2487 = vpack.c.bf16 %v2469, %v2468
  %v2504 = vunpack.c.l.b16 %v2471
  %v2505 = vunpack.c.l.b16 %v2472
  %v2506 = vunpack.c.l.b16 %v2473
  %v2507 = vunpack.c.l.b16 %v2474
  %v2508 = vunpack.c.l.b16 %v2475
  %v2509 = vunpack.c.l.b16 %v2476
  %v2510 = vunpack.c.l.b16 %v2477
  %v2511 = vunpack.c.l.b16 %v2478
  %v2512 = vunpack.c.l.b16 %v2479
  %v2513 = vunpack.c.l.b16 %v2480
  %v2514 = vunpack.c.l.b16 %v2481
  %v2515 = vunpack.c.l.b16 %v2482
  %v2516 = vunpack.c.l.b16 %v2483
  %v2517 = vunpack.c.l.b16 %v2484
  %v2518 = vunpack.c.l.b16 %v2485
  %v2519 = vunpack.c.l.b16 %v2486
  %v2520 = vpack.c.b16 %v2505, %v2504
  %v2521 = vpack.c.b16 %v2507, %v2506
  %v2522 = vpack.c.b16 %v2509, %v2508
  %v2523 = vpack.c.b16 %v2511, %v2510
  %v2524 = vpack.c.b16 %v2513, %v2512
  %v2525 = vpack.c.b16 %v2515, %v2514
  %v2526 = vpack.c.b16 %v2517, %v2516
  %v2527 = vpack.c.b16 %v2519, %v2518
  %2536 = vmatprep.subr.bf16.mxu0 0
  %2537 = vmatpush1.bf16.msra.mxu0 %v2520
  %2538 = vmatprep.subr.bf16.mxu0 0
  %2539 = vmatpush1.bf16.msra.mxu0 %v2521
  %2540 = vmatprep.subr.bf16.mxu0 0
  %2541 = vmatpush1.bf16.msra.mxu0 %v2522
  %2542 = vmatprep.subr.bf16.mxu0 0
  %2543 = vmatpush1.bf16.msra.mxu0 %v2523
  %2544 = vmatprep.subr.bf16.mxu0 0
  %2545 = vmatpush1.bf16.msra.mxu0 %v2524
  %2546 = vmatprep.subr.bf16.mxu0 0
  %2547 = vmatpush1.bf16.msra.mxu0 %v2525
  %2548 = vmatprep.subr.bf16.mxu0 0
  %2549 = vmatpush1.bf16.msra.mxu0 %v2526
  %2550 = vmatprep.subr.bf16.mxu0 0
  %2551 = vmatpush1.bf16.msra.mxu0 %v2527
  %2552 = vmatprep.subr.bf16.mxu0 0
  %2553 = vmatpush1.bf16.msra.mxu0 0
  %2554 = vmatprep.subr.bf16.mxu0 0
  %2555 = vmatpush1.bf16.msra.mxu0 0
  %2556 = vmatprep.subr.bf16.mxu0 0
  %2557 = vmatpush1.bf16.msra.mxu0 0
  %2558 = vmatprep.subr.bf16.mxu0 0
  %2559 = vmatpush1.bf16.msra.mxu0 0
  %2560 = vmatprep.subr.bf16.mxu0 0
  %2561 = vmatpush1.bf16.msra.mxu0 0
  %2562 = vmatprep.subr.bf16.mxu0 0
  %2563 = vmatpush1.bf16.msra.mxu0 0
  %2564 = vmatprep.subr.bf16.mxu0 0
  %2565 = vmatpush1.bf16.msra.mxu0 0
  %2566 = vmatprep.subr.bf16.mxu0 0
  %2567 = vmatpush1.bf16.msra.mxu0 0
  %2568 = vmatprep.mubr.bf16.mxu0 0
  %2569 = vmatmul.mubr.bf16.gmra.mrb[0].mxu0 %v2487
  %v2570 = vpop.f32.mrb[0].mxu0
  %v2571 = vadd.f32 0.0, %v2570
  %v2572 = vpop.f32.mrb[0].mxu0
  %v2573 = vpop.f32.mrb[0].mxu0
  %v2574 = vpop.f32.mrb[0].mxu0
  %2575 = vdwg.mxu0
  %v2576 = vadd.f32 %v2326, %v2571
  %s2577 = scalar_lea.vmem %s12, 1
  %v2578 = vld [vmem:[%s2577] sm:$0x1]
  %v2580 = vlaneseq
  %v2581 = vshrl.u32 %v2580, 7
  %v2582 = vsub.s32 0, %v2581
  %v2583 = vrot.slane %v2578, %v2582
  %v2585 = vadd.f32 %v2576, %v2583
  %v2587 = vrot.slane %v2585, 4
  %vm2589 = vcmask 1040384
  %v2590 = vsel %vm2589, %v2585, %v2587
  %v2591 = vld [vmem:[%s13] sm:$0x3]
  %v2592 = vsel %vm609, %v2590, 0.0
  %2593 = vadd.xlane.f32.xlu0 %v2592
  %v2594 = vpop.xlane.xlu0 %2593
  %v2595 = vmul.f32 %v2594, %v613
  %v2596 = vsub.f32 %v2590, %v2595
  %v2597 = vmul.f32 %v2596, %v2596
  %v2598 = vsel %vm609, %v2597, 0.0
  %2599 = vadd.xlane.f32.xlu0 %v2598
  %v2600 = vpop.xlane.xlu0 %2599
  %v2601 = vmul.f32 %v2600, %v613
  %v2602 = vadd.f32 %v2601, 1e-05
  %v2603 = vrsqrt.pop %v2602
  %v2604 = vmul.f32 %v2596, %v2603
  %v2605 = vlaneseq
  %v2606 = vshrl.u32 %v2605, 7
  %v2607 = vsub.s32 0, %v2606
  %v2608 = vrot.slane %v2591, %v2607
  %v2609 = vmul.f32 %v2604, %v2608
  %v2610 = vlaneseq
  %v2611 = vshrl.u32 %v2610, 7
  %v2612 = vsub.s32 1, %v2611
  %v2613 = vrot.slane %v2591, %v2612
  %v2614 = vadd.f32 %v2609, %v2613
  %v2615 = vld [vmem:[%s15] sm:$0x1]
  %v2617 = vlaneseq
  %v2618 = vshrl.u32 %v2617, 7
  %v2619 = vsub.s32 0, %v2618
  %v2620 = vrot.slane %v2615, %v2619
  %v2622 = vmul.f32 %v2614, %v2620
  %v2623 = vsel %vm609, %v2622, 0.0
  %2624 = vadd.xlane.f32.xlu0 %v2623
  %v2625 = vpop.xlane.xlu0 %2624
  %v2626 = vld [vmem:[%s14] sm:$0xf]
  %v2627 = vld [vmem:[%s14 + $0x4] sm:$0xf]
  %v2628 = vld [vmem:[%s14 + $0x8] sm:$0xf]
  %v2629 = vld [vmem:[%s14 + $0xc] sm:$0xf]
  %v2630 = vld [vmem:[%s14 + $0x10] sm:$0xf]
  %v2631 = vld [vmem:[%s14 + $0x14] sm:$0xf]
  %v2632 = vld [vmem:[%s14 + $0x18] sm:$0xf]
  %v2633 = vld [vmem:[%s14 + $0x1c] sm:$0xf]
  %v2634 = vpack.c.bf16 %v2614, %v2614
  %v2643 = vunpack.c.l.b16 %v2626
  %v2644 = vunpack.c.l.b16 %v2627
  %v2645 = vunpack.c.l.b16 %v2628
  %v2646 = vunpack.c.l.b16 %v2629
  %v2647 = vunpack.c.l.b16 %v2630
  %v2648 = vunpack.c.l.b16 %v2631
  %v2649 = vunpack.c.l.b16 %v2632
  %v2650 = vunpack.c.l.b16 %v2633
  %v2651 = vpack.c.b16 %v2644, %v2643
  %v2652 = vpack.c.b16 %v2646, %v2645
  %v2653 = vpack.c.b16 %v2648, %v2647
  %v2654 = vpack.c.b16 %v2650, %v2649
  %v2660 = vsel %vm605, %v2634, 0
  %2662 = vmatprep.subr.bf16.mxu0 0
  %2663 = vmatpush1.bf16.msra.mxu0 %v2651
  %2664 = vmatprep.subr.bf16.mxu0 0
  %2665 = vmatpush1.bf16.msra.mxu0 %v2652
  %2666 = vmatprep.subr.bf16.mxu0 0
  %2667 = vmatpush1.bf16.msra.mxu0 %v2653
  %2668 = vmatprep.subr.bf16.mxu0 0
  %2669 = vmatpush1.bf16.msra.mxu0 %v2654
  %2670 = vmatprep.subr.bf16.mxu0 0
  %2671 = vmatpush1.bf16.msra.mxu0 0
  %2672 = vmatprep.subr.bf16.mxu0 0
  %2673 = vmatpush1.bf16.msra.mxu0 0
  %2674 = vmatprep.subr.bf16.mxu0 0
  %2675 = vmatpush1.bf16.msra.mxu0 0
  %2676 = vmatprep.subr.bf16.mxu0 0
  %2677 = vmatpush1.bf16.msra.mxu0 0
  %2678 = vmatprep.subr.bf16.mxu0 0
  %2679 = vmatpush1.bf16.msra.mxu0 0
  %2680 = vmatprep.subr.bf16.mxu0 0
  %2681 = vmatpush1.bf16.msra.mxu0 0
  %2682 = vmatprep.subr.bf16.mxu0 0
  %2683 = vmatpush1.bf16.msra.mxu0 0
  %2684 = vmatprep.subr.bf16.mxu0 0
  %2685 = vmatpush1.bf16.msra.mxu0 0
  %2686 = vmatprep.subr.bf16.mxu0 0
  %2687 = vmatpush1.bf16.msra.mxu0 0
  %2688 = vmatprep.subr.bf16.mxu0 0
  %2689 = vmatpush1.bf16.msra.mxu0 0
  %2690 = vmatprep.subr.bf16.mxu0 0
  %2691 = vmatpush1.bf16.msra.mxu0 0
  %2692 = vmatprep.subr.bf16.mxu0 0
  %2693 = vmatpush1.bf16.msra.mxu0 0
  %2694 = vmatprep.mubr.bf16.mxu0 0
  %2695 = vmatmul.mubr.bf16.gmra.mrb[0].mxu0 %v2660
  %v2696 = vpop.f32.mrb[0].mxu0
  %v2697 = vadd.f32 0.0, %v2696
  %v2698 = vpop.f32.mrb[0].mxu0
  %v2699 = vpop.f32.mrb[0].mxu0
  %v2700 = vpop.f32.mrb[0].mxu0
  %2701 = vdwg.mxu0
  %v2702 = vmul.f32 %v2697, %v2614
  %v2703 = vsel %vm609, %v2702, 0.0
  %2704 = vadd.xlane.f32.xlu0 %v2703
  %v2705 = vpop.xlane.xlu0 %2704
  %v2706 = vrsqrt.pop %v2705
  %v2707 = vmul.f32 %v2625, %v2706
  %v2708 = vld [vmem:[#allocation2] sm:$0x1]
  %v2710 = vlaneseq
  %v2711 = vshrl.u32 %v2710, 7
  %v2712 = vsub.s32 0, %v2711
  %v2713 = vrot.slane %v2708, %v2712
  %v2715 = vadd.f32 %v2707, %v2713
  %2717 = vset.pattern.permute.xlu0 0
  %2718 = vperm.xlu0 %2717, %v2715
  %v2719 = vpop.permute.xlu0 %2718
  %2721 = vst [vmem:[%s17] sm:$0x3] %v2719
  // Predicated region
  $region70: #{improved_aesthetic_predictor.1} parent=0 // pred_check
    _
  $region71: #{improved_aesthetic_predictor.1} parent=0 // pred_check_branch
    %2723 = sbr.rel (0) target = $region73
  $region72: #{improved_aesthetic_predictor.1} parent=0 // pred_region
    _
  $region73: #{improved_aesthetic_predictor.1} parent=0 // pred_fallthru
    _
  // Predicated region
  $region74: #{improved_aesthetic_predictor.1} parent=0 // pred_check
    _
  $region75: #{improved_aesthetic_predictor.1} parent=0 // pred_check_branch
    %2725 = sbr.rel (0) target = $region77
  $region76: #{improved_aesthetic_predictor.1} parent=0 // pred_region
    _
  $region77: #{improved_aesthetic_predictor.1} parent=0 // pred_fallthru
    _

</llo_original>
